<compile_context>
chip_gen: v7x
topology: tpu7x:2x2x1
jax: 0.10.0
libtpu: 0.0.40
codegen_flags: <defaults>
</compile_context>

<pallas_src>
import jax
import jax.numpy as jnp
from jax import lax
from jax.experimental import pallas as pl
from jax.experimental.pallas import tpu as pltpu

# ---------------- config (small shapes consistent with the module) ----------------
EMBED_NUM = 100
EMBED_DIM = 32
HIDDEN_DIM = 32
LSTM_LAYERS = 1          # dropout between LSTM layers is irrelevant with 1 layer
KMAX_K = 1               # fc input dim is hard-coded to 2*100 = 200 => kmax_k must be 1
LINEAR_HIDDEN = 64
CLASS_NUM = 4
CONV_CH = 200
CONV_K = 3
BATCH = 2
SEQ = 16
BN_EPS = 1e-5

# lane-dense padded sizes
VOCAB_PAD = 128                       # 100 -> 128 (zero rows, never indexed)
EMBED_PAD = 64                        # 32  -> 64  (zero cols)
CIN = 2 * HIDDEN_DIM + EMBED_DIM      # 96 real conv1 input channels
CIN_PAD = 128                         # 96  -> 128
CONV_PAD = 256                        # 200 -> 256
GATES = 8 * HIDDEN_DIM                # 256 combined fwd+bwd gate columns
L1 = SEQ - (CONV_K - 1)               # 14
L2 = L1 - (CONV_K - 1)                # 12

VMEM = pl.BlockSpec(memory_space=pltpu.MemorySpace.VMEM)


# ------------------------------- fused forward kernel -------------------------------
def rcnn_kernel(ids_ref, emb_ref, wihF_ref, wihB_ref, whh_ref, bias_ref,
                w1_ref, g1_ref, be1_ref, w2_ref, g2_ref, be2_ref,
                fc1w_ref, fc1b_ref, fcg_ref, fcb_ref, fc2w_ref, fc2b_ref,
                out_ref):
    S, B, H = SEQ, BATCH, HIDDEN_DIM

    # ---- embedding gather via one-hot matmul (MXU; avoids dynamic gather) ----
    ids = ids_ref[...]                                              # (S*B, 1) int32, time-major
    onehot = (ids == lax.broadcasted_iota(jnp.int32, (S * B, VOCAB_PAD), 1)
              ).astype(jnp.float32)                                 # (S*B, 128)
    embflat = jnp.dot(onehot, emb_ref[...],
                      preferred_element_type=jnp.float32)           # (S*B, EMBED_PAD)

    # ---- hoisted input projections for both directions (bias folded in once) ----
    xF = jnp.dot(embflat, wihF_ref[...],
                 preferred_element_type=jnp.float32) + bias_ref[...]  # (S*B, 256)
    xB = jnp.dot(embflat, wihB_ref[...],
                 preferred_element_type=jnp.float32)                  # (S*B, 256)

    # ---- fused bidirectional LSTM, fully unrolled (static indices everywhere) ----
    # combined gate column layout: [i_f, i_b, f_f, f_b, o_f, o_b, g_f, g_b] (32 each)
    whh = whh_ref[...]                                              # (2H, 8H)
    h_cat = jnp.zeros((B, 2 * H), jnp.float32)                      # [h_f | h_b]
    c_cat = jnp.zeros((B, 2 * H), jnp.float32)                      # [c_f | c_b]
    hf_steps, hb_steps, emb_steps = [], [], []
    for t in range(S):
        rf, rb = t * B, (S - 1 - t) * B
        gates = (jnp.dot(h_cat, whh, preferred_element_type=jnp.float32)
                 + xF[rf:rf + B, :] + xB[rb:rb + B, :])             # (B, 8H)
        sig = jax.nn.sigmoid(gates[:, :6 * H])                      # i/f/o for both dirs
        g_cat = jnp.tanh(gates[:, 6 * H:])                          # [g_f | g_b]
        i_cat = sig[:, 0:2 * H]
        f_cat = sig[:, 2 * H:4 * H]
        o_cat = sig[:, 4 * H:6 * H]
        c_cat = f_cat * c_cat + i_cat * g_cat
        h_cat = o_cat * jnp.tanh(c_cat)
        hf_steps.append(h_cat[:, :H])                               # fwd hidden @ time t
        hb_steps.append(h_cat[:, H:])                               # bwd hidden @ time S-1-t
        emb_steps.append(embflat[rf:rf + B, :])                     # embed @ time t

    hf = jnp.stack(hf_steps, axis=0)                                # (S, B, H)
    hb = jnp.stack(hb_steps[::-1], axis=0)                          # (S, B, H) in time order
    emb = jnp.stack(emb_steps, axis=0)                              # (S, B, EMBED_PAD)
    # channel order matches torch.cat((lstm_out, embed)): [h_f, h_b, e, zero-pad]
    feat = jnp.concatenate([hf, hb, emb], axis=2)                   # (S, B, CIN_PAD)

    # ---- Conv1d x2 (im2col single matmul) + training-mode BN + ReLU ----
    def bn_relu(y, g_ref, be_ref):
        mean = jnp.mean(y, axis=(0, 1), keepdims=True)
        var = jnp.maximum(jnp.mean(y * y, axis=(0, 1), keepdims=True) - mean * mean, 0.0)
        scale = g_ref[...].reshape(1, 1, -1) * lax.rsqrt(var + BN_EPS)
        shift = be_ref[...].reshape(1, 1, -1) - mean * scale
        return jnp.maximum(y * scale + shift, 0.0)

    im1 = jnp.concatenate([feat[k:k + L1] for k in range(CONV_K)], axis=2)   # (L1,B,384)
    y1 = bn_relu(jnp.einsum('lbc,cd->lbd', im1, w1_ref[...],
                            preferred_element_type=jnp.float32), g1_ref, be1_ref)
    im2 = jnp.concatenate([y1[k:k + L2] for k in range(CONV_K)], axis=2)     # (L2,B,768)
    y2 = bn_relu(jnp.einsum('lbc,cd->lbd', im2, w2_ref[...],
                            preferred_element_type=jnp.float32), g2_ref, be2_ref)

    # kmax pooling with k = 1 along length == plain max.
    # TODO(synk): general k > 1 needs sorted top-k + gather; the module's fc input dim
    #             (2*100) forces k == 1, so max is exact here.
    pooled = jnp.max(y2, axis=0)                                    # (B, CONV_PAD)

    # ---- FC -> BN(batch) -> ReLU -> FC ----
    h1 = jnp.dot(pooled, fc1w_ref[...],
                 preferred_element_type=jnp.float32) + fc1b_ref[...]
    m = jnp.mean(h1, axis=0, keepdims=True)
    v = jnp.maximum(jnp.mean(h1 * h1, axis=0, keepdims=True) - m * m, 0.0)
    sc = fcg_ref[...] * lax.rsqrt(v + BN_EPS)
    h1 = jnp.maximum(h1 * sc + (fcb_ref[...] - m * sc), 0.0)
    out_ref[...] = (jnp.dot(h1, fc2w_ref[...], preferred_element_type=jnp.float32)
                    + fc2b_ref[...])


# ------------------------- parameter packing (traced, cheap) ------------------------
def _place_gates(w, direction):
    # w: (rows, 4H) in native gate order [i, f, g, o] -> (rows, 8H) in combined layout
    # [i_f, i_b, f_f, f_b, o_f, o_b, g_f, g_b].
    H = HIDDEN_DIM
    i, f, g, o = w[:, 0:H], w[:, H:2 * H], w[:, 2 * H:3 * H], w[:, 3 * H:4 * H]
    z = jnp.zeros_like(i)
    blk = [i, z, f, z, o, z, g, z] if direction == 'f' else [z, i, z, f, z, o, z, g]
    return jnp.concatenate(blk, axis=1)


def _pack_params(p):
    emb = jnp.zeros((VOCAB_PAD, EMBED_PAD), jnp.float32)
    emb = emb.at[:EMBED_NUM, :EMBED_DIM].set(p['embedding'])

    pad_rows = lambda w: jnp.pad(w, ((0, EMBED_PAD - EMBED_DIM), (0, 0)))
    wihF = _place_gates(pad_rows(p['wih_f']), 'f')                  # (64, 256)
    wihB = _place_gates(pad_rows(p['wih_b']), 'b')                  # (64, 256)
    whh = jnp.concatenate([_place_gates(p['whh_f'], 'f'),
                           _place_gates(p['whh_b'], 'b')], axis=0)  # (64, 256)
    bias = _place_gates(p['b_f'], 'f') + _place_gates(p['b_b'], 'b')  # (1, 256)

    def pack_conv(w, cin, cin_pad):
        blocks = [jnp.pad(w[k], ((0, cin_pad - cin), (0, CONV_PAD - CONV_CH)))
                  for k in range(CONV_K)]
        return jnp.concatenate(blocks, axis=0)                      # (K*cin_pad, 256)

    w1 = pack_conv(p['conv1_w'], CIN, CIN_PAD)                      # (384, 256)
    w2 = pack_conv(p['conv2_w'], CONV_CH, CONV_PAD)                 # (768, 256)
    pad_ch = lambda v, c: jnp.pad(v, ((0, 0), (0, CONV_PAD - CONV_CH)), constant_values=c)
    return dict(
        emb=emb, wihF=wihF, wihB=wihB, whh=whh, bias=bias,
        w1=w1, g1=pad_ch(p['bn1_g'], 1.0), be1=pad_ch(p['bn1_b'], 0.0),
        w2=w2, g2=pad_ch(p['bn2_g'], 1.0), be2=pad_ch(p['bn2_b'], 0.0),
        fc1w=jnp.pad(p['fc1_w'], ((0, CONV_PAD - CONV_CH * KMAX_K), (0, 0))),
        fc1b=p['fc1_b'], fcg=p['fcbn_g'], fcb=p['fcbn_b'],
        fc2w=p['fc2_w'], fc2b=p['fc2_b'])


# ------------------------------------ forward --------------------------------------
@jax.jit
def rcnn_forward(params, text):
    # text: (B, S) int32 token ids; PyTorch does text.t_() -> (S, B). Time-major flat ids.
    q = _pack_params(params)
    ids = text.T.reshape(SEQ * BATCH, 1).astype(jnp.int32)
    return pl.pallas_call(
        rcnn_kernel,
        out_shape=jax.ShapeDtypeStruct((BATCH, CLASS_NUM), jnp.float32),
        in_specs=[VMEM] * 18,
        out_specs=VMEM,
    )(ids, q['emb'], q['wihF'], q['wihB'], q['whh'], q['bias'],
      q['w1'], q['g1'], q['be1'], q['w2'], q['g2'], q['be2'],
      q['fc1w'], q['fc1b'], q['fcg'], q['fcb'], q['fc2w'], q['fc2b'])


# ------------------------------- deterministic params -------------------------------
def init_params(key):
    ks = jax.random.split(key, 12)
    H4 = 4 * HIDDEN_DIM

    def nrm(k, shape, scale=0.05):
        return (scale * jax.random.normal(k, shape)).astype(jnp.float32)

    return {
        'embedding': nrm(ks[0], (EMBED_NUM, EMBED_DIM), 0.1),
        # LSTM stored as (in, 4H), gate order [i, f, g, o]; combined bias = b_ih + b_hh.
        'wih_f': nrm(ks[1], (EMBED_DIM, H4)),
        'whh_f': nrm(ks[2], (HIDDEN_DIM, H4)),
        'b_f': nrm(ks[3], (1, H4)),
        'wih_b': nrm(ks[4], (EMBED_DIM, H4)),
        'whh_b': nrm(ks[5], (HIDDEN_DIM, H4)),
        'b_b': nrm(ks[6], (1, H4)),
        # Conv1d weights stored as (k, in, out).  Conv biases are omitted: a per-channel
        # constant cancels exactly under training-mode (batch-statistics) BatchNorm.
        'conv1_w': nrm(ks[7], (CONV_K, CIN, CONV_CH)),
        'bn1_g': jnp.ones((1, CONV_CH), jnp.float32),
        'bn1_b': jnp.zeros((1, CONV_CH), jnp.float32),
        'conv2_w': nrm(ks[8], (CONV_K, CONV_CH, CONV_CH)),
        'bn2_g': jnp.ones((1, CONV_CH), jnp.float32),
        'bn2_b': jnp.zeros((1, CONV_CH), jnp.float32),
        # FC: Linear(2*100, linear_hidden) -> BN -> ReLU -> Linear(linear_hidden, class)
        'fc1_w': nrm(ks[9], (2 * 100 * KMAX_K, LINEAR_HIDDEN)),
        'fc1_b': jnp.zeros((1, LINEAR_HIDDEN), jnp.float32),
        'fcbn_g': jnp.ones((1, LINEAR_HIDDEN), jnp.float32),
        'fcbn_b': jnp.zeros((1, LINEAR_HIDDEN), jnp.float32),
        'fc2_w': nrm(ks[10], (LINEAR_HIDDEN, CLASS_NUM)),
        'fc2_b': jnp.zeros((1, CLASS_NUM), jnp.float32),
    }


if __name__ == "__main__":
    key = jax.random.PRNGKey(0)
    pkey, tkey = jax.random.split(key)
    params = init_params(pkey)
    text = jax.random.randint(tkey, (BATCH, SEQ), 0, EMBED_NUM, dtype=jnp.int32)

    logits = rcnn_forward(params, text)
    jax.block_until_ready(logits)
    assert logits.shape == (BATCH, CLASS_NUM), logits.shape
    assert bool(jnp.all(jnp.isfinite(logits)))
    print("KERNEL_OK")
</pallas_src>

<mosaic_0001>
module attributes {stable_mosaic.version = 11 : i64} {
  func.func @rcnn_kernel(%arg0: memref<32x1xi32, #tpu.memory_space<vmem>>, %arg1: memref<128x64xf32, #tpu.memory_space<vmem>>, %arg2: memref<64x256xf32, #tpu.memory_space<vmem>>, %arg3: memref<64x256xf32, #tpu.memory_space<vmem>>, %arg4: memref<64x256xf32, #tpu.memory_space<vmem>>, %arg5: memref<1x256xf32, #tpu.memory_space<vmem>>, %arg6: memref<384x256xf32, #tpu.memory_space<vmem>>, %arg7: memref<1x256xf32, #tpu.memory_space<vmem>>, %arg8: memref<1x256xf32, #tpu.memory_space<vmem>>, %arg9: memref<768x256xf32, #tpu.memory_space<vmem>>, %arg10: memref<1x256xf32, #tpu.memory_space<vmem>>, %arg11: memref<1x256xf32, #tpu.memory_space<vmem>>, %arg12: memref<256x64xf32, #tpu.memory_space<vmem>>, %arg13: memref<1x64xf32, #tpu.memory_space<vmem>>, %arg14: memref<1x64xf32, #tpu.memory_space<vmem>>, %arg15: memref<1x64xf32, #tpu.memory_space<vmem>>, %arg16: memref<64x4xf32, #tpu.memory_space<vmem>>, %arg17: memref<1x4xf32, #tpu.memory_space<vmem>>, %arg18: memref<2x4xf32, #tpu.memory_space<vmem>>) attributes {dimension_semantics = [], scalar_prefetch = 0 : i64, scratch_operands = 0 : i64, tpu.core_type = #tpu.core_type<tc>} {
    %c0 = arith.constant 0 : index
    %c0_0 = arith.constant 0 : index
    %0 = vector.load %arg0[%c0, %c0_0] : memref<32x1xi32, #tpu.memory_space<vmem>>, vector<32x1xi32>
    %1 = tpu.iota {dimensions = array<i32: 1>} : vector<32x128xi32>
    %2 = vector.broadcast %0 : vector<32x1xi32> to vector<32x128xi32>
    %3 = arith.cmpi eq, %2, %1 : vector<32x128xi32>
    %4 = arith.extui %3 : vector<32x128xi1> to vector<32x128xi32>
    %5 = arith.sitofp %4 : vector<32x128xi32> to vector<32x128xf32>
    %c0_1 = arith.constant 0 : index
    %c0_2 = arith.constant 0 : index
    %6 = vector.load %arg1[%c0_1, %c0_2] : memref<128x64xf32, #tpu.memory_space<vmem>>, vector<128x64xf32>
    %cst = arith.constant dense<0.000000e+00> : vector<32x64xf32>
    %7 = tpu.matmul %5, %6, %cst {dimension_numbers = #tpu.dot_dimension_numbers<[1], [0], [0], [1], [0, 0, 1, 1], [], []>} : vector<32x128xf32>, vector<128x64xf32>, vector<32x64xf32> -> vector<32x64xf32>
    %c0_3 = arith.constant 0 : index
    %c0_4 = arith.constant 0 : index
    %8 = vector.load %arg2[%c0_3, %c0_4] : memref<64x256xf32, #tpu.memory_space<vmem>>, vector<64x256xf32>
    %cst_5 = arith.constant dense<0.000000e+00> : vector<32x256xf32>
    %9 = tpu.matmul %7, %8, %cst_5 {dimension_numbers = #tpu.dot_dimension_numbers<[1], [0], [0], [1], [0, 0, 1, 1], [], []>} : vector<32x64xf32>, vector<64x256xf32>, vector<32x256xf32> -> vector<32x256xf32>
    %c0_6 = arith.constant 0 : index
    %c0_7 = arith.constant 0 : index
    %10 = vector.load %arg5[%c0_6, %c0_7] : memref<1x256xf32, #tpu.memory_space<vmem>>, vector<1x256xf32>
    %11 = vector.broadcast %10 : vector<1x256xf32> to vector<32x256xf32>
    %12 = arith.addf %9, %11 : vector<32x256xf32>
    %c0_8 = arith.constant 0 : index
    %c0_9 = arith.constant 0 : index
    %13 = vector.load %arg3[%c0_8, %c0_9] : memref<64x256xf32, #tpu.memory_space<vmem>>, vector<64x256xf32>
    %cst_10 = arith.constant dense<0.000000e+00> : vector<32x256xf32>
    %14 = tpu.matmul %7, %13, %cst_10 {dimension_numbers = #tpu.dot_dimension_numbers<[1], [0], [0], [1], [0, 0, 1, 1], [], []>} : vector<32x64xf32>, vector<64x256xf32>, vector<32x256xf32> -> vector<32x256xf32>
    %c0_11 = arith.constant 0 : index
    %c0_12 = arith.constant 0 : index
    %15 = vector.load %arg4[%c0_11, %c0_12] : memref<64x256xf32, #tpu.memory_space<vmem>>, vector<64x256xf32>
    %cst_13 = arith.constant 0.000000e+00 : f32
    %16 = vector.broadcast %cst_13 : f32 to vector<2x64xf32>
    %cst_14 = arith.constant 0.000000e+00 : f32
    %17 = vector.broadcast %cst_14 : f32 to vector<2x64xf32>
    %cst_15 = arith.constant dense<0.000000e+00> : vector<2x256xf32>
    %18 = tpu.matmul %16, %15, %cst_15 {dimension_numbers = #tpu.dot_dimension_numbers<[1], [0], [0], [1], [0, 0, 1, 1], [], []>} : vector<2x64xf32>, vector<64x256xf32>, vector<2x256xf32> -> vector<2x256xf32>
    %19 = vector.extract_strided_slice %12 {offsets = [0, 0], sizes = [2, 256], strides = [1, 1]} : vector<32x256xf32> to vector<2x256xf32>
    %20 = arith.addf %18, %19 : vector<2x256xf32>
    %21 = vector.extract_strided_slice %14 {offsets = [30, 0], sizes = [2, 256], strides = [1, 1]} : vector<32x256xf32> to vector<2x256xf32>
    %22 = arith.addf %20, %21 : vector<2x256xf32>
    %23 = vector.extract_strided_slice %22 {offsets = [0, 0], sizes = [2, 192], strides = [1, 1]} : vector<2x256xf32> to vector<2x192xf32>
    %24 = arith.negf %23 : vector<2x192xf32>
    %25 = math.exp %24 : vector<2x192xf32>
    %cst_16 = arith.constant 1.000000e+00 : f32
    %26 = vector.broadcast %cst_16 : f32 to vector<2x192xf32>
    %27 = arith.addf %26, %25 : vector<2x192xf32>
    %28 = arith.divf %26, %27 : vector<2x192xf32>
    %29 = vector.extract_strided_slice %22 {offsets = [0, 192], sizes = [2, 64], strides = [1, 1]} : vector<2x256xf32> to vector<2x64xf32>
    %30 = math.tanh %29 : vector<2x64xf32>
    %31 = vector.extract_strided_slice %28 {offsets = [0, 0], sizes = [2, 64], strides = [1, 1]} : vector<2x192xf32> to vector<2x64xf32>
    %32 = vector.extract_strided_slice %28 {offsets = [0, 64], sizes = [2, 64], strides = [1, 1]} : vector<2x192xf32> to vector<2x64xf32>
    %33 = vector.extract_strided_slice %28 {offsets = [0, 128], sizes = [2, 64], strides = [1, 1]} : vector<2x192xf32> to vector<2x64xf32>
    %34 = arith.mulf %32, %17 : vector<2x64xf32>
    %35 = arith.mulf %31, %30 : vector<2x64xf32>
    %36 = arith.addf %34, %35 : vector<2x64xf32>
    %37 = math.tanh %36 : vector<2x64xf32>
    %38 = arith.mulf %33, %37 : vector<2x64xf32>
    %39 = vector.extract_strided_slice %38 {offsets = [0, 0], sizes = [2, 32], strides = [1, 1]} : vector<2x64xf32> to vector<2x32xf32>
    %40 = vector.extract_strided_slice %38 {offsets = [0, 32], sizes = [2, 32], strides = [1, 1]} : vector<2x64xf32> to vector<2x32xf32>
    %41 = vector.extract_strided_slice %7 {offsets = [0, 0], sizes = [2, 64], strides = [1, 1]} : vector<32x64xf32> to vector<2x64xf32>
    %cst_17 = arith.constant dense<0.000000e+00> : vector<2x256xf32>
    %42 = tpu.matmul %38, %15, %cst_17 {dimension_numbers = #tpu.dot_dimension_numbers<[1], [0], [0], [1], [0, 0, 1, 1], [], []>} : vector<2x64xf32>, vector<64x256xf32>, vector<2x256xf32> -> vector<2x256xf32>
    %43 = vector.extract_strided_slice %12 {offsets = [2, 0], sizes = [2, 256], strides = [1, 1]} : vector<32x256xf32> to vector<2x256xf32>
    %44 = arith.addf %42, %43 : vector<2x256xf32>
    %45 = vector.extract_strided_slice %14 {offsets = [28, 0], sizes = [2, 256], strides = [1, 1]} : vector<32x256xf32> to vector<2x256xf32>
    %46 = arith.addf %44, %45 : vector<2x256xf32>
    %47 = vector.extract_strided_slice %46 {offsets = [0, 0], sizes = [2, 192], strides = [1, 1]} : vector<2x256xf32> to vector<2x192xf32>
    %48 = arith.negf %47 : vector<2x192xf32>
    %49 = math.exp %48 : vector<2x192xf32>
    %cst_18 = arith.constant 1.000000e+00 : f32
    %50 = vector.broadcast %cst_18 : f32 to vector<2x192xf32>
    %51 = arith.addf %50, %49 : vector<2x192xf32>
    %52 = arith.divf %50, %51 : vector<2x192xf32>
    %53 = vector.extract_strided_slice %46 {offsets = [0, 192], sizes = [2, 64], strides = [1, 1]} : vector<2x256xf32> to vector<2x64xf32>
    %54 = math.tanh %53 : vector<2x64xf32>
    %55 = vector.extract_strided_slice %52 {offsets = [0, 0], sizes = [2, 64], strides = [1, 1]} : vector<2x192xf32> to vector<2x64xf32>
    %56 = vector.extract_strided_slice %52 {offsets = [0, 64], sizes = [2, 64], strides = [1, 1]} : vector<2x192xf32> to vector<2x64xf32>
    %57 = vector.extract_strided_slice %52 {offsets = [0, 128], sizes = [2, 64], strides = [1, 1]} : vector<2x192xf32> to vector<2x64xf32>
    %58 = arith.mulf %56, %36 : vector<2x64xf32>
    %59 = arith.mulf %55, %54 : vector<2x64xf32>
    %60 = arith.addf %58, %59 : vector<2x64xf32>
    %61 = math.tanh %60 : vector<2x64xf32>
    %62 = arith.mulf %57, %61 : vector<2x64xf32>
    %63 = vector.extract_strided_slice %62 {offsets = [0, 0], sizes = [2, 32], strides = [1, 1]} : vector<2x64xf32> to vector<2x32xf32>
    %64 = vector.extract_strided_slice %62 {offsets = [0, 32], sizes = [2, 32], strides = [1, 1]} : vector<2x64xf32> to vector<2x32xf32>
    %65 = vector.extract_strided_slice %7 {offsets = [2, 0], sizes = [2, 64], strides = [1, 1]} : vector<32x64xf32> to vector<2x64xf32>
    %cst_19 = arith.constant dense<0.000000e+00> : vector<2x256xf32>
    %66 = tpu.matmul %62, %15, %cst_19 {dimension_numbers = #tpu.dot_dimension_numbers<[1], [0], [0], [1], [0, 0, 1, 1], [], []>} : vector<2x64xf32>, vector<64x256xf32>, vector<2x256xf32> -> vector<2x256xf32>
    %67 = vector.extract_strided_slice %12 {offsets = [4, 0], sizes = [2, 256], strides = [1, 1]} : vector<32x256xf32> to vector<2x256xf32>
    %68 = arith.addf %66, %67 : vector<2x256xf32>
    %69 = vector.extract_strided_slice %14 {offsets = [26, 0], sizes = [2, 256], strides = [1, 1]} : vector<32x256xf32> to vector<2x256xf32>
    %70 = arith.addf %68, %69 : vector<2x256xf32>
    %71 = vector.extract_strided_slice %70 {offsets = [0, 0], sizes = [2, 192], strides = [1, 1]} : vector<2x256xf32> to vector<2x192xf32>
    %72 = arith.negf %71 : vector<2x192xf32>
    %73 = math.exp %72 : vector<2x192xf32>
    %cst_20 = arith.constant 1.000000e+00 : f32
    %74 = vector.broadcast %cst_20 : f32 to vector<2x192xf32>
    %75 = arith.addf %74, %73 : vector<2x192xf32>
    %76 = arith.divf %74, %75 : vector<2x192xf32>
    %77 = vector.extract_strided_slice %70 {offsets = [0, 192], sizes = [2, 64], strides = [1, 1]} : vector<2x256xf32> to vector<2x64xf32>
    %78 = math.tanh %77 : vector<2x64xf32>
    %79 = vector.extract_strided_slice %76 {offsets = [0, 0], sizes = [2, 64], strides = [1, 1]} : vector<2x192xf32> to vector<2x64xf32>
    %80 = vector.extract_strided_slice %76 {offsets = [0, 64], sizes = [2, 64], strides = [1, 1]} : vector<2x192xf32> to vector<2x64xf32>
    %81 = vector.extract_strided_slice %76 {offsets = [0, 128], sizes = [2, 64], strides = [1, 1]} : vector<2x192xf32> to vector<2x64xf32>
    %82 = arith.mulf %80, %60 : vector<2x64xf32>
    %83 = arith.mulf %79, %78 : vector<2x64xf32>
    %84 = arith.addf %82, %83 : vector<2x64xf32>
    %85 = math.tanh %84 : vector<2x64xf32>
    %86 = arith.mulf %81, %85 : vector<2x64xf32>
    %87 = vector.extract_strided_slice %86 {offsets = [0, 0], sizes = [2, 32], strides = [1, 1]} : vector<2x64xf32> to vector<2x32xf32>
    %88 = vector.extract_strided_slice %86 {offsets = [0, 32], sizes = [2, 32], strides = [1, 1]} : vector<2x64xf32> to vector<2x32xf32>
    %89 = vector.extract_strided_slice %7 {offsets = [4, 0], sizes = [2, 64], strides = [1, 1]} : vector<32x64xf32> to vector<2x64xf32>
    %cst_21 = arith.constant dense<0.000000e+00> : vector<2x256xf32>
    %90 = tpu.matmul %86, %15, %cst_21 {dimension_numbers = #tpu.dot_dimension_numbers<[1], [0], [0], [1], [0, 0, 1, 1], [], []>} : vector<2x64xf32>, vector<64x256xf32>, vector<2x256xf32> -> vector<2x256xf32>
    %91 = vector.extract_strided_slice %12 {offsets = [6, 0], sizes = [2, 256], strides = [1, 1]} : vector<32x256xf32> to vector<2x256xf32>
    %92 = arith.addf %90, %91 : vector<2x256xf32>
    %93 = vector.extract_strided_slice %14 {offsets = [24, 0], sizes = [2, 256], strides = [1, 1]} : vector<32x256xf32> to vector<2x256xf32>
    %94 = arith.addf %92, %93 : vector<2x256xf32>
    %95 = vector.extract_strided_slice %94 {offsets = [0, 0], sizes = [2, 192], strides = [1, 1]} : vector<2x256xf32> to vector<2x192xf32>
    %96 = arith.negf %95 : vector<2x192xf32>
    %97 = math.exp %96 : vector<2x192xf32>
    %cst_22 = arith.constant 1.000000e+00 : f32
    %98 = vector.broadcast %cst_22 : f32 to vector<2x192xf32>
    %99 = arith.addf %98, %97 : vector<2x192xf32>
    %100 = arith.divf %98, %99 : vector<2x192xf32>
    %101 = vector.extract_strided_slice %94 {offsets = [0, 192], sizes = [2, 64], strides = [1, 1]} : vector<2x256xf32> to vector<2x64xf32>
    %102 = math.tanh %101 : vector<2x64xf32>
    %103 = vector.extract_strided_slice %100 {offsets = [0, 0], sizes = [2, 64], strides = [1, 1]} : vector<2x192xf32> to vector<2x64xf32>
    %104 = vector.extract_strided_slice %100 {offsets = [0, 64], sizes = [2, 64], strides = [1, 1]} : vector<2x192xf32> to vector<2x64xf32>
    %105 = vector.extract_strided_slice %100 {offsets = [0, 128], sizes = [2, 64], strides = [1, 1]} : vector<2x192xf32> to vector<2x64xf32>
    %106 = arith.mulf %104, %84 : vector<2x64xf32>
    %107 = arith.mulf %103, %102 : vector<2x64xf32>
    %108 = arith.addf %106, %107 : vector<2x64xf32>
    %109 = math.tanh %108 : vector<2x64xf32>
    %110 = arith.mulf %105, %109 : vector<2x64xf32>
    %111 = vector.extract_strided_slice %110 {offsets = [0, 0], sizes = [2, 32], strides = [1, 1]} : vector<2x64xf32> to vector<2x32xf32>
    %112 = vector.extract_strided_slice %110 {offsets = [0, 32], sizes = [2, 32], strides = [1, 1]} : vector<2x64xf32> to vector<2x32xf32>
    %113 = vector.extract_strided_slice %7 {offsets = [6, 0], sizes = [2, 64], strides = [1, 1]} : vector<32x64xf32> to vector<2x64xf32>
    %cst_23 = arith.constant dense<0.000000e+00> : vector<2x256xf32>
    %114 = tpu.matmul %110, %15, %cst_23 {dimension_numbers = #tpu.dot_dimension_numbers<[1], [0], [0], [1], [0, 0, 1, 1], [], []>} : vector<2x64xf32>, vector<64x256xf32>, vector<2x256xf32> -> vector<2x256xf32>
    %115 = vector.extract_strided_slice %12 {offsets = [8, 0], sizes = [2, 256], strides = [1, 1]} : vector<32x256xf32> to vector<2x256xf32>
    %116 = arith.addf %114, %115 : vector<2x256xf32>
    %117 = vector.extract_strided_slice %14 {offsets = [22, 0], sizes = [2, 256], strides = [1, 1]} : vector<32x256xf32> to vector<2x256xf32>
    %118 = arith.addf %116, %117 : vector<2x256xf32>
    %119 = vector.extract_strided_slice %118 {offsets = [0, 0], sizes = [2, 192], strides = [1, 1]} : vector<2x256xf32> to vector<2x192xf32>
    %120 = arith.negf %119 : vector<2x192xf32>
    %121 = math.exp %120 : vector<2x192xf32>
    %cst_24 = arith.constant 1.000000e+00 : f32
    %122 = vector.broadcast %cst_24 : f32 to vector<2x192xf32>
    %123 = arith.addf %122, %121 : vector<2x192xf32>
    %124 = arith.divf %122, %123 : vector<2x192xf32>
    %125 = vector.extract_strided_slice %118 {offsets = [0, 192], sizes = [2, 64], strides = [1, 1]} : vector<2x256xf32> to vector<2x64xf32>
    %126 = math.tanh %125 : vector<2x64xf32>
    %127 = vector.extract_strided_slice %124 {offsets = [0, 0], sizes = [2, 64], strides = [1, 1]} : vector<2x192xf32> to vector<2x64xf32>
    %128 = vector.extract_strided_slice %124 {offsets = [0, 64], sizes = [2, 64], strides = [1, 1]} : vector<2x192xf32> to vector<2x64xf32>
    %129 = vector.extract_strided_slice %124 {offsets = [0, 128], sizes = [2, 64], strides = [1, 1]} : vector<2x192xf32> to vector<2x64xf32>
    %130 = arith.mulf %128, %108 : vector<2x64xf32>
    %131 = arith.mulf %127, %126 : vector<2x64xf32>
    %132 = arith.addf %130, %131 : vector<2x64xf32>
    %133 = math.tanh %132 : vector<2x64xf32>
    %134 = arith.mulf %129, %133 : vector<2x64xf32>
    %135 = vector.extract_strided_slice %134 {offsets = [0, 0], sizes = [2, 32], strides = [1, 1]} : vector<2x64xf32> to vector<2x32xf32>
    %136 = vector.extract_strided_slice %134 {offsets = [0, 32], sizes = [2, 32], strides = [1, 1]} : vector<2x64xf32> to vector<2x32xf32>
    %137 = vector.extract_strided_slice %7 {offsets = [8, 0], sizes = [2, 64], strides = [1, 1]} : vector<32x64xf32> to vector<2x64xf32>
    %cst_25 = arith.constant dense<0.000000e+00> : vector<2x256xf32>
    %138 = tpu.matmul %134, %15, %cst_25 {dimension_numbers = #tpu.dot_dimension_numbers<[1], [0], [0], [1], [0, 0, 1, 1], [], []>} : vector<2x64xf32>, vector<64x256xf32>, vector<2x256xf32> -> vector<2x256xf32>
    %139 = vector.extract_strided_slice %12 {offsets = [10, 0], sizes = [2, 256], strides = [1, 1]} : vector<32x256xf32> to vector<2x256xf32>
    %140 = arith.addf %138, %139 : vector<2x256xf32>
    %141 = vector.extract_strided_slice %14 {offsets = [20, 0], sizes = [2, 256], strides = [1, 1]} : vector<32x256xf32> to vector<2x256xf32>
    %142 = arith.addf %140, %141 : vector<2x256xf32>
    %143 = vector.extract_strided_slice %142 {offsets = [0, 0], sizes = [2, 192], strides = [1, 1]} : vector<2x256xf32> to vector<2x192xf32>
    %144 = arith.negf %143 : vector<2x192xf32>
    %145 = math.exp %144 : vector<2x192xf32>
    %cst_26 = arith.constant 1.000000e+00 : f32
    %146 = vector.broadcast %cst_26 : f32 to vector<2x192xf32>
    %147 = arith.addf %146, %145 : vector<2x192xf32>
    %148 = arith.divf %146, %147 : vector<2x192xf32>
    %149 = vector.extract_strided_slice %142 {offsets = [0, 192], sizes = [2, 64], strides = [1, 1]} : vector<2x256xf32> to vector<2x64xf32>
    %150 = math.tanh %149 : vector<2x64xf32>
    %151 = vector.extract_strided_slice %148 {offsets = [0, 0], sizes = [2, 64], strides = [1, 1]} : vector<2x192xf32> to vector<2x64xf32>
    %152 = vector.extract_strided_slice %148 {offsets = [0, 64], sizes = [2, 64], strides = [1, 1]} : vector<2x192xf32> to vector<2x64xf32>
    %153 = vector.extract_strided_slice %148 {offsets = [0, 128], sizes = [2, 64], strides = [1, 1]} : vector<2x192xf32> to vector<2x64xf32>
    %154 = arith.mulf %152, %132 : vector<2x64xf32>
    %155 = arith.mulf %151, %150 : vector<2x64xf32>
    %156 = arith.addf %154, %155 : vector<2x64xf32>
    %157 = math.tanh %156 : vector<2x64xf32>
    %158 = arith.mulf %153, %157 : vector<2x64xf32>
    %159 = vector.extract_strided_slice %158 {offsets = [0, 0], sizes = [2, 32], strides = [1, 1]} : vector<2x64xf32> to vector<2x32xf32>
    %160 = vector.extract_strided_slice %158 {offsets = [0, 32], sizes = [2, 32], strides = [1, 1]} : vector<2x64xf32> to vector<2x32xf32>
    %161 = vector.extract_strided_slice %7 {offsets = [10, 0], sizes = [2, 64], strides = [1, 1]} : vector<32x64xf32> to vector<2x64xf32>
    %cst_27 = arith.constant dense<0.000000e+00> : vector<2x256xf32>
    %162 = tpu.matmul %158, %15, %cst_27 {dimension_numbers = #tpu.dot_dimension_numbers<[1], [0], [0], [1], [0, 0, 1, 1], [], []>} : vector<2x64xf32>, vector<64x256xf32>, vector<2x256xf32> -> vector<2x256xf32>
    %163 = vector.extract_strided_slice %12 {offsets = [12, 0], sizes = [2, 256], strides = [1, 1]} : vector<32x256xf32> to vector<2x256xf32>
    %164 = arith.addf %162, %163 : vector<2x256xf32>
    %165 = vector.extract_strided_slice %14 {offsets = [18, 0], sizes = [2, 256], strides = [1, 1]} : vector<32x256xf32> to vector<2x256xf32>
    %166 = arith.addf %164, %165 : vector<2x256xf32>
    %167 = vector.extract_strided_slice %166 {offsets = [0, 0], sizes = [2, 192], strides = [1, 1]} : vector<2x256xf32> to vector<2x192xf32>
    %168 = arith.negf %167 : vector<2x192xf32>
    %169 = math.exp %168 : vector<2x192xf32>
    %cst_28 = arith.constant 1.000000e+00 : f32
    %170 = vector.broadcast %cst_28 : f32 to vector<2x192xf32>
    %171 = arith.addf %170, %169 : vector<2x192xf32>
    %172 = arith.divf %170, %171 : vector<2x192xf32>
    %173 = vector.extract_strided_slice %166 {offsets = [0, 192], sizes = [2, 64], strides = [1, 1]} : vector<2x256xf32> to vector<2x64xf32>
    %174 = math.tanh %173 : vector<2x64xf32>
    %175 = vector.extract_strided_slice %172 {offsets = [0, 0], sizes = [2, 64], strides = [1, 1]} : vector<2x192xf32> to vector<2x64xf32>
    %176 = vector.extract_strided_slice %172 {offsets = [0, 64], sizes = [2, 64], strides = [1, 1]} : vector<2x192xf32> to vector<2x64xf32>
    %177 = vector.extract_strided_slice %172 {offsets = [0, 128], sizes = [2, 64], strides = [1, 1]} : vector<2x192xf32> to vector<2x64xf32>
    %178 = arith.mulf %176, %156 : vector<2x64xf32>
    %179 = arith.mulf %175, %174 : vector<2x64xf32>
    %180 = arith.addf %178, %179 : vector<2x64xf32>
    %181 = math.tanh %180 : vector<2x64xf32>
    %182 = arith.mulf %177, %181 : vector<2x64xf32>
    %183 = vector.extract_strided_slice %182 {offsets = [0, 0], sizes = [2, 32], strides = [1, 1]} : vector<2x64xf32> to vector<2x32xf32>
    %184 = vector.extract_strided_slice %182 {offsets = [0, 32], sizes = [2, 32], strides = [1, 1]} : vector<2x64xf32> to vector<2x32xf32>
    %185 = vector.extract_strided_slice %7 {offsets = [12, 0], sizes = [2, 64], strides = [1, 1]} : vector<32x64xf32> to vector<2x64xf32>
    %cst_29 = arith.constant dense<0.000000e+00> : vector<2x256xf32>
    %186 = tpu.matmul %182, %15, %cst_29 {dimension_numbers = #tpu.dot_dimension_numbers<[1], [0], [0], [1], [0, 0, 1, 1], [], []>} : vector<2x64xf32>, vector<64x256xf32>, vector<2x256xf32> -> vector<2x256xf32>
    %187 = vector.extract_strided_slice %12 {offsets = [14, 0], sizes = [2, 256], strides = [1, 1]} : vector<32x256xf32> to vector<2x256xf32>
    %188 = arith.addf %186, %187 : vector<2x256xf32>
    %189 = vector.extract_strided_slice %14 {offsets = [16, 0], sizes = [2, 256], strides = [1, 1]} : vector<32x256xf32> to vector<2x256xf32>
    %190 = arith.addf %188, %189 : vector<2x256xf32>
    %191 = vector.extract_strided_slice %190 {offsets = [0, 0], sizes = [2, 192], strides = [1, 1]} : vector<2x256xf32> to vector<2x192xf32>
    %192 = arith.negf %191 : vector<2x192xf32>
    %193 = math.exp %192 : vector<2x192xf32>
    %cst_30 = arith.constant 1.000000e+00 : f32
    %194 = vector.broadcast %cst_30 : f32 to vector<2x192xf32>
    %195 = arith.addf %194, %193 : vector<2x192xf32>
    %196 = arith.divf %194, %195 : vector<2x192xf32>
    %197 = vector.extract_strided_slice %190 {offsets = [0, 192], sizes = [2, 64], strides = [1, 1]} : vector<2x256xf32> to vector<2x64xf32>
    %198 = math.tanh %197 : vector<2x64xf32>
    %199 = vector.extract_strided_slice %196 {offsets = [0, 0], sizes = [2, 64], strides = [1, 1]} : vector<2x192xf32> to vector<2x64xf32>
    %200 = vector.extract_strided_slice %196 {offsets = [0, 64], sizes = [2, 64], strides = [1, 1]} : vector<2x192xf32> to vector<2x64xf32>
    %201 = vector.extract_strided_slice %196 {offsets = [0, 128], sizes = [2, 64], strides = [1, 1]} : vector<2x192xf32> to vector<2x64xf32>
    %202 = arith.mulf %200, %180 : vector<2x64xf32>
    %203 = arith.mulf %199, %198 : vector<2x64xf32>
    %204 = arith.addf %202, %203 : vector<2x64xf32>
    %205 = math.tanh %204 : vector<2x64xf32>
    %206 = arith.mulf %201, %205 : vector<2x64xf32>
    %207 = vector.extract_strided_slice %206 {offsets = [0, 0], sizes = [2, 32], strides = [1, 1]} : vector<2x64xf32> to vector<2x32xf32>
    %208 = vector.extract_strided_slice %206 {offsets = [0, 32], sizes = [2, 32], strides = [1, 1]} : vector<2x64xf32> to vector<2x32xf32>
    %209 = vector.extract_strided_slice %7 {offsets = [14, 0], sizes = [2, 64], strides = [1, 1]} : vector<32x64xf32> to vector<2x64xf32>
    %cst_31 = arith.constant dense<0.000000e+00> : vector<2x256xf32>
    %210 = tpu.matmul %206, %15, %cst_31 {dimension_numbers = #tpu.dot_dimension_numbers<[1], [0], [0], [1], [0, 0, 1, 1], [], []>} : vector<2x64xf32>, vector<64x256xf32>, vector<2x256xf32> -> vector<2x256xf32>
    %211 = vector.extract_strided_slice %12 {offsets = [16, 0], sizes = [2, 256], strides = [1, 1]} : vector<32x256xf32> to vector<2x256xf32>
    %212 = arith.addf %210, %211 : vector<2x256xf32>
    %213 = vector.extract_strided_slice %14 {offsets = [14, 0], sizes = [2, 256], strides = [1, 1]} : vector<32x256xf32> to vector<2x256xf32>
    %214 = arith.addf %212, %213 : vector<2x256xf32>
    %215 = vector.extract_strided_slice %214 {offsets = [0, 0], sizes = [2, 192], strides = [1, 1]} : vector<2x256xf32> to vector<2x192xf32>
    %216 = arith.negf %215 : vector<2x192xf32>
    %217 = math.exp %216 : vector<2x192xf32>
    %cst_32 = arith.constant 1.000000e+00 : f32
    %218 = vector.broadcast %cst_32 : f32 to vector<2x192xf32>
    %219 = arith.addf %218, %217 : vector<2x192xf32>
    %220 = arith.divf %218, %219 : vector<2x192xf32>
    %221 = vector.extract_strided_slice %214 {offsets = [0, 192], sizes = [2, 64], strides = [1, 1]} : vector<2x256xf32> to vector<2x64xf32>
    %222 = math.tanh %221 : vector<2x64xf32>
    %223 = vector.extract_strided_slice %220 {offsets = [0, 0], sizes = [2, 64], strides = [1, 1]} : vector<2x192xf32> to vector<2x64xf32>
    %224 = vector.extract_strided_slice %220 {offsets = [0, 64], sizes = [2, 64], strides = [1, 1]} : vector<2x192xf32> to vector<2x64xf32>
    %225 = vector.extract_strided_slice %220 {offsets = [0, 128], sizes = [2, 64], strides = [1, 1]} : vector<2x192xf32> to vector<2x64xf32>
    %226 = arith.mulf %224, %204 : vector<2x64xf32>
    %227 = arith.mulf %223, %222 : vector<2x64xf32>
    %228 = arith.addf %226, %227 : vector<2x64xf32>
    %229 = math.tanh %228 : vector<2x64xf32>
    %230 = arith.mulf %225, %229 : vector<2x64xf32>
    %231 = vector.extract_strided_slice %230 {offsets = [0, 0], sizes = [2, 32], strides = [1, 1]} : vector<2x64xf32> to vector<2x32xf32>
    %232 = vector.extract_strided_slice %230 {offsets = [0, 32], sizes = [2, 32], strides = [1, 1]} : vector<2x64xf32> to vector<2x32xf32>
    %233 = vector.extract_strided_slice %7 {offsets = [16, 0], sizes = [2, 64], strides = [1, 1]} : vector<32x64xf32> to vector<2x64xf32>
    %cst_33 = arith.constant dense<0.000000e+00> : vector<2x256xf32>
    %234 = tpu.matmul %230, %15, %cst_33 {dimension_numbers = #tpu.dot_dimension_numbers<[1], [0], [0], [1], [0, 0, 1, 1], [], []>} : vector<2x64xf32>, vector<64x256xf32>, vector<2x256xf32> -> vector<2x256xf32>
    %235 = vector.extract_strided_slice %12 {offsets = [18, 0], sizes = [2, 256], strides = [1, 1]} : vector<32x256xf32> to vector<2x256xf32>
    %236 = arith.addf %234, %235 : vector<2x256xf32>
    %237 = vector.extract_strided_slice %14 {offsets = [12, 0], sizes = [2, 256], strides = [1, 1]} : vector<32x256xf32> to vector<2x256xf32>
    %238 = arith.addf %236, %237 : vector<2x256xf32>
    %239 = vector.extract_strided_slice %238 {offsets = [0, 0], sizes = [2, 192], strides = [1, 1]} : vector<2x256xf32> to vector<2x192xf32>
    %240 = arith.negf %239 : vector<2x192xf32>
    %241 = math.exp %240 : vector<2x192xf32>
    %cst_34 = arith.constant 1.000000e+00 : f32
    %242 = vector.broadcast %cst_34 : f32 to vector<2x192xf32>
    %243 = arith.addf %242, %241 : vector<2x192xf32>
    %244 = arith.divf %242, %243 : vector<2x192xf32>
    %245 = vector.extract_strided_slice %238 {offsets = [0, 192], sizes = [2, 64], strides = [1, 1]} : vector<2x256xf32> to vector<2x64xf32>
    %246 = math.tanh %245 : vector<2x64xf32>
    %247 = vector.extract_strided_slice %244 {offsets = [0, 0], sizes = [2, 64], strides = [1, 1]} : vector<2x192xf32> to vector<2x64xf32>
    %248 = vector.extract_strided_slice %244 {offsets = [0, 64], sizes = [2, 64], strides = [1, 1]} : vector<2x192xf32> to vector<2x64xf32>
    %249 = vector.extract_strided_slice %244 {offsets = [0, 128], sizes = [2, 64], strides = [1, 1]} : vector<2x192xf32> to vector<2x64xf32>
    %250 = arith.mulf %248, %228 : vector<2x64xf32>
    %251 = arith.mulf %247, %246 : vector<2x64xf32>
    %252 = arith.addf %250, %251 : vector<2x64xf32>
    %253 = math.tanh %252 : vector<2x64xf32>
    %254 = arith.mulf %249, %253 : vector<2x64xf32>
    %255 = vector.extract_strided_slice %254 {offsets = [0, 0], sizes = [2, 32], strides = [1, 1]} : vector<2x64xf32> to vector<2x32xf32>
    %256 = vector.extract_strided_slice %254 {offsets = [0, 32], sizes = [2, 32], strides = [1, 1]} : vector<2x64xf32> to vector<2x32xf32>
    %257 = vector.extract_strided_slice %7 {offsets = [18, 0], sizes = [2, 64], strides = [1, 1]} : vector<32x64xf32> to vector<2x64xf32>
    %cst_35 = arith.constant dense<0.000000e+00> : vector<2x256xf32>
    %258 = tpu.matmul %254, %15, %cst_35 {dimension_numbers = #tpu.dot_dimension_numbers<[1], [0], [0], [1], [0, 0, 1, 1], [], []>} : vector<2x64xf32>, vector<64x256xf32>, vector<2x256xf32> -> vector<2x256xf32>
    %259 = vector.extract_strided_slice %12 {offsets = [20, 0], sizes = [2, 256], strides = [1, 1]} : vector<32x256xf32> to vector<2x256xf32>
    %260 = arith.addf %258, %259 : vector<2x256xf32>
    %261 = vector.extract_strided_slice %14 {offsets = [10, 0], sizes = [2, 256], strides = [1, 1]} : vector<32x256xf32> to vector<2x256xf32>
    %262 = arith.addf %260, %261 : vector<2x256xf32>
    %263 = vector.extract_strided_slice %262 {offsets = [0, 0], sizes = [2, 192], strides = [1, 1]} : vector<2x256xf32> to vector<2x192xf32>
    %264 = arith.negf %263 : vector<2x192xf32>
    %265 = math.exp %264 : vector<2x192xf32>
    %cst_36 = arith.constant 1.000000e+00 : f32
    %266 = vector.broadcast %cst_36 : f32 to vector<2x192xf32>
    %267 = arith.addf %266, %265 : vector<2x192xf32>
    %268 = arith.divf %266, %267 : vector<2x192xf32>
    %269 = vector.extract_strided_slice %262 {offsets = [0, 192], sizes = [2, 64], strides = [1, 1]} : vector<2x256xf32> to vector<2x64xf32>
    %270 = math.tanh %269 : vector<2x64xf32>
    %271 = vector.extract_strided_slice %268 {offsets = [0, 0], sizes = [2, 64], strides = [1, 1]} : vector<2x192xf32> to vector<2x64xf32>
    %272 = vector.extract_strided_slice %268 {offsets = [0, 64], sizes = [2, 64], strides = [1, 1]} : vector<2x192xf32> to vector<2x64xf32>
    %273 = vector.extract_strided_slice %268 {offsets = [0, 128], sizes = [2, 64], strides = [1, 1]} : vector<2x192xf32> to vector<2x64xf32>
    %274 = arith.mulf %272, %252 : vector<2x64xf32>
    %275 = arith.mulf %271, %270 : vector<2x64xf32>
    %276 = arith.addf %274, %275 : vector<2x64xf32>
    %277 = math.tanh %276 : vector<2x64xf32>
    %278 = arith.mulf %273, %277 : vector<2x64xf32>
    %279 = vector.extract_strided_slice %278 {offsets = [0, 0], sizes = [2, 32], strides = [1, 1]} : vector<2x64xf32> to vector<2x32xf32>
    %280 = vector.extract_strided_slice %278 {offsets = [0, 32], sizes = [2, 32], strides = [1, 1]} : vector<2x64xf32> to vector<2x32xf32>
    %281 = vector.extract_strided_slice %7 {offsets = [20, 0], sizes = [2, 64], strides = [1, 1]} : vector<32x64xf32> to vector<2x64xf32>
    %cst_37 = arith.constant dense<0.000000e+00> : vector<2x256xf32>
    %282 = tpu.matmul %278, %15, %cst_37 {dimension_numbers = #tpu.dot_dimension_numbers<[1], [0], [0], [1], [0, 0, 1, 1], [], []>} : vector<2x64xf32>, vector<64x256xf32>, vector<2x256xf32> -> vector<2x256xf32>
    %283 = vector.extract_strided_slice %12 {offsets = [22, 0], sizes = [2, 256], strides = [1, 1]} : vector<32x256xf32> to vector<2x256xf32>
    %284 = arith.addf %282, %283 : vector<2x256xf32>
    %285 = vector.extract_strided_slice %14 {offsets = [8, 0], sizes = [2, 256], strides = [1, 1]} : vector<32x256xf32> to vector<2x256xf32>
    %286 = arith.addf %284, %285 : vector<2x256xf32>
    %287 = vector.extract_strided_slice %286 {offsets = [0, 0], sizes = [2, 192], strides = [1, 1]} : vector<2x256xf32> to vector<2x192xf32>
    %288 = arith.negf %287 : vector<2x192xf32>
    %289 = math.exp %288 : vector<2x192xf32>
    %cst_38 = arith.constant 1.000000e+00 : f32
    %290 = vector.broadcast %cst_38 : f32 to vector<2x192xf32>
    %291 = arith.addf %290, %289 : vector<2x192xf32>
    %292 = arith.divf %290, %291 : vector<2x192xf32>
    %293 = vector.extract_strided_slice %286 {offsets = [0, 192], sizes = [2, 64], strides = [1, 1]} : vector<2x256xf32> to vector<2x64xf32>
    %294 = math.tanh %293 : vector<2x64xf32>
    %295 = vector.extract_strided_slice %292 {offsets = [0, 0], sizes = [2, 64], strides = [1, 1]} : vector<2x192xf32> to vector<2x64xf32>
    %296 = vector.extract_strided_slice %292 {offsets = [0, 64], sizes = [2, 64], strides = [1, 1]} : vector<2x192xf32> to vector<2x64xf32>
    %297 = vector.extract_strided_slice %292 {offsets = [0, 128], sizes = [2, 64], strides = [1, 1]} : vector<2x192xf32> to vector<2x64xf32>
    %298 = arith.mulf %296, %276 : vector<2x64xf32>
    %299 = arith.mulf %295, %294 : vector<2x64xf32>
    %300 = arith.addf %298, %299 : vector<2x64xf32>
    %301 = math.tanh %300 : vector<2x64xf32>
    %302 = arith.mulf %297, %301 : vector<2x64xf32>
    %303 = vector.extract_strided_slice %302 {offsets = [0, 0], sizes = [2, 32], strides = [1, 1]} : vector<2x64xf32> to vector<2x32xf32>
    %304 = vector.extract_strided_slice %302 {offsets = [0, 32], sizes = [2, 32], strides = [1, 1]} : vector<2x64xf32> to vector<2x32xf32>
    %305 = vector.extract_strided_slice %7 {offsets = [22, 0], sizes = [2, 64], strides = [1, 1]} : vector<32x64xf32> to vector<2x64xf32>
    %cst_39 = arith.constant dense<0.000000e+00> : vector<2x256xf32>
    %306 = tpu.matmul %302, %15, %cst_39 {dimension_numbers = #tpu.dot_dimension_numbers<[1], [0], [0], [1], [0, 0, 1, 1], [], []>} : vector<2x64xf32>, vector<64x256xf32>, vector<2x256xf32> -> vector<2x256xf32>
    %307 = vector.extract_strided_slice %12 {offsets = [24, 0], sizes = [2, 256], strides = [1, 1]} : vector<32x256xf32> to vector<2x256xf32>
    %308 = arith.addf %306, %307 : vector<2x256xf32>
    %309 = vector.extract_strided_slice %14 {offsets = [6, 0], sizes = [2, 256], strides = [1, 1]} : vector<32x256xf32> to vector<2x256xf32>
    %310 = arith.addf %308, %309 : vector<2x256xf32>
    %311 = vector.extract_strided_slice %310 {offsets = [0, 0], sizes = [2, 192], strides = [1, 1]} : vector<2x256xf32> to vector<2x192xf32>
    %312 = arith.negf %311 : vector<2x192xf32>
    %313 = math.exp %312 : vector<2x192xf32>
    %cst_40 = arith.constant 1.000000e+00 : f32
    %314 = vector.broadcast %cst_40 : f32 to vector<2x192xf32>
    %315 = arith.addf %314, %313 : vector<2x192xf32>
    %316 = arith.divf %314, %315 : vector<2x192xf32>
    %317 = vector.extract_strided_slice %310 {offsets = [0, 192], sizes = [2, 64], strides = [1, 1]} : vector<2x256xf32> to vector<2x64xf32>
    %318 = math.tanh %317 : vector<2x64xf32>
    %319 = vector.extract_strided_slice %316 {offsets = [0, 0], sizes = [2, 64], strides = [1, 1]} : vector<2x192xf32> to vector<2x64xf32>
    %320 = vector.extract_strided_slice %316 {offsets = [0, 64], sizes = [2, 64], strides = [1, 1]} : vector<2x192xf32> to vector<2x64xf32>
    %321 = vector.extract_strided_slice %316 {offsets = [0, 128], sizes = [2, 64], strides = [1, 1]} : vector<2x192xf32> to vector<2x64xf32>
    %322 = arith.mulf %320, %300 : vector<2x64xf32>
    %323 = arith.mulf %319, %318 : vector<2x64xf32>
    %324 = arith.addf %322, %323 : vector<2x64xf32>
    %325 = math.tanh %324 : vector<2x64xf32>
    %326 = arith.mulf %321, %325 : vector<2x64xf32>
    %327 = vector.extract_strided_slice %326 {offsets = [0, 0], sizes = [2, 32], strides = [1, 1]} : vector<2x64xf32> to vector<2x32xf32>
    %328 = vector.extract_strided_slice %326 {offsets = [0, 32], sizes = [2, 32], strides = [1, 1]} : vector<2x64xf32> to vector<2x32xf32>
    %329 = vector.extract_strided_slice %7 {offsets = [24, 0], sizes = [2, 64], strides = [1, 1]} : vector<32x64xf32> to vector<2x64xf32>
    %cst_41 = arith.constant dense<0.000000e+00> : vector<2x256xf32>
    %330 = tpu.matmul %326, %15, %cst_41 {dimension_numbers = #tpu.dot_dimension_numbers<[1], [0], [0], [1], [0, 0, 1, 1], [], []>} : vector<2x64xf32>, vector<64x256xf32>, vector<2x256xf32> -> vector<2x256xf32>
    %331 = vector.extract_strided_slice %12 {offsets = [26, 0], sizes = [2, 256], strides = [1, 1]} : vector<32x256xf32> to vector<2x256xf32>
    %332 = arith.addf %330, %331 : vector<2x256xf32>
    %333 = vector.extract_strided_slice %14 {offsets = [4, 0], sizes = [2, 256], strides = [1, 1]} : vector<32x256xf32> to vector<2x256xf32>
    %334 = arith.addf %332, %333 : vector<2x256xf32>
    %335 = vector.extract_strided_slice %334 {offsets = [0, 0], sizes = [2, 192], strides = [1, 1]} : vector<2x256xf32> to vector<2x192xf32>
    %336 = arith.negf %335 : vector<2x192xf32>
    %337 = math.exp %336 : vector<2x192xf32>
    %cst_42 = arith.constant 1.000000e+00 : f32
    %338 = vector.broadcast %cst_42 : f32 to vector<2x192xf32>
    %339 = arith.addf %338, %337 : vector<2x192xf32>
    %340 = arith.divf %338, %339 : vector<2x192xf32>
    %341 = vector.extract_strided_slice %334 {offsets = [0, 192], sizes = [2, 64], strides = [1, 1]} : vector<2x256xf32> to vector<2x64xf32>
    %342 = math.tanh %341 : vector<2x64xf32>
    %343 = vector.extract_strided_slice %340 {offsets = [0, 0], sizes = [2, 64], strides = [1, 1]} : vector<2x192xf32> to vector<2x64xf32>
    %344 = vector.extract_strided_slice %340 {offsets = [0, 64], sizes = [2, 64], strides = [1, 1]} : vector<2x192xf32> to vector<2x64xf32>
    %345 = vector.extract_strided_slice %340 {offsets = [0, 128], sizes = [2, 64], strides = [1, 1]} : vector<2x192xf32> to vector<2x64xf32>
    %346 = arith.mulf %344, %324 : vector<2x64xf32>
    %347 = arith.mulf %343, %342 : vector<2x64xf32>
    %348 = arith.addf %346, %347 : vector<2x64xf32>
    %349 = math.tanh %348 : vector<2x64xf32>
    %350 = arith.mulf %345, %349 : vector<2x64xf32>
    %351 = vector.extract_strided_slice %350 {offsets = [0, 0], sizes = [2, 32], strides = [1, 1]} : vector<2x64xf32> to vector<2x32xf32>
    %352 = vector.extract_strided_slice %350 {offsets = [0, 32], sizes = [2, 32], strides = [1, 1]} : vector<2x64xf32> to vector<2x32xf32>
    %353 = vector.extract_strided_slice %7 {offsets = [26, 0], sizes = [2, 64], strides = [1, 1]} : vector<32x64xf32> to vector<2x64xf32>
    %cst_43 = arith.constant dense<0.000000e+00> : vector<2x256xf32>
    %354 = tpu.matmul %350, %15, %cst_43 {dimension_numbers = #tpu.dot_dimension_numbers<[1], [0], [0], [1], [0, 0, 1, 1], [], []>} : vector<2x64xf32>, vector<64x256xf32>, vector<2x256xf32> -> vector<2x256xf32>
    %355 = vector.extract_strided_slice %12 {offsets = [28, 0], sizes = [2, 256], strides = [1, 1]} : vector<32x256xf32> to vector<2x256xf32>
    %356 = arith.addf %354, %355 : vector<2x256xf32>
    %357 = vector.extract_strided_slice %14 {offsets = [2, 0], sizes = [2, 256], strides = [1, 1]} : vector<32x256xf32> to vector<2x256xf32>
    %358 = arith.addf %356, %357 : vector<2x256xf32>
    %359 = vector.extract_strided_slice %358 {offsets = [0, 0], sizes = [2, 192], strides = [1, 1]} : vector<2x256xf32> to vector<2x192xf32>
    %360 = arith.negf %359 : vector<2x192xf32>
    %361 = math.exp %360 : vector<2x192xf32>
    %cst_44 = arith.constant 1.000000e+00 : f32
    %362 = vector.broadcast %cst_44 : f32 to vector<2x192xf32>
    %363 = arith.addf %362, %361 : vector<2x192xf32>
    %364 = arith.divf %362, %363 : vector<2x192xf32>
    %365 = vector.extract_strided_slice %358 {offsets = [0, 192], sizes = [2, 64], strides = [1, 1]} : vector<2x256xf32> to vector<2x64xf32>
    %366 = math.tanh %365 : vector<2x64xf32>
    %367 = vector.extract_strided_slice %364 {offsets = [0, 0], sizes = [2, 64], strides = [1, 1]} : vector<2x192xf32> to vector<2x64xf32>
    %368 = vector.extract_strided_slice %364 {offsets = [0, 64], sizes = [2, 64], strides = [1, 1]} : vector<2x192xf32> to vector<2x64xf32>
    %369 = vector.extract_strided_slice %364 {offsets = [0, 128], sizes = [2, 64], strides = [1, 1]} : vector<2x192xf32> to vector<2x64xf32>
    %370 = arith.mulf %368, %348 : vector<2x64xf32>
    %371 = arith.mulf %367, %366 : vector<2x64xf32>
    %372 = arith.addf %370, %371 : vector<2x64xf32>
    %373 = math.tanh %372 : vector<2x64xf32>
    %374 = arith.mulf %369, %373 : vector<2x64xf32>
    %375 = vector.extract_strided_slice %374 {offsets = [0, 0], sizes = [2, 32], strides = [1, 1]} : vector<2x64xf32> to vector<2x32xf32>
    %376 = vector.extract_strided_slice %374 {offsets = [0, 32], sizes = [2, 32], strides = [1, 1]} : vector<2x64xf32> to vector<2x32xf32>
    %377 = vector.extract_strided_slice %7 {offsets = [28, 0], sizes = [2, 64], strides = [1, 1]} : vector<32x64xf32> to vector<2x64xf32>
    %cst_45 = arith.constant dense<0.000000e+00> : vector<2x256xf32>
    %378 = tpu.matmul %374, %15, %cst_45 {dimension_numbers = #tpu.dot_dimension_numbers<[1], [0], [0], [1], [0, 0, 1, 1], [], []>} : vector<2x64xf32>, vector<64x256xf32>, vector<2x256xf32> -> vector<2x256xf32>
    %379 = vector.extract_strided_slice %12 {offsets = [30, 0], sizes = [2, 256], strides = [1, 1]} : vector<32x256xf32> to vector<2x256xf32>
    %380 = arith.addf %378, %379 : vector<2x256xf32>
    %381 = vector.extract_strided_slice %14 {offsets = [0, 0], sizes = [2, 256], strides = [1, 1]} : vector<32x256xf32> to vector<2x256xf32>
    %382 = arith.addf %380, %381 : vector<2x256xf32>
    %383 = vector.extract_strided_slice %382 {offsets = [0, 0], sizes = [2, 192], strides = [1, 1]} : vector<2x256xf32> to vector<2x192xf32>
    %384 = arith.negf %383 : vector<2x192xf32>
    %385 = math.exp %384 : vector<2x192xf32>
    %cst_46 = arith.constant 1.000000e+00 : f32
    %386 = vector.broadcast %cst_46 : f32 to vector<2x192xf32>
    %387 = arith.addf %386, %385 : vector<2x192xf32>
    %388 = arith.divf %386, %387 : vector<2x192xf32>
    %389 = vector.extract_strided_slice %382 {offsets = [0, 192], sizes = [2, 64], strides = [1, 1]} : vector<2x256xf32> to vector<2x64xf32>
    %390 = math.tanh %389 : vector<2x64xf32>
    %391 = vector.extract_strided_slice %388 {offsets = [0, 0], sizes = [2, 64], strides = [1, 1]} : vector<2x192xf32> to vector<2x64xf32>
    %392 = vector.extract_strided_slice %388 {offsets = [0, 64], sizes = [2, 64], strides = [1, 1]} : vector<2x192xf32> to vector<2x64xf32>
    %393 = vector.extract_strided_slice %388 {offsets = [0, 128], sizes = [2, 64], strides = [1, 1]} : vector<2x192xf32> to vector<2x64xf32>
    %394 = arith.mulf %392, %372 : vector<2x64xf32>
    %395 = arith.mulf %391, %390 : vector<2x64xf32>
    %396 = arith.addf %394, %395 : vector<2x64xf32>
    %397 = math.tanh %396 : vector<2x64xf32>
    %398 = arith.mulf %393, %397 : vector<2x64xf32>
    %399 = vector.extract_strided_slice %398 {offsets = [0, 0], sizes = [2, 32], strides = [1, 1]} : vector<2x64xf32> to vector<2x32xf32>
    %400 = vector.extract_strided_slice %398 {offsets = [0, 32], sizes = [2, 32], strides = [1, 1]} : vector<2x64xf32> to vector<2x32xf32>
    %401 = vector.extract_strided_slice %7 {offsets = [30, 0], sizes = [2, 64], strides = [1, 1]} : vector<32x64xf32> to vector<2x64xf32>
    %402 = vector.shape_cast %39 : vector<2x32xf32> to vector<1x2x32xf32>
    %403 = vector.shape_cast %63 : vector<2x32xf32> to vector<1x2x32xf32>
    %404 = vector.shape_cast %87 : vector<2x32xf32> to vector<1x2x32xf32>
    %405 = vector.shape_cast %111 : vector<2x32xf32> to vector<1x2x32xf32>
    %406 = vector.shape_cast %135 : vector<2x32xf32> to vector<1x2x32xf32>
    %407 = vector.shape_cast %159 : vector<2x32xf32> to vector<1x2x32xf32>
    %408 = vector.shape_cast %183 : vector<2x32xf32> to vector<1x2x32xf32>
    %409 = vector.shape_cast %207 : vector<2x32xf32> to vector<1x2x32xf32>
    %410 = vector.shape_cast %231 : vector<2x32xf32> to vector<1x2x32xf32>
    %411 = vector.shape_cast %255 : vector<2x32xf32> to vector<1x2x32xf32>
    %412 = vector.shape_cast %279 : vector<2x32xf32> to vector<1x2x32xf32>
    %413 = vector.shape_cast %303 : vector<2x32xf32> to vector<1x2x32xf32>
    %414 = vector.shape_cast %327 : vector<2x32xf32> to vector<1x2x32xf32>
    %415 = vector.shape_cast %351 : vector<2x32xf32> to vector<1x2x32xf32>
    %416 = vector.shape_cast %375 : vector<2x32xf32> to vector<1x2x32xf32>
    %417 = vector.shape_cast %399 : vector<2x32xf32> to vector<1x2x32xf32>
    %418 = tpu.concatenate %402, %403, %404, %405, %406, %407, %408, %409, %410, %411, %412, %413, %414, %415, %416, %417 in 0 : vector<1x2x32xf32>, vector<1x2x32xf32>, vector<1x2x32xf32>, vector<1x2x32xf32>, vector<1x2x32xf32>, vector<1x2x32xf32>, vector<1x2x32xf32>, vector<1x2x32xf32>, vector<1x2x32xf32>, vector<1x2x32xf32>, vector<1x2x32xf32>, vector<1x2x32xf32>, vector<1x2x32xf32>, vector<1x2x32xf32>, vector<1x2x32xf32>, vector<1x2x32xf32> -> vector<16x2x32xf32>
    %419 = vector.shape_cast %400 : vector<2x32xf32> to vector<1x2x32xf32>
    %420 = vector.shape_cast %376 : vector<2x32xf32> to vector<1x2x32xf32>
    %421 = vector.shape_cast %352 : vector<2x32xf32> to vector<1x2x32xf32>
    %422 = vector.shape_cast %328 : vector<2x32xf32> to vector<1x2x32xf32>
    %423 = vector.shape_cast %304 : vector<2x32xf32> to vector<1x2x32xf32>
    %424 = vector.shape_cast %280 : vector<2x32xf32> to vector<1x2x32xf32>
    %425 = vector.shape_cast %256 : vector<2x32xf32> to vector<1x2x32xf32>
    %426 = vector.shape_cast %232 : vector<2x32xf32> to vector<1x2x32xf32>
    %427 = vector.shape_cast %208 : vector<2x32xf32> to vector<1x2x32xf32>
    %428 = vector.shape_cast %184 : vector<2x32xf32> to vector<1x2x32xf32>
    %429 = vector.shape_cast %160 : vector<2x32xf32> to vector<1x2x32xf32>
    %430 = vector.shape_cast %136 : vector<2x32xf32> to vector<1x2x32xf32>
    %431 = vector.shape_cast %112 : vector<2x32xf32> to vector<1x2x32xf32>
    %432 = vector.shape_cast %88 : vector<2x32xf32> to vector<1x2x32xf32>
    %433 = vector.shape_cast %64 : vector<2x32xf32> to vector<1x2x32xf32>
    %434 = vector.shape_cast %40 : vector<2x32xf32> to vector<1x2x32xf32>
    %435 = tpu.concatenate %419, %420, %421, %422, %423, %424, %425, %426, %427, %428, %429, %430, %431, %432, %433, %434 in 0 : vector<1x2x32xf32>, vector<1x2x32xf32>, vector<1x2x32xf32>, vector<1x2x32xf32>, vector<1x2x32xf32>, vector<1x2x32xf32>, vector<1x2x32xf32>, vector<1x2x32xf32>, vector<1x2x32xf32>, vector<1x2x32xf32>, vector<1x2x32xf32>, vector<1x2x32xf32>, vector<1x2x32xf32>, vector<1x2x32xf32>, vector<1x2x32xf32>, vector<1x2x32xf32> -> vector<16x2x32xf32>
    %436 = vector.shape_cast %41 : vector<2x64xf32> to vector<1x2x64xf32>
    %437 = vector.shape_cast %65 : vector<2x64xf32> to vector<1x2x64xf32>
    %438 = vector.shape_cast %89 : vector<2x64xf32> to vector<1x2x64xf32>
    %439 = vector.shape_cast %113 : vector<2x64xf32> to vector<1x2x64xf32>
    %440 = vector.shape_cast %137 : vector<2x64xf32> to vector<1x2x64xf32>
    %441 = vector.shape_cast %161 : vector<2x64xf32> to vector<1x2x64xf32>
    %442 = vector.shape_cast %185 : vector<2x64xf32> to vector<1x2x64xf32>
    %443 = vector.shape_cast %209 : vector<2x64xf32> to vector<1x2x64xf32>
    %444 = vector.shape_cast %233 : vector<2x64xf32> to vector<1x2x64xf32>
    %445 = vector.shape_cast %257 : vector<2x64xf32> to vector<1x2x64xf32>
    %446 = vector.shape_cast %281 : vector<2x64xf32> to vector<1x2x64xf32>
    %447 = vector.shape_cast %305 : vector<2x64xf32> to vector<1x2x64xf32>
    %448 = vector.shape_cast %329 : vector<2x64xf32> to vector<1x2x64xf32>
    %449 = vector.shape_cast %353 : vector<2x64xf32> to vector<1x2x64xf32>
    %450 = vector.shape_cast %377 : vector<2x64xf32> to vector<1x2x64xf32>
    %451 = vector.shape_cast %401 : vector<2x64xf32> to vector<1x2x64xf32>
    %452 = tpu.concatenate %436, %437, %438, %439, %440, %441, %442, %443, %444, %445, %446, %447, %448, %449, %450, %451 in 0 : vector<1x2x64xf32>, vector<1x2x64xf32>, vector<1x2x64xf32>, vector<1x2x64xf32>, vector<1x2x64xf32>, vector<1x2x64xf32>, vector<1x2x64xf32>, vector<1x2x64xf32>, vector<1x2x64xf32>, vector<1x2x64xf32>, vector<1x2x64xf32>, vector<1x2x64xf32>, vector<1x2x64xf32>, vector<1x2x64xf32>, vector<1x2x64xf32>, vector<1x2x64xf32> -> vector<16x2x64xf32>
    %453 = tpu.concatenate %418, %435, %452 in 2 : vector<16x2x32xf32>, vector<16x2x32xf32>, vector<16x2x64xf32> -> vector<16x2x128xf32>
    %454 = vector.extract_strided_slice %453 {offsets = [0, 0, 0], sizes = [14, 2, 128], strides = [1, 1, 1]} : vector<16x2x128xf32> to vector<14x2x128xf32>
    %455 = vector.extract_strided_slice %453 {offsets = [1, 0, 0], sizes = [14, 2, 128], strides = [1, 1, 1]} : vector<16x2x128xf32> to vector<14x2x128xf32>
    %456 = vector.extract_strided_slice %453 {offsets = [2, 0, 0], sizes = [14, 2, 128], strides = [1, 1, 1]} : vector<16x2x128xf32> to vector<14x2x128xf32>
    %457 = tpu.concatenate %454, %455, %456 in 2 : vector<14x2x128xf32>, vector<14x2x128xf32>, vector<14x2x128xf32> -> vector<14x2x384xf32>
    %c0_47 = arith.constant 0 : index
    %c0_48 = arith.constant 0 : index
    %458 = vector.load %arg6[%c0_47, %c0_48] : memref<384x256xf32, #tpu.memory_space<vmem>>, vector<384x256xf32>
    "tpu.trace_start"() <{level = 10 : i32, message = "lbc,cd->lbd"}> : () -> ()
    %cst_49 = arith.constant dense<0.000000e+00> : vector<14x2x256xf32>
    %459 = tpu.matmul %457, %458, %cst_49 {dimension_numbers = #tpu.dot_dimension_numbers<[2], [0], [0, 1], [1], [0, 0, 0, 1, 1, 1], [], []>} : vector<14x2x384xf32>, vector<384x256xf32>, vector<14x2x256xf32> -> vector<14x2x256xf32>
    "tpu.trace_stop"() : () -> ()
    %cst_50 = arith.constant dense<0.000000e+00> : vector<256xf32>
    %460 = vector.multi_reduction <add>, %459, %cst_50 [0, 1] : vector<14x2x256xf32> to vector<256xf32>
    %461 = vector.shape_cast %460 : vector<256xf32> to vector<1x1x256xf32>
    %cst_51 = arith.constant 2.800000e+01 : f32
    %462 = vector.broadcast %cst_51 : f32 to vector<1x1x256xf32>
    %463 = arith.divf %461, %462 : vector<1x1x256xf32>
    %464 = arith.mulf %459, %459 : vector<14x2x256xf32>
    %cst_52 = arith.constant dense<0.000000e+00> : vector<256xf32>
    %465 = vector.multi_reduction <add>, %464, %cst_52 [0, 1] : vector<14x2x256xf32> to vector<256xf32>
    %466 = vector.shape_cast %465 : vector<256xf32> to vector<1x1x256xf32>
    %cst_53 = arith.constant 2.800000e+01 : f32
    %467 = vector.broadcast %cst_53 : f32 to vector<1x1x256xf32>
    %468 = arith.divf %466, %467 : vector<1x1x256xf32>
    %469 = arith.mulf %463, %463 : vector<1x1x256xf32>
    %470 = arith.subf %468, %469 : vector<1x1x256xf32>
    %cst_54 = arith.constant 0.000000e+00 : f32
    %471 = vector.broadcast %cst_54 : f32 to vector<1x1x256xf32>
    %472 = arith.maximumf %470, %471 : vector<1x1x256xf32>
    %c0_55 = arith.constant 0 : index
    %c0_56 = arith.constant 0 : index
    %473 = vector.load %arg7[%c0_55, %c0_56] : memref<1x256xf32, #tpu.memory_space<vmem>>, vector<1x256xf32>
    %474 = vector.shape_cast %473 : vector<1x256xf32> to vector<1x1x256xf32>
    %cst_57 = arith.constant 9.99999974E-6 : f32
    %475 = vector.broadcast %cst_57 : f32 to vector<1x1x256xf32>
    %476 = arith.addf %472, %475 : vector<1x1x256xf32>
    %477 = math.rsqrt %476 : vector<1x1x256xf32>
    %478 = arith.mulf %474, %477 : vector<1x1x256xf32>
    %c0_58 = arith.constant 0 : index
    %c0_59 = arith.constant 0 : index
    %479 = vector.load %arg8[%c0_58, %c0_59] : memref<1x256xf32, #tpu.memory_space<vmem>>, vector<1x256xf32>
    %480 = vector.shape_cast %479 : vector<1x256xf32> to vector<1x1x256xf32>
    %481 = arith.mulf %463, %478 : vector<1x1x256xf32>
    %482 = arith.subf %480, %481 : vector<1x1x256xf32>
    %483 = vector.broadcast %478 : vector<1x1x256xf32> to vector<14x2x256xf32>
    %484 = arith.mulf %459, %483 : vector<14x2x256xf32>
    %485 = vector.broadcast %482 : vector<1x1x256xf32> to vector<14x2x256xf32>
    %486 = arith.addf %484, %485 : vector<14x2x256xf32>
    %cst_60 = arith.constant 0.000000e+00 : f32
    %487 = vector.broadcast %cst_60 : f32 to vector<14x2x256xf32>
    %488 = arith.maximumf %486, %487 : vector<14x2x256xf32>
    %489 = vector.extract_strided_slice %488 {offsets = [0, 0, 0], sizes = [12, 2, 256], strides = [1, 1, 1]} : vector<14x2x256xf32> to vector<12x2x256xf32>
    %490 = vector.extract_strided_slice %488 {offsets = [1, 0, 0], sizes = [12, 2, 256], strides = [1, 1, 1]} : vector<14x2x256xf32> to vector<12x2x256xf32>
    %491 = vector.extract_strided_slice %488 {offsets = [2, 0, 0], sizes = [12, 2, 256], strides = [1, 1, 1]} : vector<14x2x256xf32> to vector<12x2x256xf32>
    %492 = tpu.concatenate %489, %490, %491 in 2 : vector<12x2x256xf32>, vector<12x2x256xf32>, vector<12x2x256xf32> -> vector<12x2x768xf32>
    %c0_61 = arith.constant 0 : index
    %c0_62 = arith.constant 0 : index
    %493 = vector.load %arg9[%c0_61, %c0_62] : memref<768x256xf32, #tpu.memory_space<vmem>>, vector<768x256xf32>
    "tpu.trace_start"() <{level = 10 : i32, message = "lbc,cd->lbd"}> : () -> ()
    %cst_63 = arith.constant dense<0.000000e+00> : vector<12x2x256xf32>
    %494 = tpu.matmul %492, %493, %cst_63 {dimension_numbers = #tpu.dot_dimension_numbers<[2], [0], [0, 1], [1], [0, 0, 0, 1, 1, 1], [], []>} : vector<12x2x768xf32>, vector<768x256xf32>, vector<12x2x256xf32> -> vector<12x2x256xf32>
    "tpu.trace_stop"() : () -> ()
    %cst_64 = arith.constant dense<0.000000e+00> : vector<256xf32>
    %495 = vector.multi_reduction <add>, %494, %cst_64 [0, 1] : vector<12x2x256xf32> to vector<256xf32>
    %496 = vector.shape_cast %495 : vector<256xf32> to vector<1x1x256xf32>
    %cst_65 = arith.constant 2.400000e+01 : f32
    %497 = vector.broadcast %cst_65 : f32 to vector<1x1x256xf32>
    %498 = arith.divf %496, %497 : vector<1x1x256xf32>
    %499 = arith.mulf %494, %494 : vector<12x2x256xf32>
    %cst_66 = arith.constant dense<0.000000e+00> : vector<256xf32>
    %500 = vector.multi_reduction <add>, %499, %cst_66 [0, 1] : vector<12x2x256xf32> to vector<256xf32>
    %501 = vector.shape_cast %500 : vector<256xf32> to vector<1x1x256xf32>
    %cst_67 = arith.constant 2.400000e+01 : f32
    %502 = vector.broadcast %cst_67 : f32 to vector<1x1x256xf32>
    %503 = arith.divf %501, %502 : vector<1x1x256xf32>
    %504 = arith.mulf %498, %498 : vector<1x1x256xf32>
    %505 = arith.subf %503, %504 : vector<1x1x256xf32>
    %cst_68 = arith.constant 0.000000e+00 : f32
    %506 = vector.broadcast %cst_68 : f32 to vector<1x1x256xf32>
    %507 = arith.maximumf %505, %506 : vector<1x1x256xf32>
    %c0_69 = arith.constant 0 : index
    %c0_70 = arith.constant 0 : index
    %508 = vector.load %arg10[%c0_69, %c0_70] : memref<1x256xf32, #tpu.memory_space<vmem>>, vector<1x256xf32>
    %509 = vector.shape_cast %508 : vector<1x256xf32> to vector<1x1x256xf32>
    %cst_71 = arith.constant 9.99999974E-6 : f32
    %510 = vector.broadcast %cst_71 : f32 to vector<1x1x256xf32>
    %511 = arith.addf %507, %510 : vector<1x1x256xf32>
    %512 = math.rsqrt %511 : vector<1x1x256xf32>
    %513 = arith.mulf %509, %512 : vector<1x1x256xf32>
    %c0_72 = arith.constant 0 : index
    %c0_73 = arith.constant 0 : index
    %514 = vector.load %arg11[%c0_72, %c0_73] : memref<1x256xf32, #tpu.memory_space<vmem>>, vector<1x256xf32>
    %515 = vector.shape_cast %514 : vector<1x256xf32> to vector<1x1x256xf32>
    %516 = arith.mulf %498, %513 : vector<1x1x256xf32>
    %517 = arith.subf %515, %516 : vector<1x1x256xf32>
    %518 = vector.broadcast %513 : vector<1x1x256xf32> to vector<12x2x256xf32>
    %519 = arith.mulf %494, %518 : vector<12x2x256xf32>
    %520 = vector.broadcast %517 : vector<1x1x256xf32> to vector<12x2x256xf32>
    %521 = arith.addf %519, %520 : vector<12x2x256xf32>
    %cst_74 = arith.constant 0.000000e+00 : f32
    %522 = vector.broadcast %cst_74 : f32 to vector<12x2x256xf32>
    %523 = arith.maximumf %521, %522 : vector<12x2x256xf32>
    %cst_75 = arith.constant dense<0xFF800000> : vector<2x256xf32>
    %524 = vector.multi_reduction <maximumf>, %523, %cst_75 [0] : vector<12x2x256xf32> to vector<2x256xf32>
    %c0_76 = arith.constant 0 : index
    %c0_77 = arith.constant 0 : index
    %525 = vector.load %arg12[%c0_76, %c0_77] : memref<256x64xf32, #tpu.memory_space<vmem>>, vector<256x64xf32>
    %cst_78 = arith.constant dense<0.000000e+00> : vector<2x64xf32>
    %526 = tpu.matmul %524, %525, %cst_78 {dimension_numbers = #tpu.dot_dimension_numbers<[1], [0], [0], [1], [0, 0, 1, 1], [], []>} : vector<2x256xf32>, vector<256x64xf32>, vector<2x64xf32> -> vector<2x64xf32>
    %c0_79 = arith.constant 0 : index
    %c0_80 = arith.constant 0 : index
    %527 = vector.load %arg13[%c0_79, %c0_80] : memref<1x64xf32, #tpu.memory_space<vmem>>, vector<1x64xf32>
    %528 = vector.broadcast %527 : vector<1x64xf32> to vector<2x64xf32>
    %529 = arith.addf %526, %528 : vector<2x64xf32>
    %cst_81 = arith.constant dense<0.000000e+00> : vector<64xf32>
    %530 = vector.multi_reduction <add>, %529, %cst_81 [0] : vector<2x64xf32> to vector<64xf32>
    %531 = vector.shape_cast %530 : vector<64xf32> to vector<1x64xf32>
    %cst_82 = arith.constant 2.000000e+00 : f32
    %532 = vector.broadcast %cst_82 : f32 to vector<1x64xf32>
    %533 = arith.divf %531, %532 : vector<1x64xf32>
    %534 = arith.mulf %529, %529 : vector<2x64xf32>
    %cst_83 = arith.constant dense<0.000000e+00> : vector<64xf32>
    %535 = vector.multi_reduction <add>, %534, %cst_83 [0] : vector<2x64xf32> to vector<64xf32>
    %536 = vector.shape_cast %535 : vector<64xf32> to vector<1x64xf32>
    %cst_84 = arith.constant 2.000000e+00 : f32
    %537 = vector.broadcast %cst_84 : f32 to vector<1x64xf32>
    %538 = arith.divf %536, %537 : vector<1x64xf32>
    %539 = arith.mulf %533, %533 : vector<1x64xf32>
    %540 = arith.subf %538, %539 : vector<1x64xf32>
    %cst_85 = arith.constant 0.000000e+00 : f32
    %541 = vector.broadcast %cst_85 : f32 to vector<1x64xf32>
    %542 = arith.maximumf %540, %541 : vector<1x64xf32>
    %c0_86 = arith.constant 0 : index
    %c0_87 = arith.constant 0 : index
    %543 = vector.load %arg14[%c0_86, %c0_87] : memref<1x64xf32, #tpu.memory_space<vmem>>, vector<1x64xf32>
    %cst_88 = arith.constant 9.99999974E-6 : f32
    %544 = vector.broadcast %cst_88 : f32 to vector<1x64xf32>
    %545 = arith.addf %542, %544 : vector<1x64xf32>
    %546 = math.rsqrt %545 : vector<1x64xf32>
    %547 = arith.mulf %543, %546 : vector<1x64xf32>
    %548 = vector.broadcast %547 : vector<1x64xf32> to vector<2x64xf32>
    %549 = arith.mulf %529, %548 : vector<2x64xf32>
    %c0_89 = arith.constant 0 : index
    %c0_90 = arith.constant 0 : index
    %550 = vector.load %arg15[%c0_89, %c0_90] : memref<1x64xf32, #tpu.memory_space<vmem>>, vector<1x64xf32>
    %551 = arith.mulf %533, %547 : vector<1x64xf32>
    %552 = arith.subf %550, %551 : vector<1x64xf32>
    %553 = vector.broadcast %552 : vector<1x64xf32> to vector<2x64xf32>
    %554 = arith.addf %549, %553 : vector<2x64xf32>
    %cst_91 = arith.constant 0.000000e+00 : f32
    %555 = vector.broadcast %cst_91 : f32 to vector<2x64xf32>
    %556 = arith.maximumf %554, %555 : vector<2x64xf32>
    %c0_92 = arith.constant 0 : index
    %c0_93 = arith.constant 0 : index
    %557 = vector.load %arg16[%c0_92, %c0_93] : memref<64x4xf32, #tpu.memory_space<vmem>>, vector<64x4xf32>
    %cst_94 = arith.constant dense<0.000000e+00> : vector<2x4xf32>
    %558 = tpu.matmul %556, %557, %cst_94 {dimension_numbers = #tpu.dot_dimension_numbers<[1], [0], [0], [1], [0, 0, 1, 1], [], []>} : vector<2x64xf32>, vector<64x4xf32>, vector<2x4xf32> -> vector<2x4xf32>
    %c0_95 = arith.constant 0 : index
    %c0_96 = arith.constant 0 : index
    %559 = vector.load %arg17[%c0_95, %c0_96] : memref<1x4xf32, #tpu.memory_space<vmem>>, vector<1x4xf32>
    %560 = vector.broadcast %559 : vector<1x4xf32> to vector<2x4xf32>
    %561 = arith.addf %558, %560 : vector<2x4xf32>
    %c0_97 = arith.constant 0 : index
    %c0_98 = arith.constant 0 : index
    %562 = vector.load %arg18[%c0_97, %c0_98] : memref<2x4xf32, #tpu.memory_space<vmem>>, vector<2x4xf32>
    tpu.vector_store %arg18[%c0_97, %c0_98], %561 {strides = array<i32>} : memref<2x4xf32, #tpu.memory_space<vmem>>, vector<2x4xf32>,
    return
  }
}

</mosaic_0001>

<llo_original>
// kernel: rcnn_forward.1
$region0: #{rcnn_forward.1}
  #allocation0 [shape = 'u32[]', space=smem, size = 0x4, offset = 0x4, fixed_abs, tag = 'smem constant byte address 0x4 - core index']
  #allocation1 [shape = 'u32[144,128]{1,0:T(1,128)}', space=vmem, size = 0x12000, scoped, tag = 'internal scratch']
  %s0 = inlined_call_operand.vmem [shape: s32[32,1], index: 0, kind: input, shape index: {}]
  %s1 = inlined_call_operand.vmem [shape: f32[128,64], index: 1, kind: input, shape index: {}]
  %s2 = inlined_call_operand.vmem [shape: f32[64,256], index: 2, kind: input, shape index: {}]
  %s3 = inlined_call_operand.vmem [shape: f32[64,256], index: 3, kind: input, shape index: {}]
  %s4 = inlined_call_operand.vmem [shape: f32[64,256], index: 4, kind: input, shape index: {}]
  %s5 = inlined_call_operand.vmem [shape: f32[1,256], index: 5, kind: input, shape index: {}]
  %s6 = inlined_call_operand.vmem [shape: f32[384,256], index: 6, kind: input, shape index: {}]
  %s7 = inlined_call_operand.vmem [shape: f32[1,256], index: 7, kind: input, shape index: {}]
  %s8 = inlined_call_operand.vmem [shape: f32[1,256], index: 8, kind: input, shape index: {}]
  %s9 = inlined_call_operand.vmem [shape: f32[768,256], index: 9, kind: input, shape index: {}]
  %s10 = inlined_call_operand.vmem [shape: f32[1,256], index: 10, kind: input, shape index: {}]
  %s11 = inlined_call_operand.vmem [shape: f32[1,256], index: 11, kind: input, shape index: {}]
  %s12 = inlined_call_operand.vmem [shape: f32[256,64], index: 12, kind: input, shape index: {}]
  %s13 = inlined_call_operand.vmem [shape: f32[1,64], index: 13, kind: input, shape index: {}]
  %s14 = inlined_call_operand.vmem [shape: f32[1,64], index: 14, kind: input, shape index: {}]
  %s15 = inlined_call_operand.vmem [shape: f32[1,64], index: 15, kind: input, shape index: {}]
  %s16 = inlined_call_operand.vmem [shape: f32[64,4], index: 16, kind: input, shape index: {}]
  %s17 = inlined_call_operand.vmem [shape: f32[1,4], index: 17, kind: input, shape index: {}]
  %s18 = inlined_call_operand.hbm [shape: f32[2,4], index: 18, kind: output, shape index: {}]
  %s19 = sld [smem:[#allocation0]]
  $region82: #{rcnn_forward.1} parent=0
    _
  %s21 = ssub.s32 1, %s19
  %s22 = scalar_select 0, %s21, %s19
  $region1: #{rcnn_forward.1} parent=0
    #allocation2 [shape = 'u8[1024]{0}', space=vmem, size = 0x400, scoped, tag = 'output window, operand 0, single buffered']
    #allocation3 [shape = 's32[1]{0}', space=sflag, size = 0x4, scoped, tag = 'scoped memory for rcnn_forward.1']
    %23 = vsyncpa [#allocation3], 0
    // Predicated region
    $region2: #{rcnn_forward.1} parent=1 // pred_check
      _
    $region3: #{rcnn_forward.1} parent=1 // pred_check_branch
      %25 = sbr.rel (0) target = $region5
    $region4: #{rcnn_forward.1} parent=1 // pred_region
      _
    $region5: #{rcnn_forward.1} parent=1 // pred_fallthru
      _
    // Predicated region
    $region6: #{rcnn_forward.1} parent=1 // pred_check
      _
    $region7: #{rcnn_forward.1} parent=1 // pred_check_branch
      %27 = sbr.rel (0) target = $region9
    $region8: #{rcnn_forward.1} parent=1 // pred_region
      _
    $region9: #{rcnn_forward.1} parent=1 // pred_fallthru
      _
    // Predicated region
    $region10: #{rcnn_forward.1} parent=1 // pred_check
      _
    $region11: #{rcnn_forward.1} parent=1 // pred_check_branch
      %29 = sbr.rel (0) target = $region13
    $region12: #{rcnn_forward.1} parent=1 // pred_region
      _
    $region13: #{rcnn_forward.1} parent=1 // pred_fallthru
      _
    // Predicated region
    $region14: #{rcnn_forward.1} parent=1 // pred_check
      _
    $region15: #{rcnn_forward.1} parent=1 // pred_check_branch
      %31 = sbr.rel (0) target = $region17
    $region16: #{rcnn_forward.1} parent=1 // pred_region
      _
    $region17: #{rcnn_forward.1} parent=1 // pred_fallthru
      _
    // Predicated region
    $region18: #{rcnn_forward.1} parent=1 // pred_check
      _
    $region19: #{rcnn_forward.1} parent=1 // pred_check_branch
      %33 = sbr.rel (0) target = $region21
    $region20: #{rcnn_forward.1} parent=1 // pred_region
      _
    $region21: #{rcnn_forward.1} parent=1 // pred_fallthru
      _
    // Predicated region
    $region22: #{rcnn_forward.1} parent=1 // pred_check
      _
    $region23: #{rcnn_forward.1} parent=1 // pred_check_branch
      %35 = sbr.rel (0) target = $region25
    $region24: #{rcnn_forward.1} parent=1 // pred_region
      _
    $region25: #{rcnn_forward.1} parent=1 // pred_fallthru
      _
    // Predicated region
    $region26: #{rcnn_forward.1} parent=1 // pred_check
      _
    $region27: #{rcnn_forward.1} parent=1 // pred_check_branch
      %37 = sbr.rel (0) target = $region29
    $region28: #{rcnn_forward.1} parent=1 // pred_region
      _
    $region29: #{rcnn_forward.1} parent=1 // pred_fallthru
      _
    // Predicated region
    $region30: #{rcnn_forward.1} parent=1 // pred_check
      _
    $region31: #{rcnn_forward.1} parent=1 // pred_check_branch
      %39 = sbr.rel (0) target = $region33
    $region32: #{rcnn_forward.1} parent=1 // pred_region
      _
    $region33: #{rcnn_forward.1} parent=1 // pred_fallthru
      _
    // Predicated region
    $region34: #{rcnn_forward.1} parent=1 // pred_check
      _
    $region35: #{rcnn_forward.1} parent=1 // pred_check_branch
      %41 = sbr.rel (0) target = $region37
    $region36: #{rcnn_forward.1} parent=1 // pred_region
      _
    $region37: #{rcnn_forward.1} parent=1 // pred_fallthru
      _
    // Predicated region
    $region38: #{rcnn_forward.1} parent=1 // pred_check
      _
    $region39: #{rcnn_forward.1} parent=1 // pred_check_branch
      %43 = sbr.rel (0) target = $region41
    $region40: #{rcnn_forward.1} parent=1 // pred_region
      _
    $region41: #{rcnn_forward.1} parent=1 // pred_fallthru
      _
    // Predicated region
    $region42: #{rcnn_forward.1} parent=1 // pred_check
      _
    $region43: #{rcnn_forward.1} parent=1 // pred_check_branch
      %45 = sbr.rel (0) target = $region45
    $region44: #{rcnn_forward.1} parent=1 // pred_region
      _
    $region45: #{rcnn_forward.1} parent=1 // pred_fallthru
      _
    // Predicated region
    $region46: #{rcnn_forward.1} parent=1 // pred_check
      _
    $region47: #{rcnn_forward.1} parent=1 // pred_check_branch
      %47 = sbr.rel (0) target = $region49
    $region48: #{rcnn_forward.1} parent=1 // pred_region
      _
    $region49: #{rcnn_forward.1} parent=1 // pred_fallthru
      _
    // Predicated region
    $region50: #{rcnn_forward.1} parent=1 // pred_check
      _
    $region51: #{rcnn_forward.1} parent=1 // pred_check_branch
      %49 = sbr.rel (0) target = $region53
    $region52: #{rcnn_forward.1} parent=1 // pred_region
      _
    $region53: #{rcnn_forward.1} parent=1 // pred_fallthru
      _
    // Predicated region
    $region54: #{rcnn_forward.1} parent=1 // pred_check
      _
    $region55: #{rcnn_forward.1} parent=1 // pred_check_branch
      %51 = sbr.rel (0) target = $region57
    $region56: #{rcnn_forward.1} parent=1 // pred_region
      _
    $region57: #{rcnn_forward.1} parent=1 // pred_fallthru
      _
    // Predicated region
    $region58: #{rcnn_forward.1} parent=1 // pred_check
      _
    $region59: #{rcnn_forward.1} parent=1 // pred_check_branch
      %53 = sbr.rel (0) target = $region61
    $region60: #{rcnn_forward.1} parent=1 // pred_region
      _
    $region61: #{rcnn_forward.1} parent=1 // pred_fallthru
      _
    // Predicated region
    $region62: #{rcnn_forward.1} parent=1 // pred_check
      _
    $region63: #{rcnn_forward.1} parent=1 // pred_check_branch
      %55 = sbr.rel (0) target = $region65
    $region64: #{rcnn_forward.1} parent=1 // pred_region
      _
    $region65: #{rcnn_forward.1} parent=1 // pred_fallthru
      _
    // Predicated region
    $region66: #{rcnn_forward.1} parent=1 // pred_check
      _
    $region67: #{rcnn_forward.1} parent=1 // pred_check_branch
      %57 = sbr.rel (0) target = $region69
    $region68: #{rcnn_forward.1} parent=1 // pred_region
      _
    $region69: #{rcnn_forward.1} parent=1 // pred_fallthru
      _
    // Predicated region
    $region70: #{rcnn_forward.1} parent=1 // pred_check
      _
    $region71: #{rcnn_forward.1} parent=1 // pred_check_branch
      %59 = sbr.rel (0) target = $region73
    $region72: #{rcnn_forward.1} parent=1 // pred_region
      _
    $region73: #{rcnn_forward.1} parent=1 // pred_fallthru
      _
    %v60 = vld [vmem:[%s0] sm:$0xff]
    %v61 = vld [vmem:[%s0 + $0x8] sm:$0xff]
    %v62 = vld [vmem:[%s0 + $0x10] sm:$0xff]
    %v63 = vld [vmem:[%s0 + $0x18] sm:$0xff]
    %v64 = vlaneseq
    %v65 = vand.u32 %v64, 127
    %66 = vset.pattern.permute.xlu0 0
    %67 = vperm.xlu0 %66, %v60
    %v68 = vpop.permute.xlu0 %67
    %69 = vset.pattern.permute.xlu0 0
    %70 = vperm.xlu0 %69, %v61
    %v71 = vpop.permute.xlu0 %70
    %72 = vset.pattern.permute.xlu0 0
    %73 = vperm.xlu0 %72, %v62
    %v74 = vpop.permute.xlu0 %73
    %75 = vset.pattern.permute.xlu0 0
    %76 = vperm.xlu0 %75, %v63
    %v77 = vpop.permute.xlu0 %76
    %vm78 = vcmp.eq.s32.totalorder %v68, %v65
    %vm79 = vcmp.eq.s32.totalorder %v71, %v65
    %vm80 = vcmp.eq.s32.totalorder %v74, %v65
    %vm81 = vcmp.eq.s32.totalorder %v77, %v65
    %v82 = vsel %vm78, 1, 0
    %v83 = vsel %vm79, 1, 0
    %v84 = vsel %vm80, 1, 0
    %v85 = vsel %vm81, 1, 0
    %v86 = vcvt.s32.f32 %v82
    %v87 = vcvt.s32.f32 %v83
    %v88 = vcvt.s32.f32 %v84
    %v89 = vcvt.s32.f32 %v85
    %v90 = vld [vmem:[%s1] sm:$0xff]
    %v91 = vld [vmem:[%s1 + $0x8] sm:$0xff]
    %v92 = vld [vmem:[%s1 + $0x10] sm:$0xff]
    %v93 = vld [vmem:[%s1 + $0x18] sm:$0xff]
    %v94 = vld [vmem:[%s1 + $0x20] sm:$0xff]
    %v95 = vld [vmem:[%s1 + $0x28] sm:$0xff]
    %v96 = vld [vmem:[%s1 + $0x30] sm:$0xff]
    %v97 = vld [vmem:[%s1 + $0x38] sm:$0xff]
    %v98 = vld [vmem:[%s1 + $0x40] sm:$0xff]
    %v99 = vld [vmem:[%s1 + $0x48] sm:$0xff]
    %v100 = vld [vmem:[%s1 + $0x50] sm:$0xff]
    %v101 = vld [vmem:[%s1 + $0x58] sm:$0xff]
    %v102 = vld [vmem:[%s1 + $0x60] sm:$0xff]
    %v103 = vld [vmem:[%s1 + $0x68] sm:$0xff]
    %v104 = vld [vmem:[%s1 + $0x70] sm:$0xff]
    %v105 = vld [vmem:[%s1 + $0x78] sm:$0xff]
    %106 = vmatprep.subr.mxu0 0.0
    %107 = vmatpush1.msra.mxu0 %v90
    %108 = vmatprep.subr.mxu0 0.0
    %109 = vmatpush1.msra.mxu0 %v91
    %110 = vmatprep.subr.mxu0 0.0
    %111 = vmatpush1.msra.mxu0 %v92
    %112 = vmatprep.subr.mxu0 0.0
    %113 = vmatpush1.msra.mxu0 %v93
    %114 = vmatprep.subr.mxu0 0.0
    %115 = vmatpush1.msra.mxu0 %v94
    %116 = vmatprep.subr.mxu0 0.0
    %117 = vmatpush1.msra.mxu0 %v95
    %118 = vmatprep.subr.mxu0 0.0
    %119 = vmatpush1.msra.mxu0 %v96
    %120 = vmatprep.subr.mxu0 0.0
    %121 = vmatpush1.msra.mxu0 %v97
    %122 = vmatprep.subr.mxu0 0.0
    %123 = vmatpush1.msra.mxu0 %v98
    %124 = vmatprep.subr.mxu0 0.0
    %125 = vmatpush1.msra.mxu0 %v99
    %126 = vmatprep.subr.mxu0 0.0
    %127 = vmatpush1.msra.mxu0 %v100
    %128 = vmatprep.subr.mxu0 0.0
    %129 = vmatpush1.msra.mxu0 %v101
    %130 = vmatprep.subr.mxu0 0.0
    %131 = vmatpush1.msra.mxu0 %v102
    %132 = vmatprep.subr.mxu0 0.0
    %133 = vmatpush1.msra.mxu0 %v103
    %134 = vmatprep.subr.mxu0 0.0
    %135 = vmatpush1.msra.mxu0 %v104
    %136 = vmatprep.subr.mxu0 0.0
    %137 = vmatpush1.msra.mxu0 %v105
    %138 = vmatprep.subr.mxu0 0.0
    %139 = vmatpush1.msra.mxu0 0.0
    %140 = vmatprep.subr.mxu0 0.0
    %141 = vmatpush1.msra.mxu0 0.0
    %142 = vmatprep.subr.mxu0 0.0
    %143 = vmatpush1.msra.mxu0 0.0
    %144 = vmatprep.subr.mxu0 0.0
    %145 = vmatpush1.msra.mxu0 0.0
    %146 = vmatprep.subr.mxu0 0.0
    %147 = vmatpush1.msra.mxu0 0.0
    %148 = vmatprep.subr.mxu0 0.0
    %149 = vmatpush1.msra.mxu0 0.0
    %150 = vmatprep.subr.mxu0 0.0
    %151 = vmatpush1.msra.mxu0 0.0
    %152 = vmatprep.subr.mxu0 0.0
    %153 = vmatpush1.msra.mxu0 0.0
    %154 = vmatprep.subr.mxu0 0.0
    %155 = vmatpush1.msra.mxu0 0.0
    %156 = vmatprep.subr.mxu0 0.0
    %157 = vmatpush1.msra.mxu0 0.0
    %158 = vmatprep.subr.mxu0 0.0
    %159 = vmatpush1.msra.mxu0 0.0
    %160 = vmatprep.subr.mxu0 0.0
    %161 = vmatpush1.msra.mxu0 0.0
    %162 = vmatprep.subr.mxu0 0.0
    %163 = vmatpush1.msra.mxu0 0.0
    %164 = vmatprep.subr.mxu0 0.0
    %165 = vmatpush1.msra.mxu0 0.0
    %166 = vmatprep.subr.mxu0 0.0
    %167 = vmatpush1.msra.mxu0 0.0
    %168 = vmatprep.subr.mxu0 0.0
    %169 = vmatpush1.msra.mxu0 0.0
    %170 = vmatprep.mubr.f32.mxu0 0.0
    %171 = vmatmul.mubr.f32.gmra.mrb[0].mxu0 %v86
    %v172 = vpop.f32.mrb[0].mxu0
    %v173 = vadd.f32 0.0, %v172
    %v174 = vpop.f32.mrb[0].mxu0
    %175 = vmatprep.mubr.f32.mxu0 0.0
    %176 = vmatmul.mubr.f32.gmra.mrb[0].mxu0 %v87
    %v177 = vpop.f32.mrb[0].mxu0
    %v178 = vadd.f32 0.0, %v177
    %v179 = vpop.f32.mrb[0].mxu0
    %180 = vmatprep.mubr.f32.mxu0 0.0
    %181 = vmatmul.mubr.f32.gmra.mrb[0].mxu0 %v88
    %v182 = vpop.f32.mrb[0].mxu0
    %v183 = vadd.f32 0.0, %v182
    %v184 = vpop.f32.mrb[0].mxu0
    %185 = vmatprep.mubr.f32.mxu0 0.0
    %186 = vmatmul.mubr.f32.gmra.mrb[0].mxu0 %v89
    %v187 = vpop.f32.mrb[0].mxu0
    %v188 = vadd.f32 0.0, %v187
    %v189 = vpop.f32.mrb[0].mxu0
    %190 = vdwg.mxu0
    %v191 = vld [vmem:[%s2] sm:$0xff]
    %v192 = vld [vmem:[%s2 + $0x8] sm:$0xff]
    %v193 = vld [vmem:[%s2 + $0x10] sm:$0xff]
    %v194 = vld [vmem:[%s2 + $0x18] sm:$0xff]
    %v195 = vld [vmem:[%s2 + $0x20] sm:$0xff]
    %v196 = vld [vmem:[%s2 + $0x28] sm:$0xff]
    %v197 = vld [vmem:[%s2 + $0x30] sm:$0xff]
    %v198 = vld [vmem:[%s2 + $0x38] sm:$0xff]
    %v199 = vld [vmem:[%s2 + $0x40] sm:$0xff]
    %v200 = vld [vmem:[%s2 + $0x48] sm:$0xff]
    %v201 = vld [vmem:[%s2 + $0x50] sm:$0xff]
    %v202 = vld [vmem:[%s2 + $0x58] sm:$0xff]
    %v203 = vld [vmem:[%s2 + $0x60] sm:$0xff]
    %v204 = vld [vmem:[%s2 + $0x68] sm:$0xff]
    %v205 = vld [vmem:[%s2 + $0x70] sm:$0xff]
    %v206 = vld [vmem:[%s2 + $0x78] sm:$0xff]
    %v207 = vld [vmem:[%s5] sm:$0x3]
    %v209 = vlaneseq
    %v210 = vshrl.u32 %v209, 7
    %v211 = vsub.s32 0, %v210
    %v212 = vrot.slane %v207, %v211
    %v213 = vlaneseq
    %v214 = vshrl.u32 %v213, 7
    %v215 = vsub.s32 1, %v214
    %v216 = vrot.slane %v207, %v215
    %vm219 = vcmask 523264
    %v221 = vsel %vm219, %v173, 0
    %v224 = vsel %vm219, %v178, 0
    %v227 = vsel %vm219, %v183, 0
    %v230 = vsel %vm219, %v188, 0
    %232 = vmatprep.subr.mxu0 %v192
    %233 = vmatpush1.msra.mxu0 %v191
    %234 = vmatprep.subr.mxu0 %v194
    %235 = vmatpush1.msra.mxu0 %v193
    %236 = vmatprep.subr.mxu0 %v196
    %237 = vmatpush1.msra.mxu0 %v195
    %238 = vmatprep.subr.mxu0 %v198
    %239 = vmatpush1.msra.mxu0 %v197
    %240 = vmatprep.subr.mxu0 %v200
    %241 = vmatpush1.msra.mxu0 %v199
    %242 = vmatprep.subr.mxu0 %v202
    %243 = vmatpush1.msra.mxu0 %v201
    %244 = vmatprep.subr.mxu0 %v204
    %245 = vmatpush1.msra.mxu0 %v203
    %246 = vmatprep.subr.mxu0 %v206
    %247 = vmatpush1.msra.mxu0 %v205
    %248 = vmatprep.subr.mxu0 0.0
    %249 = vmatpush1.msra.mxu0 0.0
    %250 = vmatprep.subr.mxu0 0.0
    %251 = vmatpush1.msra.mxu0 0.0
    %252 = vmatprep.subr.mxu0 0.0
    %253 = vmatpush1.msra.mxu0 0.0
    %254 = vmatprep.subr.mxu0 0.0
    %255 = vmatpush1.msra.mxu0 0.0
    %256 = vmatprep.subr.mxu0 0.0
    %257 = vmatpush1.msra.mxu0 0.0
    %258 = vmatprep.subr.mxu0 0.0
    %259 = vmatpush1.msra.mxu0 0.0
    %260 = vmatprep.subr.mxu0 0.0
    %261 = vmatpush1.msra.mxu0 0.0
    %262 = vmatprep.subr.mxu0 0.0
    %263 = vmatpush1.msra.mxu0 0.0
    %264 = vmatprep.subr.mxu0 0.0
    %265 = vmatpush1.msra.mxu0 0.0
    %266 = vmatprep.subr.mxu0 0.0
    %267 = vmatpush1.msra.mxu0 0.0
    %268 = vmatprep.subr.mxu0 0.0
    %269 = vmatpush1.msra.mxu0 0.0
    %270 = vmatprep.subr.mxu0 0.0
    %271 = vmatpush1.msra.mxu0 0.0
    %272 = vmatprep.subr.mxu0 0.0
    %273 = vmatpush1.msra.mxu0 0.0
    %274 = vmatprep.subr.mxu0 0.0
    %275 = vmatpush1.msra.mxu0 0.0
    %276 = vmatprep.subr.mxu0 0.0
    %277 = vmatpush1.msra.mxu0 0.0
    %278 = vmatprep.subr.mxu0 0.0
    %279 = vmatpush1.msra.mxu0 0.0
    %280 = vmatprep.subr.mxu0 0.0
    %281 = vmatpush1.msra.mxu0 0.0
    %282 = vmatprep.subr.mxu0 0.0
    %283 = vmatpush1.msra.mxu0 0.0
    %284 = vmatprep.subr.mxu0 0.0
    %285 = vmatpush1.msra.mxu0 0.0
    %286 = vmatprep.subr.mxu0 0.0
    %287 = vmatpush1.msra.mxu0 0.0
    %288 = vmatprep.subr.mxu0 0.0
    %289 = vmatpush1.msra.mxu0 0.0
    %290 = vmatprep.subr.mxu0 0.0
    %291 = vmatpush1.msra.mxu0 0.0
    %292 = vmatprep.subr.mxu0 0.0
    %293 = vmatpush1.msra.mxu0 0.0
    %294 = vmatprep.subr.mxu0 0.0
    %295 = vmatpush1.msra.mxu0 0.0
    %296 = vmatprep.mubr.f32.mxu0 0.0
    %297 = vmatmul.mubr.f32.gmra.mrb[0].mxu0 %v221
    %v298 = vpop.f32.mrb[0].mxu0
    %v299 = vadd.f32 %v212, %v298
    %v300 = vpop.f32.mrb[0].mxu0
    %v301 = vadd.f32 %v216, %v300
    %302 = vmatprep.mubr.f32.mxu0 0.0
    %303 = vmatmul.mubr.f32.gmra.mrb[0].mxu0 %v224
    %v304 = vpop.f32.mrb[0].mxu0
    %v305 = vadd.f32 %v212, %v304
    %v306 = vpop.f32.mrb[0].mxu0
    %v307 = vadd.f32 %v216, %v306
    %308 = vmatprep.mubr.f32.mxu0 0.0
    %309 = vmatmul.mubr.f32.gmra.mrb[0].mxu0 %v227
    %v310 = vpop.f32.mrb[0].mxu0
    %v311 = vadd.f32 %v212, %v310
    %v312 = vpop.f32.mrb[0].mxu0
    %v313 = vadd.f32 %v216, %v312
    %314 = vmatprep.mubr.f32.mxu0 0.0
    %315 = vmatmul.mubr.f32.gmra.mrb[0].mxu0 %v230
    %v316 = vpop.f32.mrb[0].mxu0
    %v317 = vadd.f32 %v212, %v316
    %v318 = vpop.f32.mrb[0].mxu0
    %v319 = vadd.f32 %v216, %v318
    %320 = vdwg.mxu0
    %v321 = vld [vmem:[%s3] sm:$0xff]
    %v322 = vld [vmem:[%s3 + $0x8] sm:$0xff]
    %v323 = vld [vmem:[%s3 + $0x10] sm:$0xff]
    %v324 = vld [vmem:[%s3 + $0x18] sm:$0xff]
    %v325 = vld [vmem:[%s3 + $0x20] sm:$0xff]
    %v326 = vld [vmem:[%s3 + $0x28] sm:$0xff]
    %v327 = vld [vmem:[%s3 + $0x30] sm:$0xff]
    %v328 = vld [vmem:[%s3 + $0x38] sm:$0xff]
    %v329 = vld [vmem:[%s3 + $0x40] sm:$0xff]
    %v330 = vld [vmem:[%s3 + $0x48] sm:$0xff]
    %v331 = vld [vmem:[%s3 + $0x50] sm:$0xff]
    %v332 = vld [vmem:[%s3 + $0x58] sm:$0xff]
    %v333 = vld [vmem:[%s3 + $0x60] sm:$0xff]
    %v334 = vld [vmem:[%s3 + $0x68] sm:$0xff]
    %v335 = vld [vmem:[%s3 + $0x70] sm:$0xff]
    %v336 = vld [vmem:[%s3 + $0x78] sm:$0xff]
    %337 = vmatprep.subr.mxu0 %v322
    %338 = vmatpush1.msra.mxu0 %v321
    %339 = vmatprep.subr.mxu0 %v324
    %340 = vmatpush1.msra.mxu0 %v323
    %341 = vmatprep.subr.mxu0 %v326
    %342 = vmatpush1.msra.mxu0 %v325
    %343 = vmatprep.subr.mxu0 %v328
    %344 = vmatpush1.msra.mxu0 %v327
    %345 = vmatprep.subr.mxu0 %v330
    %346 = vmatpush1.msra.mxu0 %v329
    %347 = vmatprep.subr.mxu0 %v332
    %348 = vmatpush1.msra.mxu0 %v331
    %349 = vmatprep.subr.mxu0 %v334
    %350 = vmatpush1.msra.mxu0 %v333
    %351 = vmatprep.subr.mxu0 %v336
    %352 = vmatpush1.msra.mxu0 %v335
    %353 = vmatprep.subr.mxu0 0.0
    %354 = vmatpush1.msra.mxu0 0.0
    %355 = vmatprep.subr.mxu0 0.0
    %356 = vmatpush1.msra.mxu0 0.0
    %357 = vmatprep.subr.mxu0 0.0
    %358 = vmatpush1.msra.mxu0 0.0
    %359 = vmatprep.subr.mxu0 0.0
    %360 = vmatpush1.msra.mxu0 0.0
    %361 = vmatprep.subr.mxu0 0.0
    %362 = vmatpush1.msra.mxu0 0.0
    %363 = vmatprep.subr.mxu0 0.0
    %364 = vmatpush1.msra.mxu0 0.0
    %365 = vmatprep.subr.mxu0 0.0
    %366 = vmatpush1.msra.mxu0 0.0
    %367 = vmatprep.subr.mxu0 0.0
    %368 = vmatpush1.msra.mxu0 0.0
    %369 = vmatprep.subr.mxu0 0.0
    %370 = vmatpush1.msra.mxu0 0.0
    %371 = vmatprep.subr.mxu0 0.0
    %372 = vmatpush1.msra.mxu0 0.0
    %373 = vmatprep.subr.mxu0 0.0
    %374 = vmatpush1.msra.mxu0 0.0
    %375 = vmatprep.subr.mxu0 0.0
    %376 = vmatpush1.msra.mxu0 0.0
    %377 = vmatprep.subr.mxu0 0.0
    %378 = vmatpush1.msra.mxu0 0.0
    %379 = vmatprep.subr.mxu0 0.0
    %380 = vmatpush1.msra.mxu0 0.0
    %381 = vmatprep.subr.mxu0 0.0
    %382 = vmatpush1.msra.mxu0 0.0
    %383 = vmatprep.subr.mxu0 0.0
    %384 = vmatpush1.msra.mxu0 0.0
    %385 = vmatprep.subr.mxu0 0.0
    %386 = vmatpush1.msra.mxu0 0.0
    %387 = vmatprep.subr.mxu0 0.0
    %388 = vmatpush1.msra.mxu0 0.0
    %389 = vmatprep.subr.mxu0 0.0
    %390 = vmatpush1.msra.mxu0 0.0
    %391 = vmatprep.subr.mxu0 0.0
    %392 = vmatpush1.msra.mxu0 0.0
    %393 = vmatprep.subr.mxu0 0.0
    %394 = vmatpush1.msra.mxu0 0.0
    %395 = vmatprep.subr.mxu0 0.0
    %396 = vmatpush1.msra.mxu0 0.0
    %397 = vmatprep.subr.mxu0 0.0
    %398 = vmatpush1.msra.mxu0 0.0
    %399 = vmatprep.subr.mxu0 0.0
    %400 = vmatpush1.msra.mxu0 0.0
    %401 = vmatprep.mubr.f32.mxu0 0.0
    %402 = vmatmul.mubr.f32.gmra.mrb[0].mxu0 %v221
    %v403 = vpop.f32.mrb[0].mxu0
    %v404 = vadd.f32 0.0, %v403
    %v405 = vpop.f32.mrb[0].mxu0
    %v406 = vadd.f32 0.0, %v405
    %407 = vmatprep.mubr.f32.mxu0 0.0
    %408 = vmatmul.mubr.f32.gmra.mrb[0].mxu0 %v224
    %v409 = vpop.f32.mrb[0].mxu0
    %v410 = vadd.f32 0.0, %v409
    %v411 = vpop.f32.mrb[0].mxu0
    %v412 = vadd.f32 0.0, %v411
    %413 = vmatprep.mubr.f32.mxu0 0.0
    %414 = vmatmul.mubr.f32.gmra.mrb[0].mxu0 %v227
    %v415 = vpop.f32.mrb[0].mxu0
    %v416 = vadd.f32 0.0, %v415
    %v417 = vpop.f32.mrb[0].mxu0
    %v418 = vadd.f32 0.0, %v417
    %419 = vmatprep.mubr.f32.mxu0 0.0
    %420 = vmatmul.mubr.f32.gmra.mrb[0].mxu0 %v230
    %v421 = vpop.f32.mrb[0].mxu0
    %v422 = vadd.f32 0.0, %v421
    %v423 = vpop.f32.mrb[0].mxu0
    %v424 = vadd.f32 0.0, %v423
    %425 = vdwg.mxu0
    %v426 = vld [vmem:[%s4] sm:$0xff]
    %v427 = vld [vmem:[%s4 + $0x8] sm:$0xff]
    %v428 = vld [vmem:[%s4 + $0x10] sm:$0xff]
    %v429 = vld [vmem:[%s4 + $0x18] sm:$0xff]
    %v430 = vld [vmem:[%s4 + $0x20] sm:$0xff]
    %v431 = vld [vmem:[%s4 + $0x28] sm:$0xff]
    %v432 = vld [vmem:[%s4 + $0x30] sm:$0xff]
    %v433 = vld [vmem:[%s4 + $0x38] sm:$0xff]
    %v434 = vld [vmem:[%s4 + $0x40] sm:$0xff]
    %v435 = vld [vmem:[%s4 + $0x48] sm:$0xff]
    %v436 = vld [vmem:[%s4 + $0x50] sm:$0xff]
    %v437 = vld [vmem:[%s4 + $0x58] sm:$0xff]
    %v438 = vld [vmem:[%s4 + $0x60] sm:$0xff]
    %v439 = vld [vmem:[%s4 + $0x68] sm:$0xff]
    %v440 = vld [vmem:[%s4 + $0x70] sm:$0xff]
    %v441 = vld [vmem:[%s4 + $0x78] sm:$0xff]
    %v443 = vsel %vm219, 0.0, 0
    %445 = vmatprep.subr.mxu0 %v427
    %446 = vmatpush1.msra.mxu0 %v426
    %447 = vmatprep.subr.mxu0 %v429
    %448 = vmatpush1.msra.mxu0 %v428
    %449 = vmatprep.subr.mxu0 %v431
    %450 = vmatpush1.msra.mxu0 %v430
    %451 = vmatprep.subr.mxu0 %v433
    %452 = vmatpush1.msra.mxu0 %v432
    %453 = vmatprep.subr.mxu0 %v435
    %454 = vmatpush1.msra.mxu0 %v434
    %455 = vmatprep.subr.mxu0 %v437
    %456 = vmatpush1.msra.mxu0 %v436
    %457 = vmatprep.subr.mxu0 %v439
    %458 = vmatpush1.msra.mxu0 %v438
    %459 = vmatprep.subr.mxu0 %v441
    %460 = vmatpush1.msra.mxu0 %v440
    %461 = vmatprep.subr.mxu0 0.0
    %462 = vmatpush1.msra.mxu0 0.0
    %463 = vmatprep.subr.mxu0 0.0
    %464 = vmatpush1.msra.mxu0 0.0
    %465 = vmatprep.subr.mxu0 0.0
    %466 = vmatpush1.msra.mxu0 0.0
    %467 = vmatprep.subr.mxu0 0.0
    %468 = vmatpush1.msra.mxu0 0.0
    %469 = vmatprep.subr.mxu0 0.0
    %470 = vmatpush1.msra.mxu0 0.0
    %471 = vmatprep.subr.mxu0 0.0
    %472 = vmatpush1.msra.mxu0 0.0
    %473 = vmatprep.subr.mxu0 0.0
    %474 = vmatpush1.msra.mxu0 0.0
    %475 = vmatprep.subr.mxu0 0.0
    %476 = vmatpush1.msra.mxu0 0.0
    %477 = vmatprep.subr.mxu0 0.0
    %478 = vmatpush1.msra.mxu0 0.0
    %479 = vmatprep.subr.mxu0 0.0
    %480 = vmatpush1.msra.mxu0 0.0
    %481 = vmatprep.subr.mxu0 0.0
    %482 = vmatpush1.msra.mxu0 0.0
    %483 = vmatprep.subr.mxu0 0.0
    %484 = vmatpush1.msra.mxu0 0.0
    %485 = vmatprep.subr.mxu0 0.0
    %486 = vmatpush1.msra.mxu0 0.0
    %487 = vmatprep.subr.mxu0 0.0
    %488 = vmatpush1.msra.mxu0 0.0
    %489 = vmatprep.subr.mxu0 0.0
    %490 = vmatpush1.msra.mxu0 0.0
    %491 = vmatprep.subr.mxu0 0.0
    %492 = vmatpush1.msra.mxu0 0.0
    %493 = vmatprep.subr.mxu0 0.0
    %494 = vmatpush1.msra.mxu0 0.0
    %495 = vmatprep.subr.mxu0 0.0
    %496 = vmatpush1.msra.mxu0 0.0
    %497 = vmatprep.subr.mxu0 0.0
    %498 = vmatpush1.msra.mxu0 0.0
    %499 = vmatprep.subr.mxu0 0.0
    %500 = vmatpush1.msra.mxu0 0.0
    %501 = vmatprep.subr.mxu0 0.0
    %502 = vmatpush1.msra.mxu0 0.0
    %503 = vmatprep.subr.mxu0 0.0
    %504 = vmatpush1.msra.mxu0 0.0
    %505 = vmatprep.subr.mxu0 0.0
    %506 = vmatpush1.msra.mxu0 0.0
    %507 = vmatprep.subr.mxu0 0.0
    %508 = vmatpush1.msra.mxu0 0.0
    %509 = vmatprep.mubr.f32.mxu0 0.0
    %510 = vmatmul.mubr.f32.gmra.mrb[0].mxu0 %v443
    %v511 = vpop.f32.mrb[0].mxu0
    %v512 = vadd.f32 %v299, %v511
    %v513 = vpop.f32.mrb[0].mxu0
    %v514 = vadd.f32 %v301, %v513
    %515 = vdwg.mxu0
    %v518 = vrot.slane %v422, 6
    %v519 = vrot.slane %v424, 6
    %v522 = vadd.f32 %v512, %v518
    %v523 = vadd.f32 %v514, %v519
    %v524 = vxor.u32 %v522, 2147483648
    %v525 = vxor.u32 %v523, 2147483648
    %v526 = vmul.f32 %v524, 1.442695
    %v527 = vpow.pop %v526
    %v528 = vmul.f32 %v525, 1.442695
    %v529 = vpow.pop %v528
    %v530 = vadd.f32 %v527, 1.0
    %v531 = vadd.f32 %v529, 1.0
    %v532 = vrcp.pop %v530
    %v533 = vmul.f32 1.0, %v532
    %v534 = vrcp.pop %v531
    %v535 = vmul.f32 1.0, %v534
    %v536 = vtanh.pop %v523
    %v537 = vmul.f32 %v533, 0.0
    %539 = vrot.lane.b32.xlu0 %v536, 64
    %v540 = vpop.permute.xlu0 %539
    %v542 = vmul.f32 %v533, %v540
    %544 = vrot.lane.b32.xlu0 %v542, 64
    %v545 = vpop.permute.xlu0 %544
    %v547 = vadd.f32 %v537, %v545
    %v548 = vtanh.pop %v547
    %550 = vrot.lane.b32.xlu0 %v548, 64
    %v551 = vpop.permute.xlu0 %550
    %v553 = vmul.f32 %v535, %v551
    %v556 = vrot.slane %v299, 2
    %v557 = vrot.slane %v301, 2
    %v561 = vsel %vm219, %v553, 0
    %563 = vmatprep.subr.mxu0 %v427
    %564 = vmatpush1.msra.mxu0 %v426
    %565 = vmatprep.subr.mxu0 %v429
    %566 = vmatpush1.msra.mxu0 %v428
    %567 = vmatprep.subr.mxu0 %v431
    %568 = vmatpush1.msra.mxu0 %v430
    %569 = vmatprep.subr.mxu0 %v433
    %570 = vmatpush1.msra.mxu0 %v432
    %571 = vmatprep.subr.mxu0 %v435
    %572 = vmatpush1.msra.mxu0 %v434
    %573 = vmatprep.subr.mxu0 %v437
    %574 = vmatpush1.msra.mxu0 %v436
    %575 = vmatprep.subr.mxu0 %v439
    %576 = vmatpush1.msra.mxu0 %v438
    %577 = vmatprep.subr.mxu0 %v441
    %578 = vmatpush1.msra.mxu0 %v440
    %579 = vmatprep.subr.mxu0 0.0
    %580 = vmatpush1.msra.mxu0 0.0
    %581 = vmatprep.subr.mxu0 0.0
    %582 = vmatpush1.msra.mxu0 0.0
    %583 = vmatprep.subr.mxu0 0.0
    %584 = vmatpush1.msra.mxu0 0.0
    %585 = vmatprep.subr.mxu0 0.0
    %586 = vmatpush1.msra.mxu0 0.0
    %587 = vmatprep.subr.mxu0 0.0
    %588 = vmatpush1.msra.mxu0 0.0
    %589 = vmatprep.subr.mxu0 0.0
    %590 = vmatpush1.msra.mxu0 0.0
    %591 = vmatprep.subr.mxu0 0.0
    %592 = vmatpush1.msra.mxu0 0.0
    %593 = vmatprep.subr.mxu0 0.0
    %594 = vmatpush1.msra.mxu0 0.0
    %595 = vmatprep.subr.mxu0 0.0
    %596 = vmatpush1.msra.mxu0 0.0
    %597 = vmatprep.subr.mxu0 0.0
    %598 = vmatpush1.msra.mxu0 0.0
    %599 = vmatprep.subr.mxu0 0.0
    %600 = vmatpush1.msra.mxu0 0.0
    %601 = vmatprep.subr.mxu0 0.0
    %602 = vmatpush1.msra.mxu0 0.0
    %603 = vmatprep.subr.mxu0 0.0
    %604 = vmatpush1.msra.mxu0 0.0
    %605 = vmatprep.subr.mxu0 0.0
    %606 = vmatpush1.msra.mxu0 0.0
    %607 = vmatprep.subr.mxu0 0.0
    %608 = vmatpush1.msra.mxu0 0.0
    %609 = vmatprep.subr.mxu0 0.0
    %610 = vmatpush1.msra.mxu0 0.0
    %611 = vmatprep.subr.mxu0 0.0
    %612 = vmatpush1.msra.mxu0 0.0
    %613 = vmatprep.subr.mxu0 0.0
    %614 = vmatpush1.msra.mxu0 0.0
    %615 = vmatprep.subr.mxu0 0.0
    %616 = vmatpush1.msra.mxu0 0.0
    %617 = vmatprep.subr.mxu0 0.0
    %618 = vmatpush1.msra.mxu0 0.0
    %619 = vmatprep.subr.mxu0 0.0
    %620 = vmatpush1.msra.mxu0 0.0
    %621 = vmatprep.subr.mxu0 0.0
    %622 = vmatpush1.msra.mxu0 0.0
    %623 = vmatprep.subr.mxu0 0.0
    %624 = vmatpush1.msra.mxu0 0.0
    %625 = vmatprep.subr.mxu0 0.0
    %626 = vmatpush1.msra.mxu0 0.0
    %627 = vmatprep.mubr.f32.mxu0 0.0
    %628 = vmatmul.mubr.f32.gmra.mrb[0].mxu0 %v561
    %v629 = vpop.f32.mrb[0].mxu0
    %v630 = vadd.f32 %v556, %v629
    %v631 = vpop.f32.mrb[0].mxu0
    %v632 = vadd.f32 %v557, %v631
    %633 = vdwg.mxu0
    %v634 = vrot.slane %v422, 4
    %v635 = vrot.slane %v424, 4
    %v638 = vadd.f32 %v630, %v634
    %v639 = vadd.f32 %v632, %v635
    %v640 = vxor.u32 %v638, 2147483648
    %v641 = vxor.u32 %v639, 2147483648
    %v642 = vmul.f32 %v640, 1.442695
    %v643 = vpow.pop %v642
    %v644 = vmul.f32 %v641, 1.442695
    %v645 = vpow.pop %v644
    %v646 = vadd.f32 %v643, 1.0
    %v647 = vadd.f32 %v645, 1.0
    %v648 = vrcp.pop %v646
    %v649 = vmul.f32 1.0, %v648
    %v650 = vrcp.pop %v647
    %v651 = vmul.f32 1.0, %v650
    %v652 = vtanh.pop %v639
    %v653 = vmul.f32 %v649, %v547
    %655 = vrot.lane.b32.xlu0 %v652, 64
    %v656 = vpop.permute.xlu0 %655
    %v658 = vmul.f32 %v649, %v656
    %660 = vrot.lane.b32.xlu0 %v658, 64
    %v661 = vpop.permute.xlu0 %660
    %v663 = vadd.f32 %v653, %v661
    %v664 = vtanh.pop %v663
    %666 = vrot.lane.b32.xlu0 %v664, 64
    %v667 = vpop.permute.xlu0 %666
    %v669 = vmul.f32 %v651, %v667
    %v670 = vrot.slane %v299, 4
    %v671 = vrot.slane %v301, 4
    %v675 = vsel %vm219, %v669, 0
    %677 = vmatprep.subr.mxu0 %v427
    %678 = vmatpush1.msra.mxu0 %v426
    %679 = vmatprep.subr.mxu0 %v429
    %680 = vmatpush1.msra.mxu0 %v428
    %681 = vmatprep.subr.mxu0 %v431
    %682 = vmatpush1.msra.mxu0 %v430
    %683 = vmatprep.subr.mxu0 %v433
    %684 = vmatpush1.msra.mxu0 %v432
    %685 = vmatprep.subr.mxu0 %v435
    %686 = vmatpush1.msra.mxu0 %v434
    %687 = vmatprep.subr.mxu0 %v437
    %688 = vmatpush1.msra.mxu0 %v436
    %689 = vmatprep.subr.mxu0 %v439
    %690 = vmatpush1.msra.mxu0 %v438
    %691 = vmatprep.subr.mxu0 %v441
    %692 = vmatpush1.msra.mxu0 %v440
    %693 = vmatprep.subr.mxu0 0.0
    %694 = vmatpush1.msra.mxu0 0.0
    %695 = vmatprep.subr.mxu0 0.0
    %696 = vmatpush1.msra.mxu0 0.0
    %697 = vmatprep.subr.mxu0 0.0
    %698 = vmatpush1.msra.mxu0 0.0
    %699 = vmatprep.subr.mxu0 0.0
    %700 = vmatpush1.msra.mxu0 0.0
    %701 = vmatprep.subr.mxu0 0.0
    %702 = vmatpush1.msra.mxu0 0.0
    %703 = vmatprep.subr.mxu0 0.0
    %704 = vmatpush1.msra.mxu0 0.0
    %705 = vmatprep.subr.mxu0 0.0
    %706 = vmatpush1.msra.mxu0 0.0
    %707 = vmatprep.subr.mxu0 0.0
    %708 = vmatpush1.msra.mxu0 0.0
    %709 = vmatprep.subr.mxu0 0.0
    %710 = vmatpush1.msra.mxu0 0.0
    %711 = vmatprep.subr.mxu0 0.0
    %712 = vmatpush1.msra.mxu0 0.0
    %713 = vmatprep.subr.mxu0 0.0
    %714 = vmatpush1.msra.mxu0 0.0
    %715 = vmatprep.subr.mxu0 0.0
    %716 = vmatpush1.msra.mxu0 0.0
    %717 = vmatprep.subr.mxu0 0.0
    %718 = vmatpush1.msra.mxu0 0.0
    %719 = vmatprep.subr.mxu0 0.0
    %720 = vmatpush1.msra.mxu0 0.0
    %721 = vmatprep.subr.mxu0 0.0
    %722 = vmatpush1.msra.mxu0 0.0
    %723 = vmatprep.subr.mxu0 0.0
    %724 = vmatpush1.msra.mxu0 0.0
    %725 = vmatprep.subr.mxu0 0.0
    %726 = vmatpush1.msra.mxu0 0.0
    %727 = vmatprep.subr.mxu0 0.0
    %728 = vmatpush1.msra.mxu0 0.0
    %729 = vmatprep.subr.mxu0 0.0
    %730 = vmatpush1.msra.mxu0 0.0
    %731 = vmatprep.subr.mxu0 0.0
    %732 = vmatpush1.msra.mxu0 0.0
    %733 = vmatprep.subr.mxu0 0.0
    %734 = vmatpush1.msra.mxu0 0.0
    %735 = vmatprep.subr.mxu0 0.0
    %736 = vmatpush1.msra.mxu0 0.0
    %737 = vmatprep.subr.mxu0 0.0
    %738 = vmatpush1.msra.mxu0 0.0
    %739 = vmatprep.subr.mxu0 0.0
    %740 = vmatpush1.msra.mxu0 0.0
    %741 = vmatprep.mubr.f32.mxu0 0.0
    %742 = vmatmul.mubr.f32.gmra.mrb[0].mxu0 %v675
    %v743 = vpop.f32.mrb[0].mxu0
    %v744 = vadd.f32 %v670, %v743
    %v745 = vpop.f32.mrb[0].mxu0
    %v746 = vadd.f32 %v671, %v745
    %747 = vdwg.mxu0
    %v748 = vrot.slane %v422, 2
    %v749 = vrot.slane %v424, 2
    %v752 = vadd.f32 %v744, %v748
    %v753 = vadd.f32 %v746, %v749
    %v754 = vxor.u32 %v752, 2147483648
    %v755 = vxor.u32 %v753, 2147483648
    %v756 = vmul.f32 %v754, 1.442695
    %v757 = vpow.pop %v756
    %v758 = vmul.f32 %v755, 1.442695
    %v759 = vpow.pop %v758
    %v760 = vadd.f32 %v757, 1.0
    %v761 = vadd.f32 %v759, 1.0
    %v762 = vrcp.pop %v760
    %v763 = vmul.f32 1.0, %v762
    %v764 = vrcp.pop %v761
    %v765 = vmul.f32 1.0, %v764
    %v766 = vtanh.pop %v753
    %v767 = vmul.f32 %v763, %v663
    %769 = vrot.lane.b32.xlu0 %v766, 64
    %v770 = vpop.permute.xlu0 %769
    %v772 = vmul.f32 %v763, %v770
    %774 = vrot.lane.b32.xlu0 %v772, 64
    %v775 = vpop.permute.xlu0 %774
    %v777 = vadd.f32 %v767, %v775
    %v778 = vtanh.pop %v777
    %780 = vrot.lane.b32.xlu0 %v778, 64
    %v781 = vpop.permute.xlu0 %780
    %v783 = vmul.f32 %v765, %v781
    %v784 = vrot.slane %v299, 6
    %v785 = vrot.slane %v301, 6
    %v789 = vsel %vm219, %v783, 0
    %791 = vmatprep.subr.mxu0 %v427
    %792 = vmatpush1.msra.mxu0 %v426
    %793 = vmatprep.subr.mxu0 %v429
    %794 = vmatpush1.msra.mxu0 %v428
    %795 = vmatprep.subr.mxu0 %v431
    %796 = vmatpush1.msra.mxu0 %v430
    %797 = vmatprep.subr.mxu0 %v433
    %798 = vmatpush1.msra.mxu0 %v432
    %799 = vmatprep.subr.mxu0 %v435
    %800 = vmatpush1.msra.mxu0 %v434
    %801 = vmatprep.subr.mxu0 %v437
    %802 = vmatpush1.msra.mxu0 %v436
    %803 = vmatprep.subr.mxu0 %v439
    %804 = vmatpush1.msra.mxu0 %v438
    %805 = vmatprep.subr.mxu0 %v441
    %806 = vmatpush1.msra.mxu0 %v440
    %807 = vmatprep.subr.mxu0 0.0
    %808 = vmatpush1.msra.mxu0 0.0
    %809 = vmatprep.subr.mxu0 0.0
    %810 = vmatpush1.msra.mxu0 0.0
    %811 = vmatprep.subr.mxu0 0.0
    %812 = vmatpush1.msra.mxu0 0.0
    %813 = vmatprep.subr.mxu0 0.0
    %814 = vmatpush1.msra.mxu0 0.0
    %815 = vmatprep.subr.mxu0 0.0
    %816 = vmatpush1.msra.mxu0 0.0
    %817 = vmatprep.subr.mxu0 0.0
    %818 = vmatpush1.msra.mxu0 0.0
    %819 = vmatprep.subr.mxu0 0.0
    %820 = vmatpush1.msra.mxu0 0.0
    %821 = vmatprep.subr.mxu0 0.0
    %822 = vmatpush1.msra.mxu0 0.0
    %823 = vmatprep.subr.mxu0 0.0
    %824 = vmatpush1.msra.mxu0 0.0
    %825 = vmatprep.subr.mxu0 0.0
    %826 = vmatpush1.msra.mxu0 0.0
    %827 = vmatprep.subr.mxu0 0.0
    %828 = vmatpush1.msra.mxu0 0.0
    %829 = vmatprep.subr.mxu0 0.0
    %830 = vmatpush1.msra.mxu0 0.0
    %831 = vmatprep.subr.mxu0 0.0
    %832 = vmatpush1.msra.mxu0 0.0
    %833 = vmatprep.subr.mxu0 0.0
    %834 = vmatpush1.msra.mxu0 0.0
    %835 = vmatprep.subr.mxu0 0.0
    %836 = vmatpush1.msra.mxu0 0.0
    %837 = vmatprep.subr.mxu0 0.0
    %838 = vmatpush1.msra.mxu0 0.0
    %839 = vmatprep.subr.mxu0 0.0
    %840 = vmatpush1.msra.mxu0 0.0
    %841 = vmatprep.subr.mxu0 0.0
    %842 = vmatpush1.msra.mxu0 0.0
    %843 = vmatprep.subr.mxu0 0.0
    %844 = vmatpush1.msra.mxu0 0.0
    %845 = vmatprep.subr.mxu0 0.0
    %846 = vmatpush1.msra.mxu0 0.0
    %847 = vmatprep.subr.mxu0 0.0
    %848 = vmatpush1.msra.mxu0 0.0
    %849 = vmatprep.subr.mxu0 0.0
    %850 = vmatpush1.msra.mxu0 0.0
    %851 = vmatprep.subr.mxu0 0.0
    %852 = vmatpush1.msra.mxu0 0.0
    %853 = vmatprep.subr.mxu0 0.0
    %854 = vmatpush1.msra.mxu0 0.0
    %855 = vmatprep.mubr.f32.mxu0 0.0
    %856 = vmatmul.mubr.f32.gmra.mrb[0].mxu0 %v789
    %v857 = vpop.f32.mrb[0].mxu0
    %v858 = vadd.f32 %v784, %v857
    %v859 = vpop.f32.mrb[0].mxu0
    %v860 = vadd.f32 %v785, %v859
    %861 = vdwg.mxu0
    %v862 = vadd.f32 %v858, %v422
    %v863 = vadd.f32 %v860, %v424
    %v864 = vxor.u32 %v862, 2147483648
    %v865 = vxor.u32 %v863, 2147483648
    %v866 = vmul.f32 %v864, 1.442695
    %v867 = vpow.pop %v866
    %v868 = vmul.f32 %v865, 1.442695
    %v869 = vpow.pop %v868
    %v870 = vadd.f32 %v867, 1.0
    %v871 = vadd.f32 %v869, 1.0
    %v872 = vrcp.pop %v870
    %v873 = vmul.f32 1.0, %v872
    %v874 = vrcp.pop %v871
    %v875 = vmul.f32 1.0, %v874
    %v876 = vtanh.pop %v863
    %v877 = vmul.f32 %v873, %v777
    %879 = vrot.lane.b32.xlu0 %v876, 64
    %v880 = vpop.permute.xlu0 %879
    %v882 = vmul.f32 %v873, %v880
    %884 = vrot.lane.b32.xlu0 %v882, 64
    %v885 = vpop.permute.xlu0 %884
    %v887 = vadd.f32 %v877, %v885
    %v888 = vtanh.pop %v887
    %890 = vrot.lane.b32.xlu0 %v888, 64
    %v891 = vpop.permute.xlu0 %890
    %v893 = vmul.f32 %v875, %v891
    %v895 = vsel %vm219, %v893, 0
    %897 = vmatprep.subr.mxu0 %v427
    %898 = vmatpush1.msra.mxu0 %v426
    %899 = vmatprep.subr.mxu0 %v429
    %900 = vmatpush1.msra.mxu0 %v428
    %901 = vmatprep.subr.mxu0 %v431
    %902 = vmatpush1.msra.mxu0 %v430
    %903 = vmatprep.subr.mxu0 %v433
    %904 = vmatpush1.msra.mxu0 %v432
    %905 = vmatprep.subr.mxu0 %v435
    %906 = vmatpush1.msra.mxu0 %v434
    %907 = vmatprep.subr.mxu0 %v437
    %908 = vmatpush1.msra.mxu0 %v436
    %909 = vmatprep.subr.mxu0 %v439
    %910 = vmatpush1.msra.mxu0 %v438
    %911 = vmatprep.subr.mxu0 %v441
    %912 = vmatpush1.msra.mxu0 %v440
    %913 = vmatprep.subr.mxu0 0.0
    %914 = vmatpush1.msra.mxu0 0.0
    %915 = vmatprep.subr.mxu0 0.0
    %916 = vmatpush1.msra.mxu0 0.0
    %917 = vmatprep.subr.mxu0 0.0
    %918 = vmatpush1.msra.mxu0 0.0
    %919 = vmatprep.subr.mxu0 0.0
    %920 = vmatpush1.msra.mxu0 0.0
    %921 = vmatprep.subr.mxu0 0.0
    %922 = vmatpush1.msra.mxu0 0.0
    %923 = vmatprep.subr.mxu0 0.0
    %924 = vmatpush1.msra.mxu0 0.0
    %925 = vmatprep.subr.mxu0 0.0
    %926 = vmatpush1.msra.mxu0 0.0
    %927 = vmatprep.subr.mxu0 0.0
    %928 = vmatpush1.msra.mxu0 0.0
    %929 = vmatprep.subr.mxu0 0.0
    %930 = vmatpush1.msra.mxu0 0.0
    %931 = vmatprep.subr.mxu0 0.0
    %932 = vmatpush1.msra.mxu0 0.0
    %933 = vmatprep.subr.mxu0 0.0
    %934 = vmatpush1.msra.mxu0 0.0
    %935 = vmatprep.subr.mxu0 0.0
    %936 = vmatpush1.msra.mxu0 0.0
    %937 = vmatprep.subr.mxu0 0.0
    %938 = vmatpush1.msra.mxu0 0.0
    %939 = vmatprep.subr.mxu0 0.0
    %940 = vmatpush1.msra.mxu0 0.0
    %941 = vmatprep.subr.mxu0 0.0
    %942 = vmatpush1.msra.mxu0 0.0
    %943 = vmatprep.subr.mxu0 0.0
    %944 = vmatpush1.msra.mxu0 0.0
    %945 = vmatprep.subr.mxu0 0.0
    %946 = vmatpush1.msra.mxu0 0.0
    %947 = vmatprep.subr.mxu0 0.0
    %948 = vmatpush1.msra.mxu0 0.0
    %949 = vmatprep.subr.mxu0 0.0
    %950 = vmatpush1.msra.mxu0 0.0
    %951 = vmatprep.subr.mxu0 0.0
    %952 = vmatpush1.msra.mxu0 0.0
    %953 = vmatprep.subr.mxu0 0.0
    %954 = vmatpush1.msra.mxu0 0.0
    %955 = vmatprep.subr.mxu0 0.0
    %956 = vmatpush1.msra.mxu0 0.0
    %957 = vmatprep.subr.mxu0 0.0
    %958 = vmatpush1.msra.mxu0 0.0
    %959 = vmatprep.subr.mxu0 0.0
    %960 = vmatpush1.msra.mxu0 0.0
    %961 = vmatprep.mubr.f32.mxu0 0.0
    %962 = vmatmul.mubr.f32.gmra.mrb[0].mxu0 %v895
    %v963 = vpop.f32.mrb[0].mxu0
    %v964 = vadd.f32 %v305, %v963
    %v965 = vpop.f32.mrb[0].mxu0
    %v966 = vadd.f32 %v307, %v965
    %967 = vdwg.mxu0
    %v970 = vrot.slane %v416, 6
    %v971 = vrot.slane %v418, 6
    %v974 = vadd.f32 %v964, %v970
    %v975 = vadd.f32 %v966, %v971
    %v976 = vxor.u32 %v974, 2147483648
    %v977 = vxor.u32 %v975, 2147483648
    %v978 = vmul.f32 %v976, 1.442695
    %v979 = vpow.pop %v978
    %v980 = vmul.f32 %v977, 1.442695
    %v981 = vpow.pop %v980
    %v982 = vadd.f32 %v979, 1.0
    %v983 = vadd.f32 %v981, 1.0
    %v984 = vrcp.pop %v982
    %v985 = vmul.f32 1.0, %v984
    %v986 = vrcp.pop %v983
    %v987 = vmul.f32 1.0, %v986
    %v988 = vtanh.pop %v975
    %v989 = vmul.f32 %v985, %v887
    %991 = vrot.lane.b32.xlu0 %v988, 64
    %v992 = vpop.permute.xlu0 %991
    %v994 = vmul.f32 %v985, %v992
    %996 = vrot.lane.b32.xlu0 %v994, 64
    %v997 = vpop.permute.xlu0 %996
    %v999 = vadd.f32 %v989, %v997
    %v1000 = vtanh.pop %v999
    %1002 = vrot.lane.b32.xlu0 %v1000, 64
    %v1003 = vpop.permute.xlu0 %1002
    %v1005 = vmul.f32 %v987, %v1003
    %v1008 = vrot.slane %v305, 2
    %v1009 = vrot.slane %v307, 2
    %v1013 = vsel %vm219, %v1005, 0
    %1015 = vmatprep.subr.mxu0 %v427
    %1016 = vmatpush1.msra.mxu0 %v426
    %1017 = vmatprep.subr.mxu0 %v429
    %1018 = vmatpush1.msra.mxu0 %v428
    %1019 = vmatprep.subr.mxu0 %v431
    %1020 = vmatpush1.msra.mxu0 %v430
    %1021 = vmatprep.subr.mxu0 %v433
    %1022 = vmatpush1.msra.mxu0 %v432
    %1023 = vmatprep.subr.mxu0 %v435
    %1024 = vmatpush1.msra.mxu0 %v434
    %1025 = vmatprep.subr.mxu0 %v437
    %1026 = vmatpush1.msra.mxu0 %v436
    %1027 = vmatprep.subr.mxu0 %v439
    %1028 = vmatpush1.msra.mxu0 %v438
    %1029 = vmatprep.subr.mxu0 %v441
    %1030 = vmatpush1.msra.mxu0 %v440
    %1031 = vmatprep.subr.mxu0 0.0
    %1032 = vmatpush1.msra.mxu0 0.0
    %1033 = vmatprep.subr.mxu0 0.0
    %1034 = vmatpush1.msra.mxu0 0.0
    %1035 = vmatprep.subr.mxu0 0.0
    %1036 = vmatpush1.msra.mxu0 0.0
    %1037 = vmatprep.subr.mxu0 0.0
    %1038 = vmatpush1.msra.mxu0 0.0
    %1039 = vmatprep.subr.mxu0 0.0
    %1040 = vmatpush1.msra.mxu0 0.0
    %1041 = vmatprep.subr.mxu0 0.0
    %1042 = vmatpush1.msra.mxu0 0.0
    %1043 = vmatprep.subr.mxu0 0.0
    %1044 = vmatpush1.msra.mxu0 0.0
    %1045 = vmatprep.subr.mxu0 0.0
    %1046 = vmatpush1.msra.mxu0 0.0
    %1047 = vmatprep.subr.mxu0 0.0
    %1048 = vmatpush1.msra.mxu0 0.0
    %1049 = vmatprep.subr.mxu0 0.0
    %1050 = vmatpush1.msra.mxu0 0.0
    %1051 = vmatprep.subr.mxu0 0.0
    %1052 = vmatpush1.msra.mxu0 0.0
    %1053 = vmatprep.subr.mxu0 0.0
    %1054 = vmatpush1.msra.mxu0 0.0
    %1055 = vmatprep.subr.mxu0 0.0
    %1056 = vmatpush1.msra.mxu0 0.0
    %1057 = vmatprep.subr.mxu0 0.0
    %1058 = vmatpush1.msra.mxu0 0.0
    %1059 = vmatprep.subr.mxu0 0.0
    %1060 = vmatpush1.msra.mxu0 0.0
    %1061 = vmatprep.subr.mxu0 0.0
    %1062 = vmatpush1.msra.mxu0 0.0
    %1063 = vmatprep.subr.mxu0 0.0
    %1064 = vmatpush1.msra.mxu0 0.0
    %1065 = vmatprep.subr.mxu0 0.0
    %1066 = vmatpush1.msra.mxu0 0.0
    %1067 = vmatprep.subr.mxu0 0.0
    %1068 = vmatpush1.msra.mxu0 0.0
    %1069 = vmatprep.subr.mxu0 0.0
    %1070 = vmatpush1.msra.mxu0 0.0
    %1071 = vmatprep.subr.mxu0 0.0
    %1072 = vmatpush1.msra.mxu0 0.0
    %1073 = vmatprep.subr.mxu0 0.0
    %1074 = vmatpush1.msra.mxu0 0.0
    %1075 = vmatprep.subr.mxu0 0.0
    %1076 = vmatpush1.msra.mxu0 0.0
    %1077 = vmatprep.subr.mxu0 0.0
    %1078 = vmatpush1.msra.mxu0 0.0
    %1079 = vmatprep.mubr.f32.mxu0 0.0
    %1080 = vmatmul.mubr.f32.gmra.mrb[0].mxu0 %v1013
    %v1081 = vpop.f32.mrb[0].mxu0
    %v1082 = vadd.f32 %v1008, %v1081
    %v1083 = vpop.f32.mrb[0].mxu0
    %v1084 = vadd.f32 %v1009, %v1083
    %1085 = vdwg.mxu0
    %v1086 = vrot.slane %v416, 4
    %v1087 = vrot.slane %v418, 4
    %v1090 = vadd.f32 %v1082, %v1086
    %v1091 = vadd.f32 %v1084, %v1087
    %v1092 = vxor.u32 %v1090, 2147483648
    %v1093 = vxor.u32 %v1091, 2147483648
    %v1094 = vmul.f32 %v1092, 1.442695
    %v1095 = vpow.pop %v1094
    %v1096 = vmul.f32 %v1093, 1.442695
    %v1097 = vpow.pop %v1096
    %v1098 = vadd.f32 %v1095, 1.0
    %v1099 = vadd.f32 %v1097, 1.0
    %v1100 = vrcp.pop %v1098
    %v1101 = vmul.f32 1.0, %v1100
    %v1102 = vrcp.pop %v1099
    %v1103 = vmul.f32 1.0, %v1102
    %v1104 = vtanh.pop %v1091
    %v1105 = vmul.f32 %v1101, %v999
    %1107 = vrot.lane.b32.xlu0 %v1104, 64
    %v1108 = vpop.permute.xlu0 %1107
    %v1110 = vmul.f32 %v1101, %v1108
    %1112 = vrot.lane.b32.xlu0 %v1110, 64
    %v1113 = vpop.permute.xlu0 %1112
    %v1115 = vadd.f32 %v1105, %v1113
    %v1116 = vtanh.pop %v1115
    %1118 = vrot.lane.b32.xlu0 %v1116, 64
    %v1119 = vpop.permute.xlu0 %1118
    %v1121 = vmul.f32 %v1103, %v1119
    %v1122 = vrot.slane %v305, 4
    %v1123 = vrot.slane %v307, 4
    %v1127 = vsel %vm219, %v1121, 0
    %1129 = vmatprep.subr.mxu0 %v427
    %1130 = vmatpush1.msra.mxu0 %v426
    %1131 = vmatprep.subr.mxu0 %v429
    %1132 = vmatpush1.msra.mxu0 %v428
    %1133 = vmatprep.subr.mxu0 %v431
    %1134 = vmatpush1.msra.mxu0 %v430
    %1135 = vmatprep.subr.mxu0 %v433
    %1136 = vmatpush1.msra.mxu0 %v432
    %1137 = vmatprep.subr.mxu0 %v435
    %1138 = vmatpush1.msra.mxu0 %v434
    %1139 = vmatprep.subr.mxu0 %v437
    %1140 = vmatpush1.msra.mxu0 %v436
    %1141 = vmatprep.subr.mxu0 %v439
    %1142 = vmatpush1.msra.mxu0 %v438
    %1143 = vmatprep.subr.mxu0 %v441
    %1144 = vmatpush1.msra.mxu0 %v440
    %1145 = vmatprep.subr.mxu0 0.0
    %1146 = vmatpush1.msra.mxu0 0.0
    %1147 = vmatprep.subr.mxu0 0.0
    %1148 = vmatpush1.msra.mxu0 0.0
    %1149 = vmatprep.subr.mxu0 0.0
    %1150 = vmatpush1.msra.mxu0 0.0
    %1151 = vmatprep.subr.mxu0 0.0
    %1152 = vmatpush1.msra.mxu0 0.0
    %1153 = vmatprep.subr.mxu0 0.0
    %1154 = vmatpush1.msra.mxu0 0.0
    %1155 = vmatprep.subr.mxu0 0.0
    %1156 = vmatpush1.msra.mxu0 0.0
    %1157 = vmatprep.subr.mxu0 0.0
    %1158 = vmatpush1.msra.mxu0 0.0
    %1159 = vmatprep.subr.mxu0 0.0
    %1160 = vmatpush1.msra.mxu0 0.0
    %1161 = vmatprep.subr.mxu0 0.0
    %1162 = vmatpush1.msra.mxu0 0.0
    %1163 = vmatprep.subr.mxu0 0.0
    %1164 = vmatpush1.msra.mxu0 0.0
    %1165 = vmatprep.subr.mxu0 0.0
    %1166 = vmatpush1.msra.mxu0 0.0
    %1167 = vmatprep.subr.mxu0 0.0
    %1168 = vmatpush1.msra.mxu0 0.0
    %1169 = vmatprep.subr.mxu0 0.0
    %1170 = vmatpush1.msra.mxu0 0.0
    %1171 = vmatprep.subr.mxu0 0.0
    %1172 = vmatpush1.msra.mxu0 0.0
    %1173 = vmatprep.subr.mxu0 0.0
    %1174 = vmatpush1.msra.mxu0 0.0
    %1175 = vmatprep.subr.mxu0 0.0
    %1176 = vmatpush1.msra.mxu0 0.0
    %1177 = vmatprep.subr.mxu0 0.0
    %1178 = vmatpush1.msra.mxu0 0.0
    %1179 = vmatprep.subr.mxu0 0.0
    %1180 = vmatpush1.msra.mxu0 0.0
    %1181 = vmatprep.subr.mxu0 0.0
    %1182 = vmatpush1.msra.mxu0 0.0
    %1183 = vmatprep.subr.mxu0 0.0
    %1184 = vmatpush1.msra.mxu0 0.0
    %1185 = vmatprep.subr.mxu0 0.0
    %1186 = vmatpush1.msra.mxu0 0.0
    %1187 = vmatprep.subr.mxu0 0.0
    %1188 = vmatpush1.msra.mxu0 0.0
    %1189 = vmatprep.subr.mxu0 0.0
    %1190 = vmatpush1.msra.mxu0 0.0
    %1191 = vmatprep.subr.mxu0 0.0
    %1192 = vmatpush1.msra.mxu0 0.0
    %1193 = vmatprep.mubr.f32.mxu0 0.0
    %1194 = vmatmul.mubr.f32.gmra.mrb[0].mxu0 %v1127
    %v1195 = vpop.f32.mrb[0].mxu0
    %v1196 = vadd.f32 %v1122, %v1195
    %v1197 = vpop.f32.mrb[0].mxu0
    %v1198 = vadd.f32 %v1123, %v1197
    %1199 = vdwg.mxu0
    %v1200 = vrot.slane %v416, 2
    %v1201 = vrot.slane %v418, 2
    %v1204 = vadd.f32 %v1196, %v1200
    %v1205 = vadd.f32 %v1198, %v1201
    %v1206 = vxor.u32 %v1204, 2147483648
    %v1207 = vxor.u32 %v1205, 2147483648
    %v1208 = vmul.f32 %v1206, 1.442695
    %v1209 = vpow.pop %v1208
    %v1210 = vmul.f32 %v1207, 1.442695
    %v1211 = vpow.pop %v1210
    %v1212 = vadd.f32 %v1209, 1.0
    %v1213 = vadd.f32 %v1211, 1.0
    %v1214 = vrcp.pop %v1212
    %v1215 = vmul.f32 1.0, %v1214
    %v1216 = vrcp.pop %v1213
    %v1217 = vmul.f32 1.0, %v1216
    %v1218 = vtanh.pop %v1205
    %v1219 = vmul.f32 %v1215, %v1115
    %1221 = vrot.lane.b32.xlu0 %v1218, 64
    %v1222 = vpop.permute.xlu0 %1221
    %v1224 = vmul.f32 %v1215, %v1222
    %1226 = vrot.lane.b32.xlu0 %v1224, 64
    %v1227 = vpop.permute.xlu0 %1226
    %v1229 = vadd.f32 %v1219, %v1227
    %v1230 = vtanh.pop %v1229
    %1232 = vrot.lane.b32.xlu0 %v1230, 64
    %v1233 = vpop.permute.xlu0 %1232
    %v1235 = vmul.f32 %v1217, %v1233
    %v1236 = vrot.slane %v305, 6
    %v1237 = vrot.slane %v307, 6
    %v1241 = vsel %vm219, %v1235, 0
    %1243 = vmatprep.subr.mxu0 %v427
    %1244 = vmatpush1.msra.mxu0 %v426
    %1245 = vmatprep.subr.mxu0 %v429
    %1246 = vmatpush1.msra.mxu0 %v428
    %1247 = vmatprep.subr.mxu0 %v431
    %1248 = vmatpush1.msra.mxu0 %v430
    %1249 = vmatprep.subr.mxu0 %v433
    %1250 = vmatpush1.msra.mxu0 %v432
    %1251 = vmatprep.subr.mxu0 %v435
    %1252 = vmatpush1.msra.mxu0 %v434
    %1253 = vmatprep.subr.mxu0 %v437
    %1254 = vmatpush1.msra.mxu0 %v436
    %1255 = vmatprep.subr.mxu0 %v439
    %1256 = vmatpush1.msra.mxu0 %v438
    %1257 = vmatprep.subr.mxu0 %v441
    %1258 = vmatpush1.msra.mxu0 %v440
    %1259 = vmatprep.subr.mxu0 0.0
    %1260 = vmatpush1.msra.mxu0 0.0
    %1261 = vmatprep.subr.mxu0 0.0
    %1262 = vmatpush1.msra.mxu0 0.0
    %1263 = vmatprep.subr.mxu0 0.0
    %1264 = vmatpush1.msra.mxu0 0.0
    %1265 = vmatprep.subr.mxu0 0.0
    %1266 = vmatpush1.msra.mxu0 0.0
    %1267 = vmatprep.subr.mxu0 0.0
    %1268 = vmatpush1.msra.mxu0 0.0
    %1269 = vmatprep.subr.mxu0 0.0
    %1270 = vmatpush1.msra.mxu0 0.0
    %1271 = vmatprep.subr.mxu0 0.0
    %1272 = vmatpush1.msra.mxu0 0.0
    %1273 = vmatprep.subr.mxu0 0.0
    %1274 = vmatpush1.msra.mxu0 0.0
    %1275 = vmatprep.subr.mxu0 0.0
    %1276 = vmatpush1.msra.mxu0 0.0
    %1277 = vmatprep.subr.mxu0 0.0
    %1278 = vmatpush1.msra.mxu0 0.0
    %1279 = vmatprep.subr.mxu0 0.0
    %1280 = vmatpush1.msra.mxu0 0.0
    %1281 = vmatprep.subr.mxu0 0.0
    %1282 = vmatpush1.msra.mxu0 0.0
    %1283 = vmatprep.subr.mxu0 0.0
    %1284 = vmatpush1.msra.mxu0 0.0
    %1285 = vmatprep.subr.mxu0 0.0
    %1286 = vmatpush1.msra.mxu0 0.0
    %1287 = vmatprep.subr.mxu0 0.0
    %1288 = vmatpush1.msra.mxu0 0.0
    %1289 = vmatprep.subr.mxu0 0.0
    %1290 = vmatpush1.msra.mxu0 0.0
    %1291 = vmatprep.subr.mxu0 0.0
    %1292 = vmatpush1.msra.mxu0 0.0
    %1293 = vmatprep.subr.mxu0 0.0
    %1294 = vmatpush1.msra.mxu0 0.0
    %1295 = vmatprep.subr.mxu0 0.0
    %1296 = vmatpush1.msra.mxu0 0.0
    %1297 = vmatprep.subr.mxu0 0.0
    %1298 = vmatpush1.msra.mxu0 0.0
    %1299 = vmatprep.subr.mxu0 0.0
    %1300 = vmatpush1.msra.mxu0 0.0
    %1301 = vmatprep.subr.mxu0 0.0
    %1302 = vmatpush1.msra.mxu0 0.0
    %1303 = vmatprep.subr.mxu0 0.0
    %1304 = vmatpush1.msra.mxu0 0.0
    %1305 = vmatprep.subr.mxu0 0.0
    %1306 = vmatpush1.msra.mxu0 0.0
    %1307 = vmatprep.mubr.f32.mxu0 0.0
    %1308 = vmatmul.mubr.f32.gmra.mrb[0].mxu0 %v1241
    %v1309 = vpop.f32.mrb[0].mxu0
    %v1310 = vadd.f32 %v1236, %v1309
    %v1311 = vpop.f32.mrb[0].mxu0
    %v1312 = vadd.f32 %v1237, %v1311
    %1313 = vdwg.mxu0
    %v1314 = vadd.f32 %v1310, %v416
    %v1315 = vadd.f32 %v1312, %v418
    %v1316 = vxor.u32 %v1314, 2147483648
    %v1317 = vxor.u32 %v1315, 2147483648
    %v1318 = vmul.f32 %v1316, 1.442695
    %v1319 = vpow.pop %v1318
    %v1320 = vmul.f32 %v1317, 1.442695
    %v1321 = vpow.pop %v1320
    %v1322 = vadd.f32 %v1319, 1.0
    %v1323 = vadd.f32 %v1321, 1.0
    %v1324 = vrcp.pop %v1322
    %v1325 = vmul.f32 1.0, %v1324
    %v1326 = vrcp.pop %v1323
    %v1327 = vmul.f32 1.0, %v1326
    %v1328 = vtanh.pop %v1315
    %v1329 = vmul.f32 %v1325, %v1229
    %1331 = vrot.lane.b32.xlu0 %v1328, 64
    %v1332 = vpop.permute.xlu0 %1331
    %v1334 = vmul.f32 %v1325, %v1332
    %1336 = vrot.lane.b32.xlu0 %v1334, 64
    %v1337 = vpop.permute.xlu0 %1336
    %v1339 = vadd.f32 %v1329, %v1337
    %v1340 = vtanh.pop %v1339
    %1342 = vrot.lane.b32.xlu0 %v1340, 64
    %v1343 = vpop.permute.xlu0 %1342
    %v1345 = vmul.f32 %v1327, %v1343
    %v1347 = vsel %vm219, %v1345, 0
    %1349 = vmatprep.subr.mxu0 %v427
    %1350 = vmatpush1.msra.mxu0 %v426
    %1351 = vmatprep.subr.mxu0 %v429
    %1352 = vmatpush1.msra.mxu0 %v428
    %1353 = vmatprep.subr.mxu0 %v431
    %1354 = vmatpush1.msra.mxu0 %v430
    %1355 = vmatprep.subr.mxu0 %v433
    %1356 = vmatpush1.msra.mxu0 %v432
    %1357 = vmatprep.subr.mxu0 %v435
    %1358 = vmatpush1.msra.mxu0 %v434
    %1359 = vmatprep.subr.mxu0 %v437
    %1360 = vmatpush1.msra.mxu0 %v436
    %1361 = vmatprep.subr.mxu0 %v439
    %1362 = vmatpush1.msra.mxu0 %v438
    %1363 = vmatprep.subr.mxu0 %v441
    %1364 = vmatpush1.msra.mxu0 %v440
    %1365 = vmatprep.subr.mxu0 0.0
    %1366 = vmatpush1.msra.mxu0 0.0
    %1367 = vmatprep.subr.mxu0 0.0
    %1368 = vmatpush1.msra.mxu0 0.0
    %1369 = vmatprep.subr.mxu0 0.0
    %1370 = vmatpush1.msra.mxu0 0.0
    %1371 = vmatprep.subr.mxu0 0.0
    %1372 = vmatpush1.msra.mxu0 0.0
    %1373 = vmatprep.subr.mxu0 0.0
    %1374 = vmatpush1.msra.mxu0 0.0
    %1375 = vmatprep.subr.mxu0 0.0
    %1376 = vmatpush1.msra.mxu0 0.0
    %1377 = vmatprep.subr.mxu0 0.0
    %1378 = vmatpush1.msra.mxu0 0.0
    %1379 = vmatprep.subr.mxu0 0.0
    %1380 = vmatpush1.msra.mxu0 0.0
    %1381 = vmatprep.subr.mxu0 0.0
    %1382 = vmatpush1.msra.mxu0 0.0
    %1383 = vmatprep.subr.mxu0 0.0
    %1384 = vmatpush1.msra.mxu0 0.0
    %1385 = vmatprep.subr.mxu0 0.0
    %1386 = vmatpush1.msra.mxu0 0.0
    %1387 = vmatprep.subr.mxu0 0.0
    %1388 = vmatpush1.msra.mxu0 0.0
    %1389 = vmatprep.subr.mxu0 0.0
    %1390 = vmatpush1.msra.mxu0 0.0
    %1391 = vmatprep.subr.mxu0 0.0
    %1392 = vmatpush1.msra.mxu0 0.0
    %1393 = vmatprep.subr.mxu0 0.0
    %1394 = vmatpush1.msra.mxu0 0.0
    %1395 = vmatprep.subr.mxu0 0.0
    %1396 = vmatpush1.msra.mxu0 0.0
    %1397 = vmatprep.subr.mxu0 0.0
    %1398 = vmatpush1.msra.mxu0 0.0
    %1399 = vmatprep.subr.mxu0 0.0
    %1400 = vmatpush1.msra.mxu0 0.0
    %1401 = vmatprep.subr.mxu0 0.0
    %1402 = vmatpush1.msra.mxu0 0.0
    %1403 = vmatprep.subr.mxu0 0.0
    %1404 = vmatpush1.msra.mxu0 0.0
    %1405 = vmatprep.subr.mxu0 0.0
    %1406 = vmatpush1.msra.mxu0 0.0
    %1407 = vmatprep.subr.mxu0 0.0
    %1408 = vmatpush1.msra.mxu0 0.0
    %1409 = vmatprep.subr.mxu0 0.0
    %1410 = vmatpush1.msra.mxu0 0.0
    %1411 = vmatprep.subr.mxu0 0.0
    %1412 = vmatpush1.msra.mxu0 0.0
    %1413 = vmatprep.mubr.f32.mxu0 0.0
    %1414 = vmatmul.mubr.f32.gmra.mrb[0].mxu0 %v1347
    %v1415 = vpop.f32.mrb[0].mxu0
    %v1416 = vadd.f32 %v311, %v1415
    %v1417 = vpop.f32.mrb[0].mxu0
    %v1418 = vadd.f32 %v313, %v1417
    %1419 = vdwg.mxu0
    %v1422 = vrot.slane %v410, 6
    %v1423 = vrot.slane %v412, 6
    %v1426 = vadd.f32 %v1416, %v1422
    %v1427 = vadd.f32 %v1418, %v1423
    %v1428 = vxor.u32 %v1426, 2147483648
    %v1429 = vxor.u32 %v1427, 2147483648
    %v1430 = vmul.f32 %v1428, 1.442695
    %v1431 = vpow.pop %v1430
    %v1432 = vmul.f32 %v1429, 1.442695
    %v1433 = vpow.pop %v1432
    %v1434 = vadd.f32 %v1431, 1.0
    %v1435 = vadd.f32 %v1433, 1.0
    %v1436 = vrcp.pop %v1434
    %v1437 = vmul.f32 1.0, %v1436
    %v1438 = vrcp.pop %v1435
    %v1439 = vmul.f32 1.0, %v1438
    %v1440 = vtanh.pop %v1427
    %v1441 = vmul.f32 %v1437, %v1339
    %1443 = vrot.lane.b32.xlu0 %v1440, 64
    %v1444 = vpop.permute.xlu0 %1443
    %v1446 = vmul.f32 %v1437, %v1444
    %1448 = vrot.lane.b32.xlu0 %v1446, 64
    %v1449 = vpop.permute.xlu0 %1448
    %v1451 = vadd.f32 %v1441, %v1449
    %v1452 = vtanh.pop %v1451
    %1454 = vrot.lane.b32.xlu0 %v1452, 64
    %v1455 = vpop.permute.xlu0 %1454
    %v1457 = vmul.f32 %v1439, %v1455
    %v1460 = vrot.slane %v311, 2
    %v1461 = vrot.slane %v313, 2
    %v1465 = vsel %vm219, %v1457, 0
    %1467 = vmatprep.subr.mxu0 %v427
    %1468 = vmatpush1.msra.mxu0 %v426
    %1469 = vmatprep.subr.mxu0 %v429
    %1470 = vmatpush1.msra.mxu0 %v428
    %1471 = vmatprep.subr.mxu0 %v431
    %1472 = vmatpush1.msra.mxu0 %v430
    %1473 = vmatprep.subr.mxu0 %v433
    %1474 = vmatpush1.msra.mxu0 %v432
    %1475 = vmatprep.subr.mxu0 %v435
    %1476 = vmatpush1.msra.mxu0 %v434
    %1477 = vmatprep.subr.mxu0 %v437
    %1478 = vmatpush1.msra.mxu0 %v436
    %1479 = vmatprep.subr.mxu0 %v439
    %1480 = vmatpush1.msra.mxu0 %v438
    %1481 = vmatprep.subr.mxu0 %v441
    %1482 = vmatpush1.msra.mxu0 %v440
    %1483 = vmatprep.subr.mxu0 0.0
    %1484 = vmatpush1.msra.mxu0 0.0
    %1485 = vmatprep.subr.mxu0 0.0
    %1486 = vmatpush1.msra.mxu0 0.0
    %1487 = vmatprep.subr.mxu0 0.0
    %1488 = vmatpush1.msra.mxu0 0.0
    %1489 = vmatprep.subr.mxu0 0.0
    %1490 = vmatpush1.msra.mxu0 0.0
    %1491 = vmatprep.subr.mxu0 0.0
    %1492 = vmatpush1.msra.mxu0 0.0
    %1493 = vmatprep.subr.mxu0 0.0
    %1494 = vmatpush1.msra.mxu0 0.0
    %1495 = vmatprep.subr.mxu0 0.0
    %1496 = vmatpush1.msra.mxu0 0.0
    %1497 = vmatprep.subr.mxu0 0.0
    %1498 = vmatpush1.msra.mxu0 0.0
    %1499 = vmatprep.subr.mxu0 0.0
    %1500 = vmatpush1.msra.mxu0 0.0
    %1501 = vmatprep.subr.mxu0 0.0
    %1502 = vmatpush1.msra.mxu0 0.0
    %1503 = vmatprep.subr.mxu0 0.0
    %1504 = vmatpush1.msra.mxu0 0.0
    %1505 = vmatprep.subr.mxu0 0.0
    %1506 = vmatpush1.msra.mxu0 0.0
    %1507 = vmatprep.subr.mxu0 0.0
    %1508 = vmatpush1.msra.mxu0 0.0
    %1509 = vmatprep.subr.mxu0 0.0
    %1510 = vmatpush1.msra.mxu0 0.0
    %1511 = vmatprep.subr.mxu0 0.0
    %1512 = vmatpush1.msra.mxu0 0.0
    %1513 = vmatprep.subr.mxu0 0.0
    %1514 = vmatpush1.msra.mxu0 0.0
    %1515 = vmatprep.subr.mxu0 0.0
    %1516 = vmatpush1.msra.mxu0 0.0
    %1517 = vmatprep.subr.mxu0 0.0
    %1518 = vmatpush1.msra.mxu0 0.0
    %1519 = vmatprep.subr.mxu0 0.0
    %1520 = vmatpush1.msra.mxu0 0.0
    %1521 = vmatprep.subr.mxu0 0.0
    %1522 = vmatpush1.msra.mxu0 0.0
    %1523 = vmatprep.subr.mxu0 0.0
    %1524 = vmatpush1.msra.mxu0 0.0
    %1525 = vmatprep.subr.mxu0 0.0
    %1526 = vmatpush1.msra.mxu0 0.0
    %1527 = vmatprep.subr.mxu0 0.0
    %1528 = vmatpush1.msra.mxu0 0.0
    %1529 = vmatprep.subr.mxu0 0.0
    %1530 = vmatpush1.msra.mxu0 0.0
    %1531 = vmatprep.mubr.f32.mxu0 0.0
    %1532 = vmatmul.mubr.f32.gmra.mrb[0].mxu0 %v1465
    %v1533 = vpop.f32.mrb[0].mxu0
    %v1534 = vadd.f32 %v1460, %v1533
    %v1535 = vpop.f32.mrb[0].mxu0
    %v1536 = vadd.f32 %v1461, %v1535
    %1537 = vdwg.mxu0
    %v1538 = vrot.slane %v410, 4
    %v1539 = vrot.slane %v412, 4
    %v1542 = vadd.f32 %v1534, %v1538
    %v1543 = vadd.f32 %v1536, %v1539
    %v1544 = vxor.u32 %v1542, 2147483648
    %v1545 = vxor.u32 %v1543, 2147483648
    %v1546 = vmul.f32 %v1544, 1.442695
    %v1547 = vpow.pop %v1546
    %v1548 = vmul.f32 %v1545, 1.442695
    %v1549 = vpow.pop %v1548
    %v1550 = vadd.f32 %v1547, 1.0
    %v1551 = vadd.f32 %v1549, 1.0
    %v1552 = vrcp.pop %v1550
    %v1553 = vmul.f32 1.0, %v1552
    %v1554 = vrcp.pop %v1551
    %v1555 = vmul.f32 1.0, %v1554
    %v1556 = vtanh.pop %v1543
    %v1557 = vmul.f32 %v1553, %v1451
    %1559 = vrot.lane.b32.xlu0 %v1556, 64
    %v1560 = vpop.permute.xlu0 %1559
    %v1562 = vmul.f32 %v1553, %v1560
    %1564 = vrot.lane.b32.xlu0 %v1562, 64
    %v1565 = vpop.permute.xlu0 %1564
    %v1567 = vadd.f32 %v1557, %v1565
    %v1568 = vtanh.pop %v1567
    %1570 = vrot.lane.b32.xlu0 %v1568, 64
    %v1571 = vpop.permute.xlu0 %1570
    %v1573 = vmul.f32 %v1555, %v1571
    %v1574 = vrot.slane %v311, 4
    %v1575 = vrot.slane %v313, 4
    %v1579 = vsel %vm219, %v1573, 0
    %1581 = vmatprep.subr.mxu0 %v427
    %1582 = vmatpush1.msra.mxu0 %v426
    %1583 = vmatprep.subr.mxu0 %v429
    %1584 = vmatpush1.msra.mxu0 %v428
    %1585 = vmatprep.subr.mxu0 %v431
    %1586 = vmatpush1.msra.mxu0 %v430
    %1587 = vmatprep.subr.mxu0 %v433
    %1588 = vmatpush1.msra.mxu0 %v432
    %1589 = vmatprep.subr.mxu0 %v435
    %1590 = vmatpush1.msra.mxu0 %v434
    %1591 = vmatprep.subr.mxu0 %v437
    %1592 = vmatpush1.msra.mxu0 %v436
    %1593 = vmatprep.subr.mxu0 %v439
    %1594 = vmatpush1.msra.mxu0 %v438
    %1595 = vmatprep.subr.mxu0 %v441
    %1596 = vmatpush1.msra.mxu0 %v440
    %1597 = vmatprep.subr.mxu0 0.0
    %1598 = vmatpush1.msra.mxu0 0.0
    %1599 = vmatprep.subr.mxu0 0.0
    %1600 = vmatpush1.msra.mxu0 0.0
    %1601 = vmatprep.subr.mxu0 0.0
    %1602 = vmatpush1.msra.mxu0 0.0
    %1603 = vmatprep.subr.mxu0 0.0
    %1604 = vmatpush1.msra.mxu0 0.0
    %1605 = vmatprep.subr.mxu0 0.0
    %1606 = vmatpush1.msra.mxu0 0.0
    %1607 = vmatprep.subr.mxu0 0.0
    %1608 = vmatpush1.msra.mxu0 0.0
    %1609 = vmatprep.subr.mxu0 0.0
    %1610 = vmatpush1.msra.mxu0 0.0
    %1611 = vmatprep.subr.mxu0 0.0
    %1612 = vmatpush1.msra.mxu0 0.0
    %1613 = vmatprep.subr.mxu0 0.0
    %1614 = vmatpush1.msra.mxu0 0.0
    %1615 = vmatprep.subr.mxu0 0.0
    %1616 = vmatpush1.msra.mxu0 0.0
    %1617 = vmatprep.subr.mxu0 0.0
    %1618 = vmatpush1.msra.mxu0 0.0
    %1619 = vmatprep.subr.mxu0 0.0
    %1620 = vmatpush1.msra.mxu0 0.0
    %1621 = vmatprep.subr.mxu0 0.0
    %1622 = vmatpush1.msra.mxu0 0.0
    %1623 = vmatprep.subr.mxu0 0.0
    %1624 = vmatpush1.msra.mxu0 0.0
    %1625 = vmatprep.subr.mxu0 0.0
    %1626 = vmatpush1.msra.mxu0 0.0
    %1627 = vmatprep.subr.mxu0 0.0
    %1628 = vmatpush1.msra.mxu0 0.0
    %1629 = vmatprep.subr.mxu0 0.0
    %1630 = vmatpush1.msra.mxu0 0.0
    %1631 = vmatprep.subr.mxu0 0.0
    %1632 = vmatpush1.msra.mxu0 0.0
    %1633 = vmatprep.subr.mxu0 0.0
    %1634 = vmatpush1.msra.mxu0 0.0
    %1635 = vmatprep.subr.mxu0 0.0
    %1636 = vmatpush1.msra.mxu0 0.0
    %1637 = vmatprep.subr.mxu0 0.0
    %1638 = vmatpush1.msra.mxu0 0.0
    %1639 = vmatprep.subr.mxu0 0.0
    %1640 = vmatpush1.msra.mxu0 0.0
    %1641 = vmatprep.subr.mxu0 0.0
    %1642 = vmatpush1.msra.mxu0 0.0
    %1643 = vmatprep.subr.mxu0 0.0
    %1644 = vmatpush1.msra.mxu0 0.0
    %1645 = vmatprep.mubr.f32.mxu0 0.0
    %1646 = vmatmul.mubr.f32.gmra.mrb[0].mxu0 %v1579
    %v1647 = vpop.f32.mrb[0].mxu0
    %v1648 = vadd.f32 %v1574, %v1647
    %v1649 = vpop.f32.mrb[0].mxu0
    %v1650 = vadd.f32 %v1575, %v1649
    %1651 = vdwg.mxu0
    %v1652 = vrot.slane %v410, 2
    %v1653 = vrot.slane %v412, 2
    %v1656 = vadd.f32 %v1648, %v1652
    %v1657 = vadd.f32 %v1650, %v1653
    %v1658 = vxor.u32 %v1656, 2147483648
    %v1659 = vxor.u32 %v1657, 2147483648
    %v1660 = vmul.f32 %v1658, 1.442695
    %v1661 = vpow.pop %v1660
    %v1662 = vmul.f32 %v1659, 1.442695
    %v1663 = vpow.pop %v1662
    %v1664 = vadd.f32 %v1661, 1.0
    %v1665 = vadd.f32 %v1663, 1.0
    %v1666 = vrcp.pop %v1664
    %v1667 = vmul.f32 1.0, %v1666
    %v1668 = vrcp.pop %v1665
    %v1669 = vmul.f32 1.0, %v1668
    %v1670 = vtanh.pop %v1657
    %v1671 = vmul.f32 %v1667, %v1567
    %1673 = vrot.lane.b32.xlu0 %v1670, 64
    %v1674 = vpop.permute.xlu0 %1673
    %v1676 = vmul.f32 %v1667, %v1674
    %1678 = vrot.lane.b32.xlu0 %v1676, 64
    %v1679 = vpop.permute.xlu0 %1678
    %v1681 = vadd.f32 %v1671, %v1679
    %v1682 = vtanh.pop %v1681
    %1684 = vrot.lane.b32.xlu0 %v1682, 64
    %v1685 = vpop.permute.xlu0 %1684
    %v1687 = vmul.f32 %v1669, %v1685
    %v1688 = vrot.slane %v311, 6
    %v1689 = vrot.slane %v313, 6
    %v1693 = vsel %vm219, %v1687, 0
    %1695 = vmatprep.subr.mxu0 %v427
    %1696 = vmatpush1.msra.mxu0 %v426
    %1697 = vmatprep.subr.mxu0 %v429
    %1698 = vmatpush1.msra.mxu0 %v428
    %1699 = vmatprep.subr.mxu0 %v431
    %1700 = vmatpush1.msra.mxu0 %v430
    %1701 = vmatprep.subr.mxu0 %v433
    %1702 = vmatpush1.msra.mxu0 %v432
    %1703 = vmatprep.subr.mxu0 %v435
    %1704 = vmatpush1.msra.mxu0 %v434
    %1705 = vmatprep.subr.mxu0 %v437
    %1706 = vmatpush1.msra.mxu0 %v436
    %1707 = vmatprep.subr.mxu0 %v439
    %1708 = vmatpush1.msra.mxu0 %v438
    %1709 = vmatprep.subr.mxu0 %v441
    %1710 = vmatpush1.msra.mxu0 %v440
    %1711 = vmatprep.subr.mxu0 0.0
    %1712 = vmatpush1.msra.mxu0 0.0
    %1713 = vmatprep.subr.mxu0 0.0
    %1714 = vmatpush1.msra.mxu0 0.0
    %1715 = vmatprep.subr.mxu0 0.0
    %1716 = vmatpush1.msra.mxu0 0.0
    %1717 = vmatprep.subr.mxu0 0.0
    %1718 = vmatpush1.msra.mxu0 0.0
    %1719 = vmatprep.subr.mxu0 0.0
    %1720 = vmatpush1.msra.mxu0 0.0
    %1721 = vmatprep.subr.mxu0 0.0
    %1722 = vmatpush1.msra.mxu0 0.0
    %1723 = vmatprep.subr.mxu0 0.0
    %1724 = vmatpush1.msra.mxu0 0.0
    %1725 = vmatprep.subr.mxu0 0.0
    %1726 = vmatpush1.msra.mxu0 0.0
    %1727 = vmatprep.subr.mxu0 0.0
    %1728 = vmatpush1.msra.mxu0 0.0
    %1729 = vmatprep.subr.mxu0 0.0
    %1730 = vmatpush1.msra.mxu0 0.0
    %1731 = vmatprep.subr.mxu0 0.0
    %1732 = vmatpush1.msra.mxu0 0.0
    %1733 = vmatprep.subr.mxu0 0.0
    %1734 = vmatpush1.msra.mxu0 0.0
    %1735 = vmatprep.subr.mxu0 0.0
    %1736 = vmatpush1.msra.mxu0 0.0
    %1737 = vmatprep.subr.mxu0 0.0
    %1738 = vmatpush1.msra.mxu0 0.0
    %1739 = vmatprep.subr.mxu0 0.0
    %1740 = vmatpush1.msra.mxu0 0.0
    %1741 = vmatprep.subr.mxu0 0.0
    %1742 = vmatpush1.msra.mxu0 0.0
    %1743 = vmatprep.subr.mxu0 0.0
    %1744 = vmatpush1.msra.mxu0 0.0
    %1745 = vmatprep.subr.mxu0 0.0
    %1746 = vmatpush1.msra.mxu0 0.0
    %1747 = vmatprep.subr.mxu0 0.0
    %1748 = vmatpush1.msra.mxu0 0.0
    %1749 = vmatprep.subr.mxu0 0.0
    %1750 = vmatpush1.msra.mxu0 0.0
    %1751 = vmatprep.subr.mxu0 0.0
    %1752 = vmatpush1.msra.mxu0 0.0
    %1753 = vmatprep.subr.mxu0 0.0
    %1754 = vmatpush1.msra.mxu0 0.0
    %1755 = vmatprep.subr.mxu0 0.0
    %1756 = vmatpush1.msra.mxu0 0.0
    %1757 = vmatprep.subr.mxu0 0.0
    %1758 = vmatpush1.msra.mxu0 0.0
    %1759 = vmatprep.mubr.f32.mxu0 0.0
    %1760 = vmatmul.mubr.f32.gmra.mrb[0].mxu0 %v1693
    %v1761 = vpop.f32.mrb[0].mxu0
    %v1762 = vadd.f32 %v1688, %v1761
    %v1763 = vpop.f32.mrb[0].mxu0
    %v1764 = vadd.f32 %v1689, %v1763
    %1765 = vdwg.mxu0
    %v1766 = vadd.f32 %v1762, %v410
    %v1767 = vadd.f32 %v1764, %v412
    %v1768 = vxor.u32 %v1766, 2147483648
    %v1769 = vxor.u32 %v1767, 2147483648
    %v1770 = vmul.f32 %v1768, 1.442695
    %v1771 = vpow.pop %v1770
    %v1772 = vmul.f32 %v1769, 1.442695
    %v1773 = vpow.pop %v1772
    %v1774 = vadd.f32 %v1771, 1.0
    %v1775 = vadd.f32 %v1773, 1.0
    %v1776 = vrcp.pop %v1774
    %v1777 = vmul.f32 1.0, %v1776
    %v1778 = vrcp.pop %v1775
    %v1779 = vmul.f32 1.0, %v1778
    %v1780 = vtanh.pop %v1767
    %v1781 = vmul.f32 %v1777, %v1681
    %1783 = vrot.lane.b32.xlu0 %v1780, 64
    %v1784 = vpop.permute.xlu0 %1783
    %v1786 = vmul.f32 %v1777, %v1784
    %1788 = vrot.lane.b32.xlu0 %v1786, 64
    %v1789 = vpop.permute.xlu0 %1788
    %v1791 = vadd.f32 %v1781, %v1789
    %v1792 = vtanh.pop %v1791
    %1794 = vrot.lane.b32.xlu0 %v1792, 64
    %v1795 = vpop.permute.xlu0 %1794
    %v1797 = vmul.f32 %v1779, %v1795
    %v1799 = vsel %vm219, %v1797, 0
    %1801 = vmatprep.subr.mxu0 %v427
    %1802 = vmatpush1.msra.mxu0 %v426
    %1803 = vmatprep.subr.mxu0 %v429
    %1804 = vmatpush1.msra.mxu0 %v428
    %1805 = vmatprep.subr.mxu0 %v431
    %1806 = vmatpush1.msra.mxu0 %v430
    %1807 = vmatprep.subr.mxu0 %v433
    %1808 = vmatpush1.msra.mxu0 %v432
    %1809 = vmatprep.subr.mxu0 %v435
    %1810 = vmatpush1.msra.mxu0 %v434
    %1811 = vmatprep.subr.mxu0 %v437
    %1812 = vmatpush1.msra.mxu0 %v436
    %1813 = vmatprep.subr.mxu0 %v439
    %1814 = vmatpush1.msra.mxu0 %v438
    %1815 = vmatprep.subr.mxu0 %v441
    %1816 = vmatpush1.msra.mxu0 %v440
    %1817 = vmatprep.subr.mxu0 0.0
    %1818 = vmatpush1.msra.mxu0 0.0
    %1819 = vmatprep.subr.mxu0 0.0
    %1820 = vmatpush1.msra.mxu0 0.0
    %1821 = vmatprep.subr.mxu0 0.0
    %1822 = vmatpush1.msra.mxu0 0.0
    %1823 = vmatprep.subr.mxu0 0.0
    %1824 = vmatpush1.msra.mxu0 0.0
    %1825 = vmatprep.subr.mxu0 0.0
    %1826 = vmatpush1.msra.mxu0 0.0
    %1827 = vmatprep.subr.mxu0 0.0
    %1828 = vmatpush1.msra.mxu0 0.0
    %1829 = vmatprep.subr.mxu0 0.0
    %1830 = vmatpush1.msra.mxu0 0.0
    %1831 = vmatprep.subr.mxu0 0.0
    %1832 = vmatpush1.msra.mxu0 0.0
    %1833 = vmatprep.subr.mxu0 0.0
    %1834 = vmatpush1.msra.mxu0 0.0
    %1835 = vmatprep.subr.mxu0 0.0
    %1836 = vmatpush1.msra.mxu0 0.0
    %1837 = vmatprep.subr.mxu0 0.0
    %1838 = vmatpush1.msra.mxu0 0.0
    %1839 = vmatprep.subr.mxu0 0.0
    %1840 = vmatpush1.msra.mxu0 0.0
    %1841 = vmatprep.subr.mxu0 0.0
    %1842 = vmatpush1.msra.mxu0 0.0
    %1843 = vmatprep.subr.mxu0 0.0
    %1844 = vmatpush1.msra.mxu0 0.0
    %1845 = vmatprep.subr.mxu0 0.0
    %1846 = vmatpush1.msra.mxu0 0.0
    %1847 = vmatprep.subr.mxu0 0.0
    %1848 = vmatpush1.msra.mxu0 0.0
    %1849 = vmatprep.subr.mxu0 0.0
    %1850 = vmatpush1.msra.mxu0 0.0
    %1851 = vmatprep.subr.mxu0 0.0
    %1852 = vmatpush1.msra.mxu0 0.0
    %1853 = vmatprep.subr.mxu0 0.0
    %1854 = vmatpush1.msra.mxu0 0.0
    %1855 = vmatprep.subr.mxu0 0.0
    %1856 = vmatpush1.msra.mxu0 0.0
    %1857 = vmatprep.subr.mxu0 0.0
    %1858 = vmatpush1.msra.mxu0 0.0
    %1859 = vmatprep.subr.mxu0 0.0
    %1860 = vmatpush1.msra.mxu0 0.0
    %1861 = vmatprep.subr.mxu0 0.0
    %1862 = vmatpush1.msra.mxu0 0.0
    %1863 = vmatprep.subr.mxu0 0.0
    %1864 = vmatpush1.msra.mxu0 0.0
    %1865 = vmatprep.mubr.f32.mxu0 0.0
    %1866 = vmatmul.mubr.f32.gmra.mrb[0].mxu0 %v1799
    %v1867 = vpop.f32.mrb[0].mxu0
    %v1868 = vadd.f32 %v317, %v1867
    %v1869 = vpop.f32.mrb[0].mxu0
    %v1870 = vadd.f32 %v319, %v1869
    %1871 = vdwg.mxu0
    %v1874 = vrot.slane %v404, 6
    %v1875 = vrot.slane %v406, 6
    %v1878 = vadd.f32 %v1868, %v1874
    %v1879 = vadd.f32 %v1870, %v1875
    %v1880 = vxor.u32 %v1878, 2147483648
    %v1881 = vxor.u32 %v1879, 2147483648
    %v1882 = vmul.f32 %v1880, 1.442695
    %v1883 = vpow.pop %v1882
    %v1884 = vmul.f32 %v1881, 1.442695
    %v1885 = vpow.pop %v1884
    %v1886 = vadd.f32 %v1883, 1.0
    %v1887 = vadd.f32 %v1885, 1.0
    %v1888 = vrcp.pop %v1886
    %v1889 = vmul.f32 1.0, %v1888
    %v1890 = vrcp.pop %v1887
    %v1891 = vmul.f32 1.0, %v1890
    %v1892 = vtanh.pop %v1879
    %v1893 = vmul.f32 %v1889, %v1791
    %1895 = vrot.lane.b32.xlu0 %v1892, 64
    %v1896 = vpop.permute.xlu0 %1895
    %v1898 = vmul.f32 %v1889, %v1896
    %1900 = vrot.lane.b32.xlu0 %v1898, 64
    %v1901 = vpop.permute.xlu0 %1900
    %v1903 = vadd.f32 %v1893, %v1901
    %v1904 = vtanh.pop %v1903
    %1906 = vrot.lane.b32.xlu0 %v1904, 64
    %v1907 = vpop.permute.xlu0 %1906
    %v1909 = vmul.f32 %v1891, %v1907
    %v1912 = vrot.slane %v317, 2
    %v1913 = vrot.slane %v319, 2
    %v1917 = vsel %vm219, %v1909, 0
    %1919 = vmatprep.subr.mxu0 %v427
    %1920 = vmatpush1.msra.mxu0 %v426
    %1921 = vmatprep.subr.mxu0 %v429
    %1922 = vmatpush1.msra.mxu0 %v428
    %1923 = vmatprep.subr.mxu0 %v431
    %1924 = vmatpush1.msra.mxu0 %v430
    %1925 = vmatprep.subr.mxu0 %v433
    %1926 = vmatpush1.msra.mxu0 %v432
    %1927 = vmatprep.subr.mxu0 %v435
    %1928 = vmatpush1.msra.mxu0 %v434
    %1929 = vmatprep.subr.mxu0 %v437
    %1930 = vmatpush1.msra.mxu0 %v436
    %1931 = vmatprep.subr.mxu0 %v439
    %1932 = vmatpush1.msra.mxu0 %v438
    %1933 = vmatprep.subr.mxu0 %v441
    %1934 = vmatpush1.msra.mxu0 %v440
    %1935 = vmatprep.subr.mxu0 0.0
    %1936 = vmatpush1.msra.mxu0 0.0
    %1937 = vmatprep.subr.mxu0 0.0
    %1938 = vmatpush1.msra.mxu0 0.0
    %1939 = vmatprep.subr.mxu0 0.0
    %1940 = vmatpush1.msra.mxu0 0.0
    %1941 = vmatprep.subr.mxu0 0.0
    %1942 = vmatpush1.msra.mxu0 0.0
    %1943 = vmatprep.subr.mxu0 0.0
    %1944 = vmatpush1.msra.mxu0 0.0
    %1945 = vmatprep.subr.mxu0 0.0
    %1946 = vmatpush1.msra.mxu0 0.0
    %1947 = vmatprep.subr.mxu0 0.0
    %1948 = vmatpush1.msra.mxu0 0.0
    %1949 = vmatprep.subr.mxu0 0.0
    %1950 = vmatpush1.msra.mxu0 0.0
    %1951 = vmatprep.subr.mxu0 0.0
    %1952 = vmatpush1.msra.mxu0 0.0
    %1953 = vmatprep.subr.mxu0 0.0
    %1954 = vmatpush1.msra.mxu0 0.0
    %1955 = vmatprep.subr.mxu0 0.0
    %1956 = vmatpush1.msra.mxu0 0.0
    %1957 = vmatprep.subr.mxu0 0.0
    %1958 = vmatpush1.msra.mxu0 0.0
    %1959 = vmatprep.subr.mxu0 0.0
    %1960 = vmatpush1.msra.mxu0 0.0
    %1961 = vmatprep.subr.mxu0 0.0
    %1962 = vmatpush1.msra.mxu0 0.0
    %1963 = vmatprep.subr.mxu0 0.0
    %1964 = vmatpush1.msra.mxu0 0.0
    %1965 = vmatprep.subr.mxu0 0.0
    %1966 = vmatpush1.msra.mxu0 0.0
    %1967 = vmatprep.subr.mxu0 0.0
    %1968 = vmatpush1.msra.mxu0 0.0
    %1969 = vmatprep.subr.mxu0 0.0
    %1970 = vmatpush1.msra.mxu0 0.0
    %1971 = vmatprep.subr.mxu0 0.0
    %1972 = vmatpush1.msra.mxu0 0.0
    %1973 = vmatprep.subr.mxu0 0.0
    %1974 = vmatpush1.msra.mxu0 0.0
    %1975 = vmatprep.subr.mxu0 0.0
    %1976 = vmatpush1.msra.mxu0 0.0
    %1977 = vmatprep.subr.mxu0 0.0
    %1978 = vmatpush1.msra.mxu0 0.0
    %1979 = vmatprep.subr.mxu0 0.0
    %1980 = vmatpush1.msra.mxu0 0.0
    %1981 = vmatprep.subr.mxu0 0.0
    %1982 = vmatpush1.msra.mxu0 0.0
    %1983 = vmatprep.mubr.f32.mxu0 0.0
    %1984 = vmatmul.mubr.f32.gmra.mrb[0].mxu0 %v1917
    %v1985 = vpop.f32.mrb[0].mxu0
    %v1986 = vadd.f32 %v1912, %v1985
    %v1987 = vpop.f32.mrb[0].mxu0
    %v1988 = vadd.f32 %v1913, %v1987
    %1989 = vdwg.mxu0
    %v1990 = vrot.slane %v404, 4
    %v1991 = vrot.slane %v406, 4
    %v1994 = vadd.f32 %v1986, %v1990
    %v1995 = vadd.f32 %v1988, %v1991
    %v1996 = vxor.u32 %v1994, 2147483648
    %v1997 = vxor.u32 %v1995, 2147483648
    %v1998 = vmul.f32 %v1996, 1.442695
    %v1999 = vpow.pop %v1998
    %v2000 = vmul.f32 %v1997, 1.442695
    %v2001 = vpow.pop %v2000
    %v2002 = vadd.f32 %v1999, 1.0
    %v2003 = vadd.f32 %v2001, 1.0
    %v2004 = vrcp.pop %v2002
    %v2005 = vmul.f32 1.0, %v2004
    %v2006 = vrcp.pop %v2003
    %v2007 = vmul.f32 1.0, %v2006
    %v2008 = vtanh.pop %v1995
    %v2009 = vmul.f32 %v2005, %v1903
    %2011 = vrot.lane.b32.xlu0 %v2008, 64
    %v2012 = vpop.permute.xlu0 %2011
    %v2014 = vmul.f32 %v2005, %v2012
    %2016 = vrot.lane.b32.xlu0 %v2014, 64
    %v2017 = vpop.permute.xlu0 %2016
    %v2019 = vadd.f32 %v2009, %v2017
    %v2020 = vtanh.pop %v2019
    %2022 = vrot.lane.b32.xlu0 %v2020, 64
    %v2023 = vpop.permute.xlu0 %2022
    %v2025 = vmul.f32 %v2007, %v2023
    %v2026 = vrot.slane %v317, 4
    %v2027 = vrot.slane %v319, 4
    %v2031 = vsel %vm219, %v2025, 0
    %2033 = vmatprep.subr.mxu0 %v427
    %2034 = vmatpush1.msra.mxu0 %v426
    %2035 = vmatprep.subr.mxu0 %v429
    %2036 = vmatpush1.msra.mxu0 %v428
    %2037 = vmatprep.subr.mxu0 %v431
    %2038 = vmatpush1.msra.mxu0 %v430
    %2039 = vmatprep.subr.mxu0 %v433
    %2040 = vmatpush1.msra.mxu0 %v432
    %2041 = vmatprep.subr.mxu0 %v435
    %2042 = vmatpush1.msra.mxu0 %v434
    %2043 = vmatprep.subr.mxu0 %v437
    %2044 = vmatpush1.msra.mxu0 %v436
    %2045 = vmatprep.subr.mxu0 %v439
    %2046 = vmatpush1.msra.mxu0 %v438
    %2047 = vmatprep.subr.mxu0 %v441
    %2048 = vmatpush1.msra.mxu0 %v440
    %2049 = vmatprep.subr.mxu0 0.0
    %2050 = vmatpush1.msra.mxu0 0.0
    %2051 = vmatprep.subr.mxu0 0.0
    %2052 = vmatpush1.msra.mxu0 0.0
    %2053 = vmatprep.subr.mxu0 0.0
    %2054 = vmatpush1.msra.mxu0 0.0
    %2055 = vmatprep.subr.mxu0 0.0
    %2056 = vmatpush1.msra.mxu0 0.0
    %2057 = vmatprep.subr.mxu0 0.0
    %2058 = vmatpush1.msra.mxu0 0.0
    %2059 = vmatprep.subr.mxu0 0.0
    %2060 = vmatpush1.msra.mxu0 0.0
    %2061 = vmatprep.subr.mxu0 0.0
    %2062 = vmatpush1.msra.mxu0 0.0
    %2063 = vmatprep.subr.mxu0 0.0
    %2064 = vmatpush1.msra.mxu0 0.0
    %2065 = vmatprep.subr.mxu0 0.0
    %2066 = vmatpush1.msra.mxu0 0.0
    %2067 = vmatprep.subr.mxu0 0.0
    %2068 = vmatpush1.msra.mxu0 0.0
    %2069 = vmatprep.subr.mxu0 0.0
    %2070 = vmatpush1.msra.mxu0 0.0
    %2071 = vmatprep.subr.mxu0 0.0
    %2072 = vmatpush1.msra.mxu0 0.0
    %2073 = vmatprep.subr.mxu0 0.0
    %2074 = vmatpush1.msra.mxu0 0.0
    %2075 = vmatprep.subr.mxu0 0.0
    %2076 = vmatpush1.msra.mxu0 0.0
    %2077 = vmatprep.subr.mxu0 0.0
    %2078 = vmatpush1.msra.mxu0 0.0
    %2079 = vmatprep.subr.mxu0 0.0
    %2080 = vmatpush1.msra.mxu0 0.0
    %2081 = vmatprep.subr.mxu0 0.0
    %2082 = vmatpush1.msra.mxu0 0.0
    %2083 = vmatprep.subr.mxu0 0.0
    %2084 = vmatpush1.msra.mxu0 0.0
    %2085 = vmatprep.subr.mxu0 0.0
    %2086 = vmatpush1.msra.mxu0 0.0
    %2087 = vmatprep.subr.mxu0 0.0
    %2088 = vmatpush1.msra.mxu0 0.0
    %2089 = vmatprep.subr.mxu0 0.0
    %2090 = vmatpush1.msra.mxu0 0.0
    %2091 = vmatprep.subr.mxu0 0.0
    %2092 = vmatpush1.msra.mxu0 0.0
    %2093 = vmatprep.subr.mxu0 0.0
    %2094 = vmatpush1.msra.mxu0 0.0
    %2095 = vmatprep.subr.mxu0 0.0
    %2096 = vmatpush1.msra.mxu0 0.0
    %2097 = vmatprep.mubr.f32.mxu0 0.0
    %2098 = vmatmul.mubr.f32.gmra.mrb[0].mxu0 %v2031
    %v2099 = vpop.f32.mrb[0].mxu0
    %v2100 = vadd.f32 %v2026, %v2099
    %v2101 = vpop.f32.mrb[0].mxu0
    %v2102 = vadd.f32 %v2027, %v2101
    %2103 = vdwg.mxu0
    %v2104 = vrot.slane %v404, 2
    %v2105 = vrot.slane %v406, 2
    %v2108 = vadd.f32 %v2100, %v2104
    %v2109 = vadd.f32 %v2102, %v2105
    %v2110 = vxor.u32 %v2108, 2147483648
    %v2111 = vxor.u32 %v2109, 2147483648
    %v2112 = vmul.f32 %v2110, 1.442695
    %v2113 = vpow.pop %v2112
    %v2114 = vmul.f32 %v2111, 1.442695
    %v2115 = vpow.pop %v2114
    %v2116 = vadd.f32 %v2113, 1.0
    %v2117 = vadd.f32 %v2115, 1.0
    %v2118 = vrcp.pop %v2116
    %v2119 = vmul.f32 1.0, %v2118
    %v2120 = vrcp.pop %v2117
    %v2121 = vmul.f32 1.0, %v2120
    %v2122 = vtanh.pop %v2109
    %v2123 = vmul.f32 %v2119, %v2019
    %2125 = vrot.lane.b32.xlu0 %v2122, 64
    %v2126 = vpop.permute.xlu0 %2125
    %v2128 = vmul.f32 %v2119, %v2126
    %2130 = vrot.lane.b32.xlu0 %v2128, 64
    %v2131 = vpop.permute.xlu0 %2130
    %v2133 = vadd.f32 %v2123, %v2131
    %v2134 = vtanh.pop %v2133
    %2136 = vrot.lane.b32.xlu0 %v2134, 64
    %v2137 = vpop.permute.xlu0 %2136
    %v2139 = vmul.f32 %v2121, %v2137
    %v2140 = vrot.slane %v317, 6
    %v2141 = vrot.slane %v319, 6
    %v2145 = vsel %vm219, %v2139, 0
    %2147 = vmatprep.subr.mxu0 %v427
    %2148 = vmatpush1.msra.mxu0 %v426
    %2149 = vmatprep.subr.mxu0 %v429
    %2150 = vmatpush1.msra.mxu0 %v428
    %2151 = vmatprep.subr.mxu0 %v431
    %2152 = vmatpush1.msra.mxu0 %v430
    %2153 = vmatprep.subr.mxu0 %v433
    %2154 = vmatpush1.msra.mxu0 %v432
    %2155 = vmatprep.subr.mxu0 %v435
    %2156 = vmatpush1.msra.mxu0 %v434
    %2157 = vmatprep.subr.mxu0 %v437
    %2158 = vmatpush1.msra.mxu0 %v436
    %2159 = vmatprep.subr.mxu0 %v439
    %2160 = vmatpush1.msra.mxu0 %v438
    %2161 = vmatprep.subr.mxu0 %v441
    %2162 = vmatpush1.msra.mxu0 %v440
    %2163 = vmatprep.subr.mxu0 0.0
    %2164 = vmatpush1.msra.mxu0 0.0
    %2165 = vmatprep.subr.mxu0 0.0
    %2166 = vmatpush1.msra.mxu0 0.0
    %2167 = vmatprep.subr.mxu0 0.0
    %2168 = vmatpush1.msra.mxu0 0.0
    %2169 = vmatprep.subr.mxu0 0.0
    %2170 = vmatpush1.msra.mxu0 0.0
    %2171 = vmatprep.subr.mxu0 0.0
    %2172 = vmatpush1.msra.mxu0 0.0
    %2173 = vmatprep.subr.mxu0 0.0
    %2174 = vmatpush1.msra.mxu0 0.0
    %2175 = vmatprep.subr.mxu0 0.0
    %2176 = vmatpush1.msra.mxu0 0.0
    %2177 = vmatprep.subr.mxu0 0.0
    %2178 = vmatpush1.msra.mxu0 0.0
    %2179 = vmatprep.subr.mxu0 0.0
    %2180 = vmatpush1.msra.mxu0 0.0
    %2181 = vmatprep.subr.mxu0 0.0
    %2182 = vmatpush1.msra.mxu0 0.0
    %2183 = vmatprep.subr.mxu0 0.0
    %2184 = vmatpush1.msra.mxu0 0.0
    %2185 = vmatprep.subr.mxu0 0.0
    %2186 = vmatpush1.msra.mxu0 0.0
    %2187 = vmatprep.subr.mxu0 0.0
    %2188 = vmatpush1.msra.mxu0 0.0
    %2189 = vmatprep.subr.mxu0 0.0
    %2190 = vmatpush1.msra.mxu0 0.0
    %2191 = vmatprep.subr.mxu0 0.0
    %2192 = vmatpush1.msra.mxu0 0.0
    %2193 = vmatprep.subr.mxu0 0.0
    %2194 = vmatpush1.msra.mxu0 0.0
    %2195 = vmatprep.subr.mxu0 0.0
    %2196 = vmatpush1.msra.mxu0 0.0
    %2197 = vmatprep.subr.mxu0 0.0
    %2198 = vmatpush1.msra.mxu0 0.0
    %2199 = vmatprep.subr.mxu0 0.0
    %2200 = vmatpush1.msra.mxu0 0.0
    %2201 = vmatprep.subr.mxu0 0.0
    %2202 = vmatpush1.msra.mxu0 0.0
    %2203 = vmatprep.subr.mxu0 0.0
    %2204 = vmatpush1.msra.mxu0 0.0
    %2205 = vmatprep.subr.mxu0 0.0
    %2206 = vmatpush1.msra.mxu0 0.0
    %2207 = vmatprep.subr.mxu0 0.0
    %2208 = vmatpush1.msra.mxu0 0.0
    %2209 = vmatprep.subr.mxu0 0.0
    %2210 = vmatpush1.msra.mxu0 0.0
    %2211 = vmatprep.mubr.f32.mxu0 0.0
    %2212 = vmatmul.mubr.f32.gmra.mrb[0].mxu0 %v2145
    %v2213 = vpop.f32.mrb[0].mxu0
    %v2214 = vadd.f32 %v2140, %v2213
    %v2215 = vpop.f32.mrb[0].mxu0
    %v2216 = vadd.f32 %v2141, %v2215
    %2217 = vdwg.mxu0
    %v2218 = vadd.f32 %v2214, %v404
    %v2219 = vadd.f32 %v2216, %v406
    %v2220 = vxor.u32 %v2218, 2147483648
    %v2221 = vxor.u32 %v2219, 2147483648
    %v2222 = vmul.f32 %v2220, 1.442695
    %v2223 = vpow.pop %v2222
    %v2224 = vmul.f32 %v2221, 1.442695
    %v2225 = vpow.pop %v2224
    %v2226 = vadd.f32 %v2223, 1.0
    %v2227 = vadd.f32 %v2225, 1.0
    %v2228 = vrcp.pop %v2226
    %v2229 = vmul.f32 1.0, %v2228
    %v2230 = vrcp.pop %v2227
    %v2231 = vmul.f32 1.0, %v2230
    %v2232 = vtanh.pop %v2219
    %v2233 = vmul.f32 %v2229, %v2133
    %2235 = vrot.lane.b32.xlu0 %v2232, 64
    %v2236 = vpop.permute.xlu0 %2235
    %v2238 = vmul.f32 %v2229, %v2236
    %2240 = vrot.lane.b32.xlu0 %v2238, 64
    %v2241 = vpop.permute.xlu0 %2240
    %v2243 = vadd.f32 %v2233, %v2241
    %v2244 = vtanh.pop %v2243
    %2246 = vrot.lane.b32.xlu0 %v2244, 64
    %v2247 = vpop.permute.xlu0 %2246
    %v2249 = vmul.f32 %v2231, %v2247
    %v2250 = vrot.slane %v173, 2
    %v2251 = vrot.slane %v173, 4
    %v2252 = vrot.slane %v173, 6
    %v2253 = vrot.slane %v178, 2
    %v2254 = vrot.slane %v178, 4
    %v2255 = vrot.slane %v178, 6
    %v2256 = vrot.slane %v183, 2
    %v2257 = vrot.slane %v183, 4
    %v2258 = vrot.slane %v183, 6
    %v2259 = vrot.slane %v188, 2
    %v2260 = vrot.slane %v188, 4
    %v2261 = vrot.slane %v188, 6
    %2262 = vrot.lane.b32.xlu0 %v173, 64
    %v2263 = vpop.permute.xlu0 %2262
    %2264 = vrot.lane.b32.xlu0 %v2250, 64
    %v2265 = vpop.permute.xlu0 %2264
    %2266 = vrot.lane.b32.xlu0 %v2251, 64
    %v2267 = vpop.permute.xlu0 %2266
    %2268 = vrot.lane.b32.xlu0 %v2252, 64
    %v2269 = vpop.permute.xlu0 %2268
    %2270 = vrot.lane.b32.xlu0 %v178, 64
    %v2271 = vpop.permute.xlu0 %2270
    %2272 = vrot.lane.b32.xlu0 %v2253, 64
    %v2273 = vpop.permute.xlu0 %2272
    %2274 = vrot.lane.b32.xlu0 %v2254, 64
    %v2275 = vpop.permute.xlu0 %2274
    %2276 = vrot.lane.b32.xlu0 %v2255, 64
    %v2277 = vpop.permute.xlu0 %2276
    %2278 = vrot.lane.b32.xlu0 %v183, 64
    %v2279 = vpop.permute.xlu0 %2278
    %2280 = vrot.lane.b32.xlu0 %v2256, 64
    %v2281 = vpop.permute.xlu0 %2280
    %2282 = vrot.lane.b32.xlu0 %v2257, 64
    %v2283 = vpop.permute.xlu0 %2282
    %2284 = vrot.lane.b32.xlu0 %v2258, 64
    %v2285 = vpop.permute.xlu0 %2284
    %2286 = vrot.lane.b32.xlu0 %v188, 64
    %v2287 = vpop.permute.xlu0 %2286
    %2288 = vrot.lane.b32.xlu0 %v2259, 64
    %v2289 = vpop.permute.xlu0 %2288
    %2290 = vrot.lane.b32.xlu0 %v2260, 64
    %v2291 = vpop.permute.xlu0 %2290
    %2292 = vrot.lane.b32.xlu0 %v2261, 64
    %v2293 = vpop.permute.xlu0 %2292
    %vm2310 = vcmask 261120
    %v2311 = vsel %vm2310, %v553, %v2249
    %v2312 = vsel %vm2310, %v669, %v2139
    %v2313 = vsel %vm2310, %v783, %v2025
    %v2314 = vsel %vm2310, %v893, %v1909
    %v2315 = vsel %vm2310, %v1005, %v1797
    %v2316 = vsel %vm2310, %v1121, %v1687
    %v2317 = vsel %vm2310, %v1235, %v1573
    %v2318 = vsel %vm2310, %v1345, %v1457
    %v2319 = vsel %vm2310, %v1457, %v1345
    %v2320 = vsel %vm2310, %v1573, %v1235
    %v2321 = vsel %vm2310, %v1687, %v1121
    %v2322 = vsel %vm2310, %v1797, %v1005
    %v2323 = vsel %vm2310, %v1909, %v893
    %v2324 = vsel %vm2310, %v2025, %v783
    %v2325 = vsel %vm2310, %v2139, %v669
    %v2326 = vsel %vm2310, %v2249, %v553
    %v2327 = vsel %vm219, %v2311, %v2263
    %v2328 = vsel %vm219, %v2312, %v2265
    %v2329 = vsel %vm219, %v2313, %v2267
    %v2330 = vsel %vm219, %v2314, %v2269
    %v2331 = vsel %vm219, %v2315, %v2271
    %v2332 = vsel %vm219, %v2316, %v2273
    %v2333 = vsel %vm219, %v2317, %v2275
    %v2334 = vsel %vm219, %v2318, %v2277
    %v2335 = vsel %vm219, %v2319, %v2279
    %v2336 = vsel %vm219, %v2320, %v2281
    %v2337 = vsel %vm219, %v2321, %v2283
    %v2338 = vsel %vm219, %v2322, %v2285
    %v2339 = vsel %vm219, %v2323, %v2287
    %v2340 = vsel %vm219, %v2324, %v2289
    %v2341 = vsel %vm219, %v2325, %v2291
    %v2342 = vsel %vm219, %v2326, %v2293
    %v2343 = vld [vmem:[%s6] sm:$0xff]
    %v2344 = vld [vmem:[%s6 + $0x8] sm:$0xff]
    %v2345 = vld [vmem:[%s6 + $0x10] sm:$0xff]
    %v2346 = vld [vmem:[%s6 + $0x18] sm:$0xff]
    %v2347 = vld [vmem:[%s6 + $0x20] sm:$0xff]
    %v2348 = vld [vmem:[%s6 + $0x28] sm:$0xff]
    %v2349 = vld [vmem:[%s6 + $0x30] sm:$0xff]
    %v2350 = vld [vmem:[%s6 + $0x38] sm:$0xff]
    %v2351 = vld [vmem:[%s6 + $0x40] sm:$0xff]
    %v2352 = vld [vmem:[%s6 + $0x48] sm:$0xff]
    %v2353 = vld [vmem:[%s6 + $0x50] sm:$0xff]
    %v2354 = vld [vmem:[%s6 + $0x58] sm:$0xff]
    %v2355 = vld [vmem:[%s6 + $0x60] sm:$0xff]
    %v2356 = vld [vmem:[%s6 + $0x68] sm:$0xff]
    %v2357 = vld [vmem:[%s6 + $0x70] sm:$0xff]
    %v2358 = vld [vmem:[%s6 + $0x78] sm:$0xff]
    %v2359 = vld [vmem:[%s6 + $0x80] sm:$0xff]
    %v2360 = vld [vmem:[%s6 + $0x88] sm:$0xff]
    %v2361 = vld [vmem:[%s6 + $0x90] sm:$0xff]
    %v2362 = vld [vmem:[%s6 + $0x98] sm:$0xff]
    %v2363 = vld [vmem:[%s6 + $0xa0] sm:$0xff]
    %v2364 = vld [vmem:[%s6 + $0xa8] sm:$0xff]
    %v2365 = vld [vmem:[%s6 + $0xb0] sm:$0xff]
    %v2366 = vld [vmem:[%s6 + $0xb8] sm:$0xff]
    %v2367 = vld [vmem:[%s6 + $0xc0] sm:$0xff]
    %v2368 = vld [vmem:[%s6 + $0xc8] sm:$0xff]
    %v2369 = vld [vmem:[%s6 + $0xd0] sm:$0xff]
    %v2370 = vld [vmem:[%s6 + $0xd8] sm:$0xff]
    %v2371 = vld [vmem:[%s6 + $0xe0] sm:$0xff]
    %v2372 = vld [vmem:[%s6 + $0xe8] sm:$0xff]
    %v2373 = vld [vmem:[%s6 + $0xf0] sm:$0xff]
    %v2374 = vld [vmem:[%s6 + $0xf8] sm:$0xff]
    %v2375 = vld [vmem:[%s6 + $0x100] sm:$0xff]
    %v2376 = vld [vmem:[%s6 + $0x108] sm:$0xff]
    %v2377 = vld [vmem:[%s6 + $0x110] sm:$0xff]
    %v2378 = vld [vmem:[%s6 + $0x118] sm:$0xff]
    %v2379 = vld [vmem:[%s6 + $0x120] sm:$0xff]
    %v2380 = vld [vmem:[%s6 + $0x128] sm:$0xff]
    %v2381 = vld [vmem:[%s6 + $0x130] sm:$0xff]
    %v2382 = vld [vmem:[%s6 + $0x138] sm:$0xff]
    %v2383 = vld [vmem:[%s6 + $0x140] sm:$0xff]
    %v2384 = vld [vmem:[%s6 + $0x148] sm:$0xff]
    %v2385 = vld [vmem:[%s6 + $0x150] sm:$0xff]
    %v2386 = vld [vmem:[%s6 + $0x158] sm:$0xff]
    %v2387 = vld [vmem:[%s6 + $0x160] sm:$0xff]
    %v2388 = vld [vmem:[%s6 + $0x168] sm:$0xff]
    %v2389 = vld [vmem:[%s6 + $0x170] sm:$0xff]
    %v2390 = vld [vmem:[%s6 + $0x178] sm:$0xff]
    %v2391 = vld [vmem:[%s6 + $0x180] sm:$0xff]
    %v2392 = vld [vmem:[%s6 + $0x188] sm:$0xff]
    %v2393 = vld [vmem:[%s6 + $0x190] sm:$0xff]
    %v2394 = vld [vmem:[%s6 + $0x198] sm:$0xff]
    %v2395 = vld [vmem:[%s6 + $0x1a0] sm:$0xff]
    %v2396 = vld [vmem:[%s6 + $0x1a8] sm:$0xff]
    %v2397 = vld [vmem:[%s6 + $0x1b0] sm:$0xff]
    %v2398 = vld [vmem:[%s6 + $0x1b8] sm:$0xff]
    %v2399 = vld [vmem:[%s6 + $0x1c0] sm:$0xff]
    %v2400 = vld [vmem:[%s6 + $0x1c8] sm:$0xff]
    %v2401 = vld [vmem:[%s6 + $0x1d0] sm:$0xff]
    %v2402 = vld [vmem:[%s6 + $0x1d8] sm:$0xff]
    %v2403 = vld [vmem:[%s6 + $0x1e0] sm:$0xff]
    %v2404 = vld [vmem:[%s6 + $0x1e8] sm:$0xff]
    %v2405 = vld [vmem:[%s6 + $0x1f0] sm:$0xff]
    %v2406 = vld [vmem:[%s6 + $0x1f8] sm:$0xff]
    %v2407 = vld [vmem:[%s6 + $0x200] sm:$0xff]
    %v2408 = vld [vmem:[%s6 + $0x208] sm:$0xff]
    %v2409 = vld [vmem:[%s6 + $0x210] sm:$0xff]
    %v2410 = vld [vmem:[%s6 + $0x218] sm:$0xff]
    %v2411 = vld [vmem:[%s6 + $0x220] sm:$0xff]
    %v2412 = vld [vmem:[%s6 + $0x228] sm:$0xff]
    %v2413 = vld [vmem:[%s6 + $0x230] sm:$0xff]
    %v2414 = vld [vmem:[%s6 + $0x238] sm:$0xff]
    %v2415 = vld [vmem:[%s6 + $0x240] sm:$0xff]
    %v2416 = vld [vmem:[%s6 + $0x248] sm:$0xff]
    %v2417 = vld [vmem:[%s6 + $0x250] sm:$0xff]
    %v2418 = vld [vmem:[%s6 + $0x258] sm:$0xff]
    %v2419 = vld [vmem:[%s6 + $0x260] sm:$0xff]
    %v2420 = vld [vmem:[%s6 + $0x268] sm:$0xff]
    %v2421 = vld [vmem:[%s6 + $0x270] sm:$0xff]
    %v2422 = vld [vmem:[%s6 + $0x278] sm:$0xff]
    %v2423 = vld [vmem:[%s6 + $0x280] sm:$0xff]
    %v2424 = vld [vmem:[%s6 + $0x288] sm:$0xff]
    %v2425 = vld [vmem:[%s6 + $0x290] sm:$0xff]
    %v2426 = vld [vmem:[%s6 + $0x298] sm:$0xff]
    %v2427 = vld [vmem:[%s6 + $0x2a0] sm:$0xff]
    %v2428 = vld [vmem:[%s6 + $0x2a8] sm:$0xff]
    %v2429 = vld [vmem:[%s6 + $0x2b0] sm:$0xff]
    %v2430 = vld [vmem:[%s6 + $0x2b8] sm:$0xff]
    %v2431 = vld [vmem:[%s6 + $0x2c0] sm:$0xff]
    %v2432 = vld [vmem:[%s6 + $0x2c8] sm:$0xff]
    %v2433 = vld [vmem:[%s6 + $0x2d0] sm:$0xff]
    %v2434 = vld [vmem:[%s6 + $0x2d8] sm:$0xff]
    %v2435 = vld [vmem:[%s6 + $0x2e0] sm:$0xff]
    %v2436 = vld [vmem:[%s6 + $0x2e8] sm:$0xff]
    %v2437 = vld [vmem:[%s6 + $0x2f0] sm:$0xff]
    %v2438 = vld [vmem:[%s6 + $0x2f8] sm:$0xff]
    %v2455 = vcombine.low %v2327, %v2328
    %v2457 = vunpack.c.l.s4 1983009808
    %v2458 = vunpack.c.0.s8 %v2457
    %v2459 = vlaneseq
    %v2460 = vshrl.u32 %v2459, 7
    %v2461 = vsub.s32 %v2458, %v2460
    %v2462 = vrot.slane %v2455, %v2461
    %v2464 = vunpack.c.l.s4 1983009808
    %v2465 = vunpack.c.0.s8 %v2464
    %v2466 = vlaneseq
    %v2467 = vshrl.u32 %v2466, 7
    %v2468 = vsub.s32 %v2465, %v2467
    %v2469 = vrot.slane %v2329, %v2468
    %v2470 = vcombine.low %v2462, %v2469
    %v2471 = vcombine.low %v2328, %v2329
    %v2473 = vunpack.c.l.s4 1983009808
    %v2474 = vunpack.c.0.s8 %v2473
    %v2475 = vlaneseq
    %v2476 = vshrl.u32 %v2475, 7
    %v2477 = vsub.s32 %v2474, %v2476
    %v2478 = vrot.slane %v2471, %v2477
    %v2480 = vunpack.c.l.s4 1983009808
    %v2481 = vunpack.c.0.s8 %v2480
    %v2482 = vlaneseq
    %v2483 = vshrl.u32 %v2482, 7
    %v2484 = vsub.s32 %v2481, %v2483
    %v2485 = vrot.slane %v2330, %v2484
    %v2486 = vcombine.low %v2478, %v2485
    %v2487 = vcombine.low %v2329, %v2330
    %v2489 = vunpack.c.l.s4 1983009808
    %v2490 = vunpack.c.0.s8 %v2489
    %v2491 = vlaneseq
    %v2492 = vshrl.u32 %v2491, 7
    %v2493 = vsub.s32 %v2490, %v2492
    %v2494 = vrot.slane %v2487, %v2493
    %v2496 = vunpack.c.l.s4 1983009808
    %v2497 = vunpack.c.0.s8 %v2496
    %v2498 = vlaneseq
    %v2499 = vshrl.u32 %v2498, 7
    %v2500 = vsub.s32 %v2497, %v2499
    %v2501 = vrot.slane %v2331, %v2500
    %v2502 = vcombine.low %v2494, %v2501
    %v2503 = vcombine.low %v2330, %v2331
    %v2505 = vunpack.c.l.s4 1983009808
    %v2506 = vunpack.c.0.s8 %v2505
    %v2507 = vlaneseq
    %v2508 = vshrl.u32 %v2507, 7
    %v2509 = vsub.s32 %v2506, %v2508
    %v2510 = vrot.slane %v2503, %v2509
    %v2512 = vunpack.c.l.s4 1983009808
    %v2513 = vunpack.c.0.s8 %v2512
    %v2514 = vlaneseq
    %v2515 = vshrl.u32 %v2514, 7
    %v2516 = vsub.s32 %v2513, %v2515
    %v2517 = vrot.slane %v2332, %v2516
    %v2518 = vcombine.low %v2510, %v2517
    %v2519 = vcombine.low %v2331, %v2332
    %v2521 = vunpack.c.l.s4 1983009808
    %v2522 = vunpack.c.0.s8 %v2521
    %v2523 = vlaneseq
    %v2524 = vshrl.u32 %v2523, 7
    %v2525 = vsub.s32 %v2522, %v2524
    %v2526 = vrot.slane %v2519, %v2525
    %v2528 = vunpack.c.l.s4 1983009808
    %v2529 = vunpack.c.0.s8 %v2528
    %v2530 = vlaneseq
    %v2531 = vshrl.u32 %v2530, 7
    %v2532 = vsub.s32 %v2529, %v2531
    %v2533 = vrot.slane %v2333, %v2532
    %v2534 = vcombine.low %v2526, %v2533
    %v2535 = vcombine.low %v2332, %v2333
    %v2537 = vunpack.c.l.s4 1983009808
    %v2538 = vunpack.c.0.s8 %v2537
    %v2539 = vlaneseq
    %v2540 = vshrl.u32 %v2539, 7
    %v2541 = vsub.s32 %v2538, %v2540
    %v2542 = vrot.slane %v2535, %v2541
    %v2544 = vunpack.c.l.s4 1983009808
    %v2545 = vunpack.c.0.s8 %v2544
    %v2546 = vlaneseq
    %v2547 = vshrl.u32 %v2546, 7
    %v2548 = vsub.s32 %v2545, %v2547
    %v2549 = vrot.slane %v2334, %v2548
    %v2550 = vcombine.low %v2542, %v2549
    %v2551 = vcombine.low %v2333, %v2334
    %v2553 = vunpack.c.l.s4 1983009808
    %v2554 = vunpack.c.0.s8 %v2553
    %v2555 = vlaneseq
    %v2556 = vshrl.u32 %v2555, 7
    %v2557 = vsub.s32 %v2554, %v2556
    %v2558 = vrot.slane %v2551, %v2557
    %v2560 = vunpack.c.l.s4 1983009808
    %v2561 = vunpack.c.0.s8 %v2560
    %v2562 = vlaneseq
    %v2563 = vshrl.u32 %v2562, 7
    %v2564 = vsub.s32 %v2561, %v2563
    %v2565 = vrot.slane %v2335, %v2564
    %v2566 = vcombine.low %v2558, %v2565
    %v2567 = vcombine.low %v2334, %v2335
    %v2569 = vunpack.c.l.s4 1983009808
    %v2570 = vunpack.c.0.s8 %v2569
    %v2571 = vlaneseq
    %v2572 = vshrl.u32 %v2571, 7
    %v2573 = vsub.s32 %v2570, %v2572
    %v2574 = vrot.slane %v2567, %v2573
    %v2576 = vunpack.c.l.s4 1983009808
    %v2577 = vunpack.c.0.s8 %v2576
    %v2578 = vlaneseq
    %v2579 = vshrl.u32 %v2578, 7
    %v2580 = vsub.s32 %v2577, %v2579
    %v2581 = vrot.slane %v2336, %v2580
    %v2582 = vcombine.low %v2574, %v2581
    %v2583 = vcombine.low %v2335, %v2336
    %v2585 = vunpack.c.l.s4 1983009808
    %v2586 = vunpack.c.0.s8 %v2585
    %v2587 = vlaneseq
    %v2588 = vshrl.u32 %v2587, 7
    %v2589 = vsub.s32 %v2586, %v2588
    %v2590 = vrot.slane %v2583, %v2589
    %v2592 = vunpack.c.l.s4 1983009808
    %v2593 = vunpack.c.0.s8 %v2592
    %v2594 = vlaneseq
    %v2595 = vshrl.u32 %v2594, 7
    %v2596 = vsub.s32 %v2593, %v2595
    %v2597 = vrot.slane %v2337, %v2596
    %v2598 = vcombine.low %v2590, %v2597
    %v2599 = vcombine.low %v2336, %v2337
    %v2601 = vunpack.c.l.s4 1983009808
    %v2602 = vunpack.c.0.s8 %v2601
    %v2603 = vlaneseq
    %v2604 = vshrl.u32 %v2603, 7
    %v2605 = vsub.s32 %v2602, %v2604
    %v2606 = vrot.slane %v2599, %v2605
    %v2608 = vunpack.c.l.s4 1983009808
    %v2609 = vunpack.c.0.s8 %v2608
    %v2610 = vlaneseq
    %v2611 = vshrl.u32 %v2610, 7
    %v2612 = vsub.s32 %v2609, %v2611
    %v2613 = vrot.slane %v2338, %v2612
    %v2614 = vcombine.low %v2606, %v2613
    %v2615 = vcombine.low %v2337, %v2338
    %v2617 = vunpack.c.l.s4 1983009808
    %v2618 = vunpack.c.0.s8 %v2617
    %v2619 = vlaneseq
    %v2620 = vshrl.u32 %v2619, 7
    %v2621 = vsub.s32 %v2618, %v2620
    %v2622 = vrot.slane %v2615, %v2621
    %v2624 = vunpack.c.l.s4 1983009808
    %v2625 = vunpack.c.0.s8 %v2624
    %v2626 = vlaneseq
    %v2627 = vshrl.u32 %v2626, 7
    %v2628 = vsub.s32 %v2625, %v2627
    %v2629 = vrot.slane %v2339, %v2628
    %v2630 = vcombine.low %v2622, %v2629
    %v2631 = vcombine.low %v2338, %v2339
    %v2633 = vunpack.c.l.s4 1983009808
    %v2634 = vunpack.c.0.s8 %v2633
    %v2635 = vlaneseq
    %v2636 = vshrl.u32 %v2635, 7
    %v2637 = vsub.s32 %v2634, %v2636
    %v2638 = vrot.slane %v2631, %v2637
    %v2640 = vunpack.c.l.s4 1983009808
    %v2641 = vunpack.c.0.s8 %v2640
    %v2642 = vlaneseq
    %v2643 = vshrl.u32 %v2642, 7
    %v2644 = vsub.s32 %v2641, %v2643
    %v2645 = vrot.slane %v2340, %v2644
    %v2646 = vcombine.low %v2638, %v2645
    %v2647 = vcombine.low %v2339, %v2340
    %v2649 = vunpack.c.l.s4 1983009808
    %v2650 = vunpack.c.0.s8 %v2649
    %v2651 = vlaneseq
    %v2652 = vshrl.u32 %v2651, 7
    %v2653 = vsub.s32 %v2650, %v2652
    %v2654 = vrot.slane %v2647, %v2653
    %v2656 = vunpack.c.l.s4 1983009808
    %v2657 = vunpack.c.0.s8 %v2656
    %v2658 = vlaneseq
    %v2659 = vshrl.u32 %v2658, 7
    %v2660 = vsub.s32 %v2657, %v2659
    %v2661 = vrot.slane %v2341, %v2660
    %v2662 = vcombine.low %v2654, %v2661
    %v2663 = vcombine.low %v2340, %v2341
    %v2665 = vunpack.c.l.s4 1983009808
    %v2666 = vunpack.c.0.s8 %v2665
    %v2667 = vlaneseq
    %v2668 = vshrl.u32 %v2667, 7
    %v2669 = vsub.s32 %v2666, %v2668
    %v2670 = vrot.slane %v2663, %v2669
    %v2672 = vunpack.c.l.s4 1983009808
    %v2673 = vunpack.c.0.s8 %v2672
    %v2674 = vlaneseq
    %v2675 = vshrl.u32 %v2674, 7
    %v2676 = vsub.s32 %v2673, %v2675
    %v2677 = vrot.slane %v2342, %v2676
    %v2678 = vcombine.low %v2670, %v2677
    %v2679 = vcombine.low %v2470, %v2486
    %v2680 = vcombine.high %v2470, %v2486
    %v2681 = vcombine.low %v2502, %v2518
    %v2682 = vcombine.high %v2502, %v2518
    %v2684 = vunpack.c.l.s4 1983009808
    %v2685 = vunpack.c.0.s8 %v2684
    %v2686 = vlaneseq
    %v2687 = vshrl.u32 %v2686, 7
    %v2688 = vsub.s32 %v2685, %v2687
    %v2689 = vrot.slane %v2679, %v2688
    %v2691 = vunpack.c.l.s4 1983009808
    %v2692 = vunpack.c.0.s8 %v2691
    %v2693 = vlaneseq
    %v2694 = vshrl.u32 %v2693, 7
    %v2695 = vsub.s32 %v2692, %v2694
    %v2696 = vrot.slane %v2680, %v2695
    %v2698 = vunpack.c.l.s4 1983009808
    %v2699 = vunpack.c.0.s8 %v2698
    %v2700 = vlaneseq
    %v2701 = vshrl.u32 %v2700, 7
    %v2702 = vsub.s32 %v2699, %v2701
    %v2703 = vrot.slane %v2681, %v2702
    %v2705 = vunpack.c.l.s4 1983009808
    %v2706 = vunpack.c.0.s8 %v2705
    %v2707 = vlaneseq
    %v2708 = vshrl.u32 %v2707, 7
    %v2709 = vsub.s32 %v2706, %v2708
    %v2710 = vrot.slane %v2682, %v2709
    %v2711 = vcombine.low %v2689, %v2703
    %v2712 = vcombine.high %v2689, %v2703
    %v2713 = vcombine.low %v2696, %v2710
    %v2714 = vcombine.low %v2534, %v2550
    %v2715 = vcombine.high %v2534, %v2550
    %v2716 = vcombine.low %v2566, %v2582
    %v2717 = vcombine.high %v2566, %v2582
    %v2719 = vunpack.c.l.s4 1983009808
    %v2720 = vunpack.c.0.s8 %v2719
    %v2721 = vlaneseq
    %v2722 = vshrl.u32 %v2721, 7
    %v2723 = vsub.s32 %v2720, %v2722
    %v2724 = vrot.slane %v2714, %v2723
    %v2726 = vunpack.c.l.s4 1983009808
    %v2727 = vunpack.c.0.s8 %v2726
    %v2728 = vlaneseq
    %v2729 = vshrl.u32 %v2728, 7
    %v2730 = vsub.s32 %v2727, %v2729
    %v2731 = vrot.slane %v2715, %v2730
    %v2733 = vunpack.c.l.s4 1983009808
    %v2734 = vunpack.c.0.s8 %v2733
    %v2735 = vlaneseq
    %v2736 = vshrl.u32 %v2735, 7
    %v2737 = vsub.s32 %v2734, %v2736
    %v2738 = vrot.slane %v2716, %v2737
    %v2740 = vunpack.c.l.s4 1983009808
    %v2741 = vunpack.c.0.s8 %v2740
    %v2742 = vlaneseq
    %v2743 = vshrl.u32 %v2742, 7
    %v2744 = vsub.s32 %v2741, %v2743
    %v2745 = vrot.slane %v2717, %v2744
    %v2746 = vcombine.low %v2724, %v2738
    %v2747 = vcombine.high %v2724, %v2738
    %v2748 = vcombine.low %v2731, %v2745
    %v2749 = vcombine.low %v2598, %v2614
    %v2750 = vcombine.high %v2598, %v2614
    %v2751 = vcombine.low %v2630, %v2646
    %v2752 = vcombine.high %v2630, %v2646
    %v2754 = vunpack.c.l.s4 1983009808
    %v2755 = vunpack.c.0.s8 %v2754
    %v2756 = vlaneseq
    %v2757 = vshrl.u32 %v2756, 7
    %v2758 = vsub.s32 %v2755, %v2757
    %v2759 = vrot.slane %v2749, %v2758
    %v2761 = vunpack.c.l.s4 1983009808
    %v2762 = vunpack.c.0.s8 %v2761
    %v2763 = vlaneseq
    %v2764 = vshrl.u32 %v2763, 7
    %v2765 = vsub.s32 %v2762, %v2764
    %v2766 = vrot.slane %v2750, %v2765
    %v2768 = vunpack.c.l.s4 1983009808
    %v2769 = vunpack.c.0.s8 %v2768
    %v2770 = vlaneseq
    %v2771 = vshrl.u32 %v2770, 7
    %v2772 = vsub.s32 %v2769, %v2771
    %v2773 = vrot.slane %v2751, %v2772
    %v2775 = vunpack.c.l.s4 1983009808
    %v2776 = vunpack.c.0.s8 %v2775
    %v2777 = vlaneseq
    %v2778 = vshrl.u32 %v2777, 7
    %v2779 = vsub.s32 %v2776, %v2778
    %v2780 = vrot.slane %v2752, %v2779
    %v2781 = vcombine.low %v2759, %v2773
    %v2782 = vcombine.high %v2759, %v2773
    %v2783 = vcombine.low %v2766, %v2780
    %v2784 = vcombine.low %v2662, %v2678
    %v2785 = vcombine.high %v2662, %v2678
    %v2787 = vunpack.c.l.s4 1983009808
    %v2788 = vunpack.c.0.s8 %v2787
    %v2789 = vlaneseq
    %v2790 = vshrl.u32 %v2789, 7
    %v2791 = vsub.s32 %v2788, %v2790
    %v2792 = vrot.slane %v2784, %v2791
    %v2794 = vunpack.c.l.s4 1983009808
    %v2795 = vunpack.c.0.s8 %v2794
    %v2796 = vlaneseq
    %v2797 = vshrl.u32 %v2796, 7
    %v2798 = vsub.s32 %v2795, %v2797
    %v2799 = vrot.slane %v2785, %v2798
    %v2800 = vcombine.high %v2792, %v2792
    %2813 = vmatprep.subr.mxu0 %v2344
    %2814 = vmatpush1.msra.mxu0 %v2343
    %2815 = vmatprep.subr.mxu0 %v2346
    %2816 = vmatpush1.msra.mxu0 %v2345
    %2817 = vmatprep.subr.mxu0 %v2348
    %2818 = vmatpush1.msra.mxu0 %v2347
    %2819 = vmatprep.subr.mxu0 %v2350
    %2820 = vmatpush1.msra.mxu0 %v2349
    %2821 = vmatprep.subr.mxu0 %v2352
    %2822 = vmatpush1.msra.mxu0 %v2351
    %2823 = vmatprep.subr.mxu0 %v2354
    %2824 = vmatpush1.msra.mxu0 %v2353
    %2825 = vmatprep.subr.mxu0 %v2356
    %2826 = vmatpush1.msra.mxu0 %v2355
    %2827 = vmatprep.subr.mxu0 %v2358
    %2828 = vmatpush1.msra.mxu0 %v2357
    %2829 = vmatprep.subr.mxu0 %v2360
    %2830 = vmatpush1.msra.mxu0 %v2359
    %2831 = vmatprep.subr.mxu0 %v2362
    %2832 = vmatpush1.msra.mxu0 %v2361
    %2833 = vmatprep.subr.mxu0 %v2364
    %2834 = vmatpush1.msra.mxu0 %v2363
    %2835 = vmatprep.subr.mxu0 %v2366
    %2836 = vmatpush1.msra.mxu0 %v2365
    %2837 = vmatprep.subr.mxu0 %v2368
    %2838 = vmatpush1.msra.mxu0 %v2367
    %2839 = vmatprep.subr.mxu0 %v2370
    %2840 = vmatpush1.msra.mxu0 %v2369
    %2841 = vmatprep.subr.mxu0 %v2372
    %2842 = vmatpush1.msra.mxu0 %v2371
    %2843 = vmatprep.subr.mxu0 %v2374
    %2844 = vmatpush1.msra.mxu0 %v2373
    %2845 = vmatprep.subr.mxu0 %v2376
    %2846 = vmatpush1.msra.mxu0 %v2375
    %2847 = vmatprep.subr.mxu0 %v2378
    %2848 = vmatpush1.msra.mxu0 %v2377
    %2849 = vmatprep.subr.mxu0 %v2380
    %2850 = vmatpush1.msra.mxu0 %v2379
    %2851 = vmatprep.subr.mxu0 %v2382
    %2852 = vmatpush1.msra.mxu0 %v2381
    %2853 = vmatprep.subr.mxu0 %v2384
    %2854 = vmatpush1.msra.mxu0 %v2383
    %2855 = vmatprep.subr.mxu0 %v2386
    %2856 = vmatpush1.msra.mxu0 %v2385
    %2857 = vmatprep.subr.mxu0 %v2388
    %2858 = vmatpush1.msra.mxu0 %v2387
    %2859 = vmatprep.subr.mxu0 %v2390
    %2860 = vmatpush1.msra.mxu0 %v2389
    %2861 = vmatprep.subr.mxu0 %v2392
    %2862 = vmatpush1.msra.mxu0 %v2391
    %2863 = vmatprep.subr.mxu0 %v2394
    %2864 = vmatpush1.msra.mxu0 %v2393
    %2865 = vmatprep.subr.mxu0 %v2396
    %2866 = vmatpush1.msra.mxu0 %v2395
    %2867 = vmatprep.subr.mxu0 %v2398
    %2868 = vmatpush1.msra.mxu0 %v2397
    %2869 = vmatprep.subr.mxu0 %v2400
    %2870 = vmatpush1.msra.mxu0 %v2399
    %2871 = vmatprep.subr.mxu0 %v2402
    %2872 = vmatpush1.msra.mxu0 %v2401
    %2873 = vmatprep.subr.mxu0 %v2404
    %2874 = vmatpush1.msra.mxu0 %v2403
    %2875 = vmatprep.subr.mxu0 %v2406
    %2876 = vmatpush1.msra.mxu0 %v2405
    %2877 = vmatprep.mubr.f32.mxu0 %v2712
    %2878 = vmatmul.mubr.f32.gmra.mrb[0].mxu0 %v2711
    %v2879 = vpop.f32.mrb[0].mxu0
    %v2880 = vadd.f32 0.0, %v2879
    %v2881 = vpop.f32.mrb[0].mxu0
    %v2882 = vadd.f32 0.0, %v2881
    %2883 = vmatprep.mubr.f32.mxu0 %v2747
    %2884 = vmatmul.mubr.f32.gmra.mrb[0].mxu0 %v2746
    %v2885 = vpop.f32.mrb[0].mxu0
    %v2886 = vadd.f32 0.0, %v2885
    %v2887 = vpop.f32.mrb[0].mxu0
    %v2888 = vadd.f32 0.0, %v2887
    %2889 = vmatprep.mubr.f32.mxu0 %v2782
    %2890 = vmatmul.mubr.f32.gmra.mrb[0].mxu0 %v2781
    %v2891 = vpop.f32.mrb[0].mxu0
    %v2892 = vadd.f32 0.0, %v2891
    %v2893 = vpop.f32.mrb[0].mxu0
    %v2894 = vadd.f32 0.0, %v2893
    %2895 = vmatprep.mubr.f32.mxu0 %v2800
    %2896 = vmatmul.mubr.f32.gmra.mrb[0].mxu0 %v2792
    %v2897 = vpop.f32.mrb[0].mxu0
    %v2898 = vadd.f32 0.0, %v2897
    %v2899 = vpop.f32.mrb[0].mxu0
    %v2900 = vadd.f32 0.0, %v2899
    %2901 = vdwg.mxu0
    %2902 = vmatprep.subr.mxu0 %v2408
    %2903 = vmatpush1.msra.mxu0 %v2407
    %2904 = vmatprep.subr.mxu0 %v2410
    %2905 = vmatpush1.msra.mxu0 %v2409
    %2906 = vmatprep.subr.mxu0 %v2412
    %2907 = vmatpush1.msra.mxu0 %v2411
    %2908 = vmatprep.subr.mxu0 %v2414
    %2909 = vmatpush1.msra.mxu0 %v2413
    %2910 = vmatprep.subr.mxu0 %v2416
    %2911 = vmatpush1.msra.mxu0 %v2415
    %2912 = vmatprep.subr.mxu0 %v2418
    %2913 = vmatpush1.msra.mxu0 %v2417
    %2914 = vmatprep.subr.mxu0 %v2420
    %2915 = vmatpush1.msra.mxu0 %v2419
    %2916 = vmatprep.subr.mxu0 %v2422
    %2917 = vmatpush1.msra.mxu0 %v2421
    %2918 = vmatprep.subr.mxu0 %v2424
    %2919 = vmatpush1.msra.mxu0 %v2423
    %2920 = vmatprep.subr.mxu0 %v2426
    %2921 = vmatpush1.msra.mxu0 %v2425
    %2922 = vmatprep.subr.mxu0 %v2428
    %2923 = vmatpush1.msra.mxu0 %v2427
    %2924 = vmatprep.subr.mxu0 %v2430
    %2925 = vmatpush1.msra.mxu0 %v2429
    %2926 = vmatprep.subr.mxu0 %v2432
    %2927 = vmatpush1.msra.mxu0 %v2431
    %2928 = vmatprep.subr.mxu0 %v2434
    %2929 = vmatpush1.msra.mxu0 %v2433
    %2930 = vmatprep.subr.mxu0 %v2436
    %2931 = vmatpush1.msra.mxu0 %v2435
    %2932 = vmatprep.subr.mxu0 %v2438
    %2933 = vmatpush1.msra.mxu0 %v2437
    %2934 = vmatprep.subr.mxu0 0.0
    %2935 = vmatpush1.msra.mxu0 0.0
    %2936 = vmatprep.subr.mxu0 0.0
    %2937 = vmatpush1.msra.mxu0 0.0
    %2938 = vmatprep.subr.mxu0 0.0
    %2939 = vmatpush1.msra.mxu0 0.0
    %2940 = vmatprep.subr.mxu0 0.0
    %2941 = vmatpush1.msra.mxu0 0.0
    %2942 = vmatprep.subr.mxu0 0.0
    %2943 = vmatpush1.msra.mxu0 0.0
    %2944 = vmatprep.subr.mxu0 0.0
    %2945 = vmatpush1.msra.mxu0 0.0
    %2946 = vmatprep.subr.mxu0 0.0
    %2947 = vmatpush1.msra.mxu0 0.0
    %2948 = vmatprep.subr.mxu0 0.0
    %2949 = vmatpush1.msra.mxu0 0.0
    %2950 = vmatprep.subr.mxu0 0.0
    %2951 = vmatpush1.msra.mxu0 0.0
    %2952 = vmatprep.subr.mxu0 0.0
    %2953 = vmatpush1.msra.mxu0 0.0
    %2954 = vmatprep.subr.mxu0 0.0
    %2955 = vmatpush1.msra.mxu0 0.0
    %2956 = vmatprep.subr.mxu0 0.0
    %2957 = vmatpush1.msra.mxu0 0.0
    %2958 = vmatprep.subr.mxu0 0.0
    %2959 = vmatpush1.msra.mxu0 0.0
    %2960 = vmatprep.subr.mxu0 0.0
    %2961 = vmatpush1.msra.mxu0 0.0
    %2962 = vmatprep.subr.mxu0 0.0
    %2963 = vmatpush1.msra.mxu0 0.0
    %2964 = vmatprep.subr.mxu0 0.0
    %2965 = vmatpush1.msra.mxu0 0.0
    %2966 = vmatprep.mubr.f32.mxu0 0.0
    %2967 = vmatmul.mubr.f32.gmra.mrb[0].mxu0 %v2713
    %v2968 = vpop.f32.mrb[0].mxu0
    %v2969 = vadd.f32 %v2880, %v2968
    %v2970 = vpop.f32.mrb[0].mxu0
    %v2971 = vadd.f32 %v2882, %v2970
    %2972 = vmatprep.mubr.f32.mxu0 0.0
    %2973 = vmatmul.mubr.f32.gmra.mrb[0].mxu0 %v2748
    %v2974 = vpop.f32.mrb[0].mxu0
    %v2975 = vadd.f32 %v2886, %v2974
    %v2976 = vpop.f32.mrb[0].mxu0
    %v2977 = vadd.f32 %v2888, %v2976
    %2978 = vmatprep.mubr.f32.mxu0 0.0
    %2979 = vmatmul.mubr.f32.gmra.mrb[0].mxu0 %v2783
    %v2980 = vpop.f32.mrb[0].mxu0
    %v2981 = vadd.f32 %v2892, %v2980
    %v2982 = vpop.f32.mrb[0].mxu0
    %v2983 = vadd.f32 %v2894, %v2982
    %2984 = vmatprep.mubr.f32.mxu0 0.0
    %2985 = vmatmul.mubr.f32.gmra.mrb[0].mxu0 %v2799
    %v2986 = vpop.f32.mrb[0].mxu0
    %v2987 = vadd.f32 %v2898, %v2986
    %v2988 = vpop.f32.mrb[0].mxu0
    %v2989 = vadd.f32 %v2900, %v2988
    %2990 = vdwg.mxu0
    %v2999 = vcombine.low %v2969, %v2971
    %v3000 = vcombine.high %v2969, %v2971
    %v3002 = vunpack.c.l.s4 1983009808
    %v3003 = vunpack.c.0.s8 %v3002
    %v3004 = vlaneseq
    %v3005 = vshrl.u32 %v3004, 7
    %v3006 = vsub.s32 %v3003, %v3005
    %v3007 = vrot.slane %v2999, %v3006
    %v3009 = vunpack.c.l.s4 1983009808
    %v3010 = vunpack.c.0.s8 %v3009
    %v3011 = vlaneseq
    %v3012 = vshrl.u32 %v3011, 7
    %v3013 = vsub.s32 %v3010, %v3012
    %v3014 = vrot.slane %v3000, %v3013
    %v3015 = vcombine.high %v3007, %v3007
    %v3016 = vcombine.high %v3014, %v3014
    %v3017 = vcombine.low %v2975, %v2977
    %v3018 = vcombine.high %v2975, %v2977
    %v3020 = vunpack.c.l.s4 1983009808
    %v3021 = vunpack.c.0.s8 %v3020
    %v3022 = vlaneseq
    %v3023 = vshrl.u32 %v3022, 7
    %v3024 = vsub.s32 %v3021, %v3023
    %v3025 = vrot.slane %v3017, %v3024
    %v3027 = vunpack.c.l.s4 1983009808
    %v3028 = vunpack.c.0.s8 %v3027
    %v3029 = vlaneseq
    %v3030 = vshrl.u32 %v3029, 7
    %v3031 = vsub.s32 %v3028, %v3030
    %v3032 = vrot.slane %v3018, %v3031
    %v3033 = vcombine.high %v3025, %v3025
    %v3034 = vcombine.high %v3032, %v3032
    %v3035 = vcombine.low %v2981, %v2983
    %v3036 = vcombine.high %v2981, %v2983
    %v3038 = vunpack.c.l.s4 1983009808
    %v3039 = vunpack.c.0.s8 %v3038
    %v3040 = vlaneseq
    %v3041 = vshrl.u32 %v3040, 7
    %v3042 = vsub.s32 %v3039, %v3041
    %v3043 = vrot.slane %v3035, %v3042
    %v3045 = vunpack.c.l.s4 1983009808
    %v3046 = vunpack.c.0.s8 %v3045
    %v3047 = vlaneseq
    %v3048 = vshrl.u32 %v3047, 7
    %v3049 = vsub.s32 %v3046, %v3048
    %v3050 = vrot.slane %v3036, %v3049
    %v3051 = vcombine.high %v3043, %v3043
    %v3052 = vcombine.high %v3050, %v3050
    %v3053 = vcombine.low %v2987, %v2989
    %v3055 = vunpack.c.l.s4 1983009808
    %v3056 = vunpack.c.0.s8 %v3055
    %v3057 = vlaneseq
    %v3058 = vshrl.u32 %v3057, 7
    %v3059 = vsub.s32 %v3056, %v3058
    %v3060 = vrot.slane %v3053, %v3059
    %v3061 = vcombine.high %v3060, %v3060
    %v3077 = vunpack.c.l.s4 1983009808
    %v3078 = vunpack.c.0.s8 %v3077
    %v3079 = vlaneseq
    %v3080 = vshrl.u32 %v3079, 7
    %v3081 = vsub.s32 %v3078, %v3080
    %v3082 = vrot.slane %v3007, %v3081
    %v3083 = vcombine.high %v3082, %v3082
    %v3085 = vunpack.c.l.s4 1983009808
    %v3086 = vunpack.c.0.s8 %v3085
    %v3087 = vlaneseq
    %v3088 = vshrl.u32 %v3087, 7
    %v3089 = vsub.s32 %v3086, %v3088
    %v3090 = vrot.slane %v3015, %v3089
    %v3091 = vcombine.high %v3090, %v3090
    %v3093 = vunpack.c.l.s4 1983009808
    %v3094 = vunpack.c.0.s8 %v3093
    %v3095 = vlaneseq
    %v3096 = vshrl.u32 %v3095, 7
    %v3097 = vsub.s32 %v3094, %v3096
    %v3098 = vrot.slane %v3014, %v3097
    %v3099 = vcombine.high %v3098, %v3098
    %v3101 = vunpack.c.l.s4 1983009808
    %v3102 = vunpack.c.0.s8 %v3101
    %v3103 = vlaneseq
    %v3104 = vshrl.u32 %v3103, 7
    %v3105 = vsub.s32 %v3102, %v3104
    %v3106 = vrot.slane %v3016, %v3105
    %v3107 = vcombine.high %v3106, %v3106
    %v3109 = vunpack.c.l.s4 1983009808
    %v3110 = vunpack.c.0.s8 %v3109
    %v3111 = vlaneseq
    %v3112 = vshrl.u32 %v3111, 7
    %v3113 = vsub.s32 %v3110, %v3112
    %v3114 = vrot.slane %v3025, %v3113
    %v3115 = vcombine.high %v3114, %v3114
    %v3117 = vunpack.c.l.s4 1983009808
    %v3118 = vunpack.c.0.s8 %v3117
    %v3119 = vlaneseq
    %v3120 = vshrl.u32 %v3119, 7
    %v3121 = vsub.s32 %v3118, %v3120
    %v3122 = vrot.slane %v3033, %v3121
    %v3123 = vcombine.high %v3122, %v3122
    %v3125 = vunpack.c.l.s4 1983009808
    %v3126 = vunpack.c.0.s8 %v3125
    %v3127 = vlaneseq
    %v3128 = vshrl.u32 %v3127, 7
    %v3129 = vsub.s32 %v3126, %v3128
    %v3130 = vrot.slane %v3032, %v3129
    %v3131 = vcombine.high %v3130, %v3130
    %v3133 = vunpack.c.l.s4 1983009808
    %v3134 = vunpack.c.0.s8 %v3133
    %v3135 = vlaneseq
    %v3136 = vshrl.u32 %v3135, 7
    %v3137 = vsub.s32 %v3134, %v3136
    %v3138 = vrot.slane %v3034, %v3137
    %v3139 = vcombine.high %v3138, %v3138
    %v3141 = vunpack.c.l.s4 1983009808
    %v3142 = vunpack.c.0.s8 %v3141
    %v3143 = vlaneseq
    %v3144 = vshrl.u32 %v3143, 7
    %v3145 = vsub.s32 %v3142, %v3144
    %v3146 = vrot.slane %v3043, %v3145
    %v3147 = vcombine.high %v3146, %v3146
    %v3149 = vunpack.c.l.s4 1983009808
    %v3150 = vunpack.c.0.s8 %v3149
    %v3151 = vlaneseq
    %v3152 = vshrl.u32 %v3151, 7
    %v3153 = vsub.s32 %v3150, %v3152
    %v3154 = vrot.slane %v3051, %v3153
    %v3155 = vcombine.high %v3154, %v3154
    %v3157 = vunpack.c.l.s4 1983009808
    %v3158 = vunpack.c.0.s8 %v3157
    %v3159 = vlaneseq
    %v3160 = vshrl.u32 %v3159, 7
    %v3161 = vsub.s32 %v3158, %v3160
    %v3162 = vrot.slane %v3050, %v3161
    %v3163 = vcombine.high %v3162, %v3162
    %v3165 = vunpack.c.l.s4 1983009808
    %v3166 = vunpack.c.0.s8 %v3165
    %v3167 = vlaneseq
    %v3168 = vshrl.u32 %v3167, 7
    %v3169 = vsub.s32 %v3166, %v3168
    %v3170 = vrot.slane %v3052, %v3169
    %v3171 = vcombine.high %v3170, %v3170
    %v3173 = vunpack.c.l.s4 1983009808
    %v3174 = vunpack.c.0.s8 %v3173
    %v3175 = vlaneseq
    %v3176 = vshrl.u32 %v3175, 7
    %v3177 = vsub.s32 %v3174, %v3176
    %v3178 = vrot.slane %v3060, %v3177
    %v3179 = vcombine.high %v3178, %v3178
    %v3181 = vunpack.c.l.s4 1983009808
    %v3182 = vunpack.c.0.s8 %v3181
    %v3183 = vlaneseq
    %v3184 = vshrl.u32 %v3183, 7
    %v3185 = vsub.s32 %v3182, %v3184
    %v3186 = vrot.slane %v3061, %v3185
    %v3187 = vcombine.high %v3186, %v3186
    %vm3216 = vcmask 1041408
    %v3217 = vsel %vm3216, %v3082, 0.0
    %v3218 = vsel %vm3216, %v3090, 0.0
    %v3219 = vadd.f32 %v3217, %v3218
    %v3220 = vsel %vm3216, %v3098, 0.0
    %v3221 = vadd.f32 %v3219, %v3220
    %v3222 = vsel %vm3216, %v3106, 0.0
    %v3223 = vadd.f32 %v3221, %v3222
    %v3224 = vsel %vm3216, %v3114, 0.0
    %v3225 = vadd.f32 %v3223, %v3224
    %v3226 = vsel %vm3216, %v3122, 0.0
    %v3227 = vadd.f32 %v3225, %v3226
    %v3228 = vsel %vm3216, %v3130, 0.0
    %v3229 = vadd.f32 %v3227, %v3228
    %v3230 = vsel %vm3216, %v3138, 0.0
    %v3231 = vadd.f32 %v3229, %v3230
    %v3232 = vsel %vm3216, %v3146, 0.0
    %v3233 = vadd.f32 %v3231, %v3232
    %v3234 = vsel %vm3216, %v3154, 0.0
    %v3235 = vadd.f32 %v3233, %v3234
    %v3236 = vsel %vm3216, %v3162, 0.0
    %v3237 = vadd.f32 %v3235, %v3236
    %v3238 = vsel %vm3216, %v3170, 0.0
    %v3239 = vadd.f32 %v3237, %v3238
    %v3240 = vsel %vm3216, %v3178, 0.0
    %v3241 = vadd.f32 %v3239, %v3240
    %v3242 = vsel %vm3216, %v3186, 0.0
    %v3243 = vadd.f32 %v3241, %v3242
    %v3244 = vrot.slane %v3243, 4
    %v3245 = vadd.f32 %v3243, %v3244
    %v3246 = vrot.slane %v3245, 2
    %v3247 = vadd.f32 %v3245, %v3246
    %v3248 = vrot.slane %v3247, 1
    %v3249 = vadd.f32 %v3247, %v3248
    %v3250 = vsel %vm3216, %v3083, 0.0
    %v3251 = vsel %vm3216, %v3091, 0.0
    %v3252 = vadd.f32 %v3250, %v3251
    %v3253 = vsel %vm3216, %v3099, 0.0
    %v3254 = vadd.f32 %v3252, %v3253
    %v3255 = vsel %vm3216, %v3107, 0.0
    %v3256 = vadd.f32 %v3254, %v3255
    %v3257 = vsel %vm3216, %v3115, 0.0
    %v3258 = vadd.f32 %v3256, %v3257
    %v3259 = vsel %vm3216, %v3123, 0.0
    %v3260 = vadd.f32 %v3258, %v3259
    %v3261 = vsel %vm3216, %v3131, 0.0
    %v3262 = vadd.f32 %v3260, %v3261
    %v3263 = vsel %vm3216, %v3139, 0.0
    %v3264 = vadd.f32 %v3262, %v3263
    %v3265 = vsel %vm3216, %v3147, 0.0
    %v3266 = vadd.f32 %v3264, %v3265
    %v3267 = vsel %vm3216, %v3155, 0.0
    %v3268 = vadd.f32 %v3266, %v3267
    %v3269 = vsel %vm3216, %v3163, 0.0
    %v3270 = vadd.f32 %v3268, %v3269
    %v3271 = vsel %vm3216, %v3171, 0.0
    %v3272 = vadd.f32 %v3270, %v3271
    %v3273 = vsel %vm3216, %v3179, 0.0
    %v3274 = vadd.f32 %v3272, %v3273
    %v3275 = vsel %vm3216, %v3187, 0.0
    %v3276 = vadd.f32 %v3274, %v3275
    %v3277 = vrot.slane %v3276, 4
    %v3278 = vadd.f32 %v3276, %v3277
    %v3279 = vrot.slane %v3278, 2
    %v3280 = vadd.f32 %v3278, %v3279
    %v3281 = vrot.slane %v3280, 1
    %v3282 = vadd.f32 %v3280, %v3281
    %v3283 = vrcp.pop 28.0
    %v3284 = vmul.f32 %v3249, %v3283
    %v3285 = vmul.f32 %v3282, %v3283
    %v3286 = vmul.f32 %v3007, %v3007
    %v3287 = vmul.f32 %v3015, %v3015
    %v3288 = vmul.f32 %v3014, %v3014
    %v3289 = vmul.f32 %v3016, %v3016
    %v3290 = vmul.f32 %v3025, %v3025
    %v3291 = vmul.f32 %v3033, %v3033
    %v3292 = vmul.f32 %v3032, %v3032
    %v3293 = vmul.f32 %v3034, %v3034
    %v3294 = vmul.f32 %v3043, %v3043
    %v3295 = vmul.f32 %v3051, %v3051
    %v3296 = vmul.f32 %v3050, %v3050
    %v3297 = vmul.f32 %v3052, %v3052
    %v3298 = vmul.f32 %v3060, %v3060
    %v3299 = vmul.f32 %v3061, %v3061
    %v3315 = vunpack.c.l.s4 1983009808
    %v3316 = vunpack.c.0.s8 %v3315
    %v3317 = vlaneseq
    %v3318 = vshrl.u32 %v3317, 7
    %v3319 = vsub.s32 %v3316, %v3318
    %v3320 = vrot.slane %v3286, %v3319
    %v3321 = vcombine.high %v3320, %v3320
    %v3323 = vunpack.c.l.s4 1983009808
    %v3324 = vunpack.c.0.s8 %v3323
    %v3325 = vlaneseq
    %v3326 = vshrl.u32 %v3325, 7
    %v3327 = vsub.s32 %v3324, %v3326
    %v3328 = vrot.slane %v3287, %v3327
    %v3329 = vcombine.high %v3328, %v3328
    %v3331 = vunpack.c.l.s4 1983009808
    %v3332 = vunpack.c.0.s8 %v3331
    %v3333 = vlaneseq
    %v3334 = vshrl.u32 %v3333, 7
    %v3335 = vsub.s32 %v3332, %v3334
    %v3336 = vrot.slane %v3288, %v3335
    %v3337 = vcombine.high %v3336, %v3336
    %v3339 = vunpack.c.l.s4 1983009808
    %v3340 = vunpack.c.0.s8 %v3339
    %v3341 = vlaneseq
    %v3342 = vshrl.u32 %v3341, 7
    %v3343 = vsub.s32 %v3340, %v3342
    %v3344 = vrot.slane %v3289, %v3343
    %v3345 = vcombine.high %v3344, %v3344
    %v3347 = vunpack.c.l.s4 1983009808
    %v3348 = vunpack.c.0.s8 %v3347
    %v3349 = vlaneseq
    %v3350 = vshrl.u32 %v3349, 7
    %v3351 = vsub.s32 %v3348, %v3350
    %v3352 = vrot.slane %v3290, %v3351
    %v3353 = vcombine.high %v3352, %v3352
    %v3355 = vunpack.c.l.s4 1983009808
    %v3356 = vunpack.c.0.s8 %v3355
    %v3357 = vlaneseq
    %v3358 = vshrl.u32 %v3357, 7
    %v3359 = vsub.s32 %v3356, %v3358
    %v3360 = vrot.slane %v3291, %v3359
    %v3361 = vcombine.high %v3360, %v3360
    %v3363 = vunpack.c.l.s4 1983009808
    %v3364 = vunpack.c.0.s8 %v3363
    %v3365 = vlaneseq
    %v3366 = vshrl.u32 %v3365, 7
    %v3367 = vsub.s32 %v3364, %v3366
    %v3368 = vrot.slane %v3292, %v3367
    %v3369 = vcombine.high %v3368, %v3368
    %v3371 = vunpack.c.l.s4 1983009808
    %v3372 = vunpack.c.0.s8 %v3371
    %v3373 = vlaneseq
    %v3374 = vshrl.u32 %v3373, 7
    %v3375 = vsub.s32 %v3372, %v3374
    %v3376 = vrot.slane %v3293, %v3375
    %v3377 = vcombine.high %v3376, %v3376
    %v3379 = vunpack.c.l.s4 1983009808
    %v3380 = vunpack.c.0.s8 %v3379
    %v3381 = vlaneseq
    %v3382 = vshrl.u32 %v3381, 7
    %v3383 = vsub.s32 %v3380, %v3382
    %v3384 = vrot.slane %v3294, %v3383
    %v3385 = vcombine.high %v3384, %v3384
    %v3387 = vunpack.c.l.s4 1983009808
    %v3388 = vunpack.c.0.s8 %v3387
    %v3389 = vlaneseq
    %v3390 = vshrl.u32 %v3389, 7
    %v3391 = vsub.s32 %v3388, %v3390
    %v3392 = vrot.slane %v3295, %v3391
    %v3393 = vcombine.high %v3392, %v3392
    %v3395 = vunpack.c.l.s4 1983009808
    %v3396 = vunpack.c.0.s8 %v3395
    %v3397 = vlaneseq
    %v3398 = vshrl.u32 %v3397, 7
    %v3399 = vsub.s32 %v3396, %v3398
    %v3400 = vrot.slane %v3296, %v3399
    %v3401 = vcombine.high %v3400, %v3400
    %v3403 = vunpack.c.l.s4 1983009808
    %v3404 = vunpack.c.0.s8 %v3403
    %v3405 = vlaneseq
    %v3406 = vshrl.u32 %v3405, 7
    %v3407 = vsub.s32 %v3404, %v3406
    %v3408 = vrot.slane %v3297, %v3407
    %v3409 = vcombine.high %v3408, %v3408
    %v3411 = vunpack.c.l.s4 1983009808
    %v3412 = vunpack.c.0.s8 %v3411
    %v3413 = vlaneseq
    %v3414 = vshrl.u32 %v3413, 7
    %v3415 = vsub.s32 %v3412, %v3414
    %v3416 = vrot.slane %v3298, %v3415
    %v3417 = vcombine.high %v3416, %v3416
    %v3419 = vunpack.c.l.s4 1983009808
    %v3420 = vunpack.c.0.s8 %v3419
    %v3421 = vlaneseq
    %v3422 = vshrl.u32 %v3421, 7
    %v3423 = vsub.s32 %v3420, %v3422
    %v3424 = vrot.slane %v3299, %v3423
    %v3425 = vcombine.high %v3424, %v3424
    %v3454 = vsel %vm3216, %v3320, 0.0
    %v3455 = vsel %vm3216, %v3328, 0.0
    %v3456 = vadd.f32 %v3454, %v3455
    %v3457 = vsel %vm3216, %v3336, 0.0
    %v3458 = vadd.f32 %v3456, %v3457
    %v3459 = vsel %vm3216, %v3344, 0.0
    %v3460 = vadd.f32 %v3458, %v3459
    %v3461 = vsel %vm3216, %v3352, 0.0
    %v3462 = vadd.f32 %v3460, %v3461
    %v3463 = vsel %vm3216, %v3360, 0.0
    %v3464 = vadd.f32 %v3462, %v3463
    %v3465 = vsel %vm3216, %v3368, 0.0
    %v3466 = vadd.f32 %v3464, %v3465
    %v3467 = vsel %vm3216, %v3376, 0.0
    %v3468 = vadd.f32 %v3466, %v3467
    %v3469 = vsel %vm3216, %v3384, 0.0
    %v3470 = vadd.f32 %v3468, %v3469
    %v3471 = vsel %vm3216, %v3392, 0.0
    %v3472 = vadd.f32 %v3470, %v3471
    %v3473 = vsel %vm3216, %v3400, 0.0
    %v3474 = vadd.f32 %v3472, %v3473
    %v3475 = vsel %vm3216, %v3408, 0.0
    %v3476 = vadd.f32 %v3474, %v3475
    %v3477 = vsel %vm3216, %v3416, 0.0
    %v3478 = vadd.f32 %v3476, %v3477
    %v3479 = vsel %vm3216, %v3424, 0.0
    %v3480 = vadd.f32 %v3478, %v3479
    %v3481 = vrot.slane %v3480, 4
    %v3482 = vadd.f32 %v3480, %v3481
    %v3483 = vrot.slane %v3482, 2
    %v3484 = vadd.f32 %v3482, %v3483
    %v3485 = vrot.slane %v3484, 1
    %v3486 = vadd.f32 %v3484, %v3485
    %v3487 = vsel %vm3216, %v3321, 0.0
    %v3488 = vsel %vm3216, %v3329, 0.0
    %v3489 = vadd.f32 %v3487, %v3488
    %v3490 = vsel %vm3216, %v3337, 0.0
    %v3491 = vadd.f32 %v3489, %v3490
    %v3492 = vsel %vm3216, %v3345, 0.0
    %v3493 = vadd.f32 %v3491, %v3492
    %v3494 = vsel %vm3216, %v3353, 0.0
    %v3495 = vadd.f32 %v3493, %v3494
    %v3496 = vsel %vm3216, %v3361, 0.0
    %v3497 = vadd.f32 %v3495, %v3496
    %v3498 = vsel %vm3216, %v3369, 0.0
    %v3499 = vadd.f32 %v3497, %v3498
    %v3500 = vsel %vm3216, %v3377, 0.0
    %v3501 = vadd.f32 %v3499, %v3500
    %v3502 = vsel %vm3216, %v3385, 0.0
    %v3503 = vadd.f32 %v3501, %v3502
    %v3504 = vsel %vm3216, %v3393, 0.0
    %v3505 = vadd.f32 %v3503, %v3504
    %v3506 = vsel %vm3216, %v3401, 0.0
    %v3507 = vadd.f32 %v3505, %v3506
    %v3508 = vsel %vm3216, %v3409, 0.0
    %v3509 = vadd.f32 %v3507, %v3508
    %v3510 = vsel %vm3216, %v3417, 0.0
    %v3511 = vadd.f32 %v3509, %v3510
    %v3512 = vsel %vm3216, %v3425, 0.0
    %v3513 = vadd.f32 %v3511, %v3512
    %v3514 = vrot.slane %v3513, 4
    %v3515 = vadd.f32 %v3513, %v3514
    %v3516 = vrot.slane %v3515, 2
    %v3517 = vadd.f32 %v3515, %v3516
    %v3518 = vrot.slane %v3517, 1
    %v3519 = vadd.f32 %v3517, %v3518
    %v3520 = vmul.f32 %v3486, %v3283
    %v3521 = vmul.f32 %v3519, %v3283
    %v3522 = vmul.f32 %v3284, %v3284
    %v3523 = vmul.f32 %v3285, %v3285
    %v3524 = vsub.f32 %v3520, %v3522
    %v3525 = vsub.f32 %v3521, %v3523
    %v3526 = vmax.f32 %v3524, 0.0
    %v3527 = vmax.f32 %v3525, 0.0
    %v3528 = vld [vmem:[%s7] sm:$0x3]
    %v3529 = vadd.f32 %v3526, 1e-05
    %v3530 = vadd.f32 %v3527, 1e-05
    %v3531 = vrsqrt.pop %v3529
    %v3532 = vrsqrt.pop %v3530
    %v3535 = vcombine.low %v3531, %v3532
    %v3537 = vunpack.c.l.s4 1966171168
    %v3538 = vunpack.c.0.s8 %v3537
    %v3539 = vlaneseq
    %v3540 = vshrl.u32 %v3539, 7
    %v3541 = vsub.s32 %v3538, %v3540
    %v3542 = vrot.slane %v3535, %v3541
    %v3544 = vunpack.c.l.s4 1966171168
    %v3545 = vunpack.c.0.s8 %v3544
    %v3546 = vlaneseq
    %v3547 = vshrl.u32 %v3546, 7
    %v3548 = vsub.s32 %v3545, %v3547
    %v3549 = vrot.slane %v3542, %v3548
    %v3551 = vmul.f32 %v3528, %v3549
    %v3552 = vld [vmem:[%s8] sm:$0x3]
    %v3554 = vlaneseq
    %v3555 = vshrl.u32 %v3554, 7
    %v3556 = vsub.s32 0, %v3555
    %v3557 = vrot.slane %v3551, %v3556
    %v3558 = vlaneseq
    %v3559 = vshrl.u32 %v3558, 7
    %v3560 = vsub.s32 1, %v3559
    %v3561 = vrot.slane %v3551, %v3560
    %v3564 = vmul.f32 %v3284, %v3557
    %v3565 = vmul.f32 %v3285, %v3561
    %v3568 = vcombine.low %v3564, %v3565
    %v3570 = vunpack.c.l.s4 1966171168
    %v3571 = vunpack.c.0.s8 %v3570
    %v3572 = vlaneseq
    %v3573 = vshrl.u32 %v3572, 7
    %v3574 = vsub.s32 %v3571, %v3573
    %v3575 = vrot.slane %v3568, %v3574
    %v3577 = vunpack.c.l.s4 1966171168
    %v3578 = vunpack.c.0.s8 %v3577
    %v3579 = vlaneseq
    %v3580 = vshrl.u32 %v3579, 7
    %v3581 = vsub.s32 %v3578, %v3580
    %v3582 = vrot.slane %v3575, %v3581
    %v3584 = vsub.f32 %v3552, %v3582
    %v3585 = vcombine.low %v3557, %v3561
    %v3587 = vunpack.c.l.s4 1983009808
    %v3588 = vunpack.c.0.s8 %v3587
    %v3589 = vlaneseq
    %v3590 = vshrl.u32 %v3589, 7
    %v3591 = vsub.s32 %v3588, %v3590
    %v3592 = vrot.slane %v3585, %v3591
    %v3594 = vmul.f32 %v3007, %v3592
    %v3595 = vmul.f32 %v3015, %v3592
    %v3596 = vmul.f32 %v3014, %v3592
    %v3597 = vmul.f32 %v3016, %v3592
    %v3598 = vmul.f32 %v3025, %v3592
    %v3599 = vmul.f32 %v3033, %v3592
    %v3600 = vmul.f32 %v3032, %v3592
    %v3601 = vmul.f32 %v3034, %v3592
    %v3602 = vmul.f32 %v3043, %v3592
    %v3603 = vmul.f32 %v3051, %v3592
    %v3604 = vmul.f32 %v3050, %v3592
    %v3605 = vmul.f32 %v3052, %v3592
    %v3606 = vmul.f32 %v3060, %v3592
    %v3607 = vmul.f32 %v3061, %v3592
    %v3609 = vlaneseq
    %v3610 = vshrl.u32 %v3609, 7
    %v3611 = vsub.s32 0, %v3610
    %v3612 = vrot.slane %v3584, %v3611
    %v3613 = vlaneseq
    %v3614 = vshrl.u32 %v3613, 7
    %v3615 = vsub.s32 1, %v3614
    %v3616 = vrot.slane %v3584, %v3615
    %v3617 = vcombine.low %v3612, %v3616
    %v3619 = vunpack.c.l.s4 1983009808
    %v3620 = vunpack.c.0.s8 %v3619
    %v3621 = vlaneseq
    %v3622 = vshrl.u32 %v3621, 7
    %v3623 = vsub.s32 %v3620, %v3622
    %v3624 = vrot.slane %v3617, %v3623
    %v3626 = vadd.f32 %v3594, %v3624
    %v3627 = vadd.f32 %v3595, %v3624
    %v3628 = vadd.f32 %v3596, %v3624
    %v3629 = vadd.f32 %v3597, %v3624
    %v3630 = vadd.f32 %v3598, %v3624
    %v3631 = vadd.f32 %v3599, %v3624
    %v3632 = vadd.f32 %v3600, %v3624
    %v3633 = vadd.f32 %v3601, %v3624
    %v3634 = vadd.f32 %v3602, %v3624
    %v3635 = vadd.f32 %v3603, %v3624
    %v3636 = vadd.f32 %v3604, %v3624
    %v3637 = vadd.f32 %v3605, %v3624
    %v3638 = vadd.f32 %v3606, %v3624
    %v3639 = vadd.f32 %v3607, %v3624
    %v3640 = vmax.f32 %v3626, 0.0
    %v3641 = vmax.f32 %v3627, 0.0
    %v3642 = vmax.f32 %v3628, 0.0
    %v3643 = vmax.f32 %v3629, 0.0
    %v3644 = vmax.f32 %v3630, 0.0
    %v3645 = vmax.f32 %v3631, 0.0
    %v3646 = vmax.f32 %v3632, 0.0
    %v3647 = vmax.f32 %v3633, 0.0
    %v3648 = vmax.f32 %v3634, 0.0
    %v3649 = vmax.f32 %v3635, 0.0
    %v3650 = vmax.f32 %v3636, 0.0
    %v3651 = vmax.f32 %v3637, 0.0
    %v3652 = vmax.f32 %v3638, 0.0
    %v3653 = vmax.f32 %v3639, 0.0
    %v3667 = vunpack.c.l.s4 1983009808
    %v3668 = vunpack.c.0.s8 %v3667
    %v3669 = vlaneseq
    %v3670 = vshrl.u32 %v3669, 7
    %v3671 = vsub.s32 %v3668, %v3670
    %v3672 = vrot.slane %v3640, %v3671
    %v3673 = vcombine.high %v3672, %v3672
    %v3675 = vunpack.c.l.s4 1983009808
    %v3676 = vunpack.c.0.s8 %v3675
    %v3677 = vlaneseq
    %v3678 = vshrl.u32 %v3677, 7
    %v3679 = vsub.s32 %v3676, %v3678
    %v3680 = vrot.slane %v3641, %v3679
    %v3681 = vcombine.high %v3680, %v3680
    %v3683 = vunpack.c.l.s4 1983009808
    %v3684 = vunpack.c.0.s8 %v3683
    %v3685 = vlaneseq
    %v3686 = vshrl.u32 %v3685, 7
    %v3687 = vsub.s32 %v3684, %v3686
    %v3688 = vrot.slane %v3642, %v3687
    %v3689 = vcombine.high %v3688, %v3688
    %v3691 = vunpack.c.l.s4 1983009808
    %v3692 = vunpack.c.0.s8 %v3691
    %v3693 = vlaneseq
    %v3694 = vshrl.u32 %v3693, 7
    %v3695 = vsub.s32 %v3692, %v3694
    %v3696 = vrot.slane %v3643, %v3695
    %v3697 = vcombine.high %v3696, %v3696
    %v3699 = vunpack.c.l.s4 1983009808
    %v3700 = vunpack.c.0.s8 %v3699
    %v3701 = vlaneseq
    %v3702 = vshrl.u32 %v3701, 7
    %v3703 = vsub.s32 %v3700, %v3702
    %v3704 = vrot.slane %v3644, %v3703
    %v3705 = vcombine.high %v3704, %v3704
    %v3707 = vunpack.c.l.s4 1983009808
    %v3708 = vunpack.c.0.s8 %v3707
    %v3709 = vlaneseq
    %v3710 = vshrl.u32 %v3709, 7
    %v3711 = vsub.s32 %v3708, %v3710
    %v3712 = vrot.slane %v3645, %v3711
    %v3713 = vcombine.high %v3712, %v3712
    %v3715 = vunpack.c.l.s4 1983009808
    %v3716 = vunpack.c.0.s8 %v3715
    %v3717 = vlaneseq
    %v3718 = vshrl.u32 %v3717, 7
    %v3719 = vsub.s32 %v3716, %v3718
    %v3720 = vrot.slane %v3646, %v3719
    %v3721 = vcombine.high %v3720, %v3720
    %v3723 = vunpack.c.l.s4 1983009808
    %v3724 = vunpack.c.0.s8 %v3723
    %v3725 = vlaneseq
    %v3726 = vshrl.u32 %v3725, 7
    %v3727 = vsub.s32 %v3724, %v3726
    %v3728 = vrot.slane %v3647, %v3727
    %v3729 = vcombine.high %v3728, %v3728
    %v3731 = vunpack.c.l.s4 1983009808
    %v3732 = vunpack.c.0.s8 %v3731
    %v3733 = vlaneseq
    %v3734 = vshrl.u32 %v3733, 7
    %v3735 = vsub.s32 %v3732, %v3734
    %v3736 = vrot.slane %v3648, %v3735
    %v3737 = vcombine.high %v3736, %v3736
    %v3739 = vunpack.c.l.s4 1983009808
    %v3740 = vunpack.c.0.s8 %v3739
    %v3741 = vlaneseq
    %v3742 = vshrl.u32 %v3741, 7
    %v3743 = vsub.s32 %v3740, %v3742
    %v3744 = vrot.slane %v3649, %v3743
    %v3745 = vcombine.high %v3744, %v3744
    %v3747 = vunpack.c.l.s4 1983009808
    %v3748 = vunpack.c.0.s8 %v3747
    %v3749 = vlaneseq
    %v3750 = vshrl.u32 %v3749, 7
    %v3751 = vsub.s32 %v3748, %v3750
    %v3752 = vrot.slane %v3650, %v3751
    %v3753 = vcombine.high %v3752, %v3752
    %v3755 = vunpack.c.l.s4 1983009808
    %v3756 = vunpack.c.0.s8 %v3755
    %v3757 = vlaneseq
    %v3758 = vshrl.u32 %v3757, 7
    %v3759 = vsub.s32 %v3756, %v3758
    %v3760 = vrot.slane %v3651, %v3759
    %v3761 = vcombine.high %v3760, %v3760
    %v3764 = vunpack.c.l.s4 1983009808
    %v3765 = vunpack.c.0.s8 %v3764
    %v3766 = vlaneseq
    %v3767 = vshrl.u32 %v3766, 7
    %v3768 = vsub.s32 %v3765, %v3767
    %v3769 = vrot.slane %v3652, %v3768
    %v3770 = vcombine.high %v3769, %v3769
    %v3773 = vunpack.c.l.s4 1983009808
    %v3774 = vunpack.c.0.s8 %v3773
    %v3775 = vlaneseq
    %v3776 = vshrl.u32 %v3775, 7
    %v3777 = vsub.s32 %v3774, %v3776
    %v3778 = vrot.slane %v3653, %v3777
    %v3779 = vcombine.high %v3778, %v3778
    %v3780 = vld [vmem:[%s9] sm:$0xff]
    %v3781 = vld [vmem:[%s9 + $0x8] sm:$0xff]
    %v3782 = vld [vmem:[%s9 + $0x10] sm:$0xff]
    %v3783 = vld [vmem:[%s9 + $0x18] sm:$0xff]
    %v3784 = vld [vmem:[%s9 + $0x20] sm:$0xff]
    %v3785 = vld [vmem:[%s9 + $0x28] sm:$0xff]
    %v3786 = vld [vmem:[%s9 + $0x30] sm:$0xff]
    %v3787 = vld [vmem:[%s9 + $0x38] sm:$0xff]
    %v3788 = vld [vmem:[%s9 + $0x40] sm:$0xff]
    %v3789 = vld [vmem:[%s9 + $0x48] sm:$0xff]
    %v3790 = vld [vmem:[%s9 + $0x50] sm:$0xff]
    %v3791 = vld [vmem:[%s9 + $0x58] sm:$0xff]
    %v3792 = vld [vmem:[%s9 + $0x60] sm:$0xff]
    %v3793 = vld [vmem:[%s9 + $0x68] sm:$0xff]
    %v3794 = vld [vmem:[%s9 + $0x70] sm:$0xff]
    %v3795 = vld [vmem:[%s9 + $0x78] sm:$0xff]
    %v3796 = vld [vmem:[%s9 + $0x80] sm:$0xff]
    %v3797 = vld [vmem:[%s9 + $0x88] sm:$0xff]
    %v3798 = vld [vmem:[%s9 + $0x90] sm:$0xff]
    %v3799 = vld [vmem:[%s9 + $0x98] sm:$0xff]
    %v3800 = vld [vmem:[%s9 + $0xa0] sm:$0xff]
    %v3801 = vld [vmem:[%s9 + $0xa8] sm:$0xff]
    %v3802 = vld [vmem:[%s9 + $0xb0] sm:$0xff]
    %v3803 = vld [vmem:[%s9 + $0xb8] sm:$0xff]
    %v3804 = vld [vmem:[%s9 + $0xc0] sm:$0xff]
    %v3805 = vld [vmem:[%s9 + $0xc8] sm:$0xff]
    %v3806 = vld [vmem:[%s9 + $0xd0] sm:$0xff]
    %v3807 = vld [vmem:[%s9 + $0xd8] sm:$0xff]
    %v3808 = vld [vmem:[%s9 + $0xe0] sm:$0xff]
    %v3809 = vld [vmem:[%s9 + $0xe8] sm:$0xff]
    %v3810 = vld [vmem:[%s9 + $0xf0] sm:$0xff]
    %v3811 = vld [vmem:[%s9 + $0xf8] sm:$0xff]
    %v3812 = vld [vmem:[%s9 + $0x100] sm:$0xff]
    %v3813 = vld [vmem:[%s9 + $0x108] sm:$0xff]
    %v3814 = vld [vmem:[%s9 + $0x110] sm:$0xff]
    %v3815 = vld [vmem:[%s9 + $0x118] sm:$0xff]
    %v3816 = vld [vmem:[%s9 + $0x120] sm:$0xff]
    %v3817 = vld [vmem:[%s9 + $0x128] sm:$0xff]
    %v3818 = vld [vmem:[%s9 + $0x130] sm:$0xff]
    %v3819 = vld [vmem:[%s9 + $0x138] sm:$0xff]
    %v3820 = vld [vmem:[%s9 + $0x140] sm:$0xff]
    %v3821 = vld [vmem:[%s9 + $0x148] sm:$0xff]
    %v3822 = vld [vmem:[%s9 + $0x150] sm:$0xff]
    %v3823 = vld [vmem:[%s9 + $0x158] sm:$0xff]
    %v3824 = vld [vmem:[%s9 + $0x160] sm:$0xff]
    %v3825 = vld [vmem:[%s9 + $0x168] sm:$0xff]
    %v3826 = vld [vmem:[%s9 + $0x170] sm:$0xff]
    %v3827 = vld [vmem:[%s9 + $0x178] sm:$0xff]
    %v3828 = vld [vmem:[%s9 + $0x180] sm:$0xff]
    %v3829 = vld [vmem:[%s9 + $0x188] sm:$0xff]
    %v3830 = vld [vmem:[%s9 + $0x190] sm:$0xff]
    %v3831 = vld [vmem:[%s9 + $0x198] sm:$0xff]
    %v3832 = vld [vmem:[%s9 + $0x1a0] sm:$0xff]
    %v3833 = vld [vmem:[%s9 + $0x1a8] sm:$0xff]
    %v3834 = vld [vmem:[%s9 + $0x1b0] sm:$0xff]
    %v3835 = vld [vmem:[%s9 + $0x1b8] sm:$0xff]
    %v3836 = vld [vmem:[%s9 + $0x1c0] sm:$0xff]
    %v3837 = vld [vmem:[%s9 + $0x1c8] sm:$0xff]
    %v3838 = vld [vmem:[%s9 + $0x1d0] sm:$0xff]
    %v3839 = vld [vmem:[%s9 + $0x1d8] sm:$0xff]
    %v3840 = vld [vmem:[%s9 + $0x1e0] sm:$0xff]
    %v3841 = vld [vmem:[%s9 + $0x1e8] sm:$0xff]
    %v3842 = vld [vmem:[%s9 + $0x1f0] sm:$0xff]
    %v3843 = vld [vmem:[%s9 + $0x1f8] sm:$0xff]
    %v3844 = vld [vmem:[%s9 + $0x200] sm:$0xff]
    %v3845 = vld [vmem:[%s9 + $0x208] sm:$0xff]
    %v3846 = vld [vmem:[%s9 + $0x210] sm:$0xff]
    %v3847 = vld [vmem:[%s9 + $0x218] sm:$0xff]
    %v3848 = vld [vmem:[%s9 + $0x220] sm:$0xff]
    %v3849 = vld [vmem:[%s9 + $0x228] sm:$0xff]
    %v3850 = vld [vmem:[%s9 + $0x230] sm:$0xff]
    %v3851 = vld [vmem:[%s9 + $0x238] sm:$0xff]
    %v3852 = vld [vmem:[%s9 + $0x240] sm:$0xff]
    %v3853 = vld [vmem:[%s9 + $0x248] sm:$0xff]
    %v3854 = vld [vmem:[%s9 + $0x250] sm:$0xff]
    %v3855 = vld [vmem:[%s9 + $0x258] sm:$0xff]
    %v3856 = vld [vmem:[%s9 + $0x260] sm:$0xff]
    %v3857 = vld [vmem:[%s9 + $0x268] sm:$0xff]
    %v3858 = vld [vmem:[%s9 + $0x270] sm:$0xff]
    %v3859 = vld [vmem:[%s9 + $0x278] sm:$0xff]
    %v3860 = vld [vmem:[%s9 + $0x280] sm:$0xff]
    %v3861 = vld [vmem:[%s9 + $0x288] sm:$0xff]
    %v3862 = vld [vmem:[%s9 + $0x290] sm:$0xff]
    %v3863 = vld [vmem:[%s9 + $0x298] sm:$0xff]
    %v3864 = vld [vmem:[%s9 + $0x2a0] sm:$0xff]
    %v3865 = vld [vmem:[%s9 + $0x2a8] sm:$0xff]
    %v3866 = vld [vmem:[%s9 + $0x2b0] sm:$0xff]
    %v3867 = vld [vmem:[%s9 + $0x2b8] sm:$0xff]
    %v3868 = vld [vmem:[%s9 + $0x2c0] sm:$0xff]
    %v3869 = vld [vmem:[%s9 + $0x2c8] sm:$0xff]
    %v3870 = vld [vmem:[%s9 + $0x2d0] sm:$0xff]
    %v3871 = vld [vmem:[%s9 + $0x2d8] sm:$0xff]
    %v3872 = vld [vmem:[%s9 + $0x2e0] sm:$0xff]
    %v3873 = vld [vmem:[%s9 + $0x2e8] sm:$0xff]
    %v3874 = vld [vmem:[%s9 + $0x2f0] sm:$0xff]
    %v3875 = vld [vmem:[%s9 + $0x2f8] sm:$0xff]
    %v3876 = vld [vmem:[%s9 + $0x300] sm:$0xff]
    %v3877 = vld [vmem:[%s9 + $0x308] sm:$0xff]
    %v3878 = vld [vmem:[%s9 + $0x310] sm:$0xff]
    %v3879 = vld [vmem:[%s9 + $0x318] sm:$0xff]
    %v3880 = vld [vmem:[%s9 + $0x320] sm:$0xff]
    %v3881 = vld [vmem:[%s9 + $0x328] sm:$0xff]
    %v3882 = vld [vmem:[%s9 + $0x330] sm:$0xff]
    %v3883 = vld [vmem:[%s9 + $0x338] sm:$0xff]
    %v3884 = vld [vmem:[%s9 + $0x340] sm:$0xff]
    %v3885 = vld [vmem:[%s9 + $0x348] sm:$0xff]
    %v3886 = vld [vmem:[%s9 + $0x350] sm:$0xff]
    %v3887 = vld [vmem:[%s9 + $0x358] sm:$0xff]
    %v3888 = vld [vmem:[%s9 + $0x360] sm:$0xff]
    %v3889 = vld [vmem:[%s9 + $0x368] sm:$0xff]
    %v3890 = vld [vmem:[%s9 + $0x370] sm:$0xff]
    %v3891 = vld [vmem:[%s9 + $0x378] sm:$0xff]
    %v3892 = vld [vmem:[%s9 + $0x380] sm:$0xff]
    %v3893 = vld [vmem:[%s9 + $0x388] sm:$0xff]
    %v3894 = vld [vmem:[%s9 + $0x390] sm:$0xff]
    %v3895 = vld [vmem:[%s9 + $0x398] sm:$0xff]
    %v3896 = vld [vmem:[%s9 + $0x3a0] sm:$0xff]
    %v3897 = vld [vmem:[%s9 + $0x3a8] sm:$0xff]
    %v3898 = vld [vmem:[%s9 + $0x3b0] sm:$0xff]
    %v3899 = vld [vmem:[%s9 + $0x3b8] sm:$0xff]
    %v3900 = vld [vmem:[%s9 + $0x3c0] sm:$0xff]
    %v3901 = vld [vmem:[%s9 + $0x3c8] sm:$0xff]
    %v3902 = vld [vmem:[%s9 + $0x3d0] sm:$0xff]
    %v3903 = vld [vmem:[%s9 + $0x3d8] sm:$0xff]
    %v3904 = vld [vmem:[%s9 + $0x3e0] sm:$0xff]
    %v3905 = vld [vmem:[%s9 + $0x3e8] sm:$0xff]
    %v3906 = vld [vmem:[%s9 + $0x3f0] sm:$0xff]
    %v3907 = vld [vmem:[%s9 + $0x3f8] sm:$0xff]
    %v3908 = vld [vmem:[%s9 + $0x400] sm:$0xff]
    %v3909 = vld [vmem:[%s9 + $0x408] sm:$0xff]
    %v3910 = vld [vmem:[%s9 + $0x410] sm:$0xff]
    %v3911 = vld [vmem:[%s9 + $0x418] sm:$0xff]
    %v3912 = vld [vmem:[%s9 + $0x420] sm:$0xff]
    %v3913 = vld [vmem:[%s9 + $0x428] sm:$0xff]
    %v3914 = vld [vmem:[%s9 + $0x430] sm:$0xff]
    %v3915 = vld [vmem:[%s9 + $0x438] sm:$0xff]
    %v3916 = vld [vmem:[%s9 + $0x440] sm:$0xff]
    %v3917 = vld [vmem:[%s9 + $0x448] sm:$0xff]
    %v3918 = vld [vmem:[%s9 + $0x450] sm:$0xff]
    %v3919 = vld [vmem:[%s9 + $0x458] sm:$0xff]
    %v3920 = vld [vmem:[%s9 + $0x460] sm:$0xff]
    %v3921 = vld [vmem:[%s9 + $0x468] sm:$0xff]
    %v3922 = vld [vmem:[%s9 + $0x470] sm:$0xff]
    %v3923 = vld [vmem:[%s9 + $0x478] sm:$0xff]
    %v3924 = vld [vmem:[%s9 + $0x480] sm:$0xff]
    %v3925 = vld [vmem:[%s9 + $0x488] sm:$0xff]
    %v3926 = vld [vmem:[%s9 + $0x490] sm:$0xff]
    %v3927 = vld [vmem:[%s9 + $0x498] sm:$0xff]
    %v3928 = vld [vmem:[%s9 + $0x4a0] sm:$0xff]
    %v3929 = vld [vmem:[%s9 + $0x4a8] sm:$0xff]
    %v3930 = vld [vmem:[%s9 + $0x4b0] sm:$0xff]
    %v3931 = vld [vmem:[%s9 + $0x4b8] sm:$0xff]
    %v3932 = vld [vmem:[%s9 + $0x4c0] sm:$0xff]
    %v3933 = vld [vmem:[%s9 + $0x4c8] sm:$0xff]
    %v3934 = vld [vmem:[%s9 + $0x4d0] sm:$0xff]
    %v3935 = vld [vmem:[%s9 + $0x4d8] sm:$0xff]
    %v3936 = vld [vmem:[%s9 + $0x4e0] sm:$0xff]
    %v3937 = vld [vmem:[%s9 + $0x4e8] sm:$0xff]
    %v3938 = vld [vmem:[%s9 + $0x4f0] sm:$0xff]
    %v3939 = vld [vmem:[%s9 + $0x4f8] sm:$0xff]
    %v3940 = vld [vmem:[%s9 + $0x500] sm:$0xff]
    %v3941 = vld [vmem:[%s9 + $0x508] sm:$0xff]
    %v3942 = vld [vmem:[%s9 + $0x510] sm:$0xff]
    %v3943 = vld [vmem:[%s9 + $0x518] sm:$0xff]
    %v3944 = vld [vmem:[%s9 + $0x520] sm:$0xff]
    %v3945 = vld [vmem:[%s9 + $0x528] sm:$0xff]
    %v3946 = vld [vmem:[%s9 + $0x530] sm:$0xff]
    %v3947 = vld [vmem:[%s9 + $0x538] sm:$0xff]
    %v3948 = vld [vmem:[%s9 + $0x540] sm:$0xff]
    %v3949 = vld [vmem:[%s9 + $0x548] sm:$0xff]
    %v3950 = vld [vmem:[%s9 + $0x550] sm:$0xff]
    %v3951 = vld [vmem:[%s9 + $0x558] sm:$0xff]
    %v3952 = vld [vmem:[%s9 + $0x560] sm:$0xff]
    %v3953 = vld [vmem:[%s9 + $0x568] sm:$0xff]
    %v3954 = vld [vmem:[%s9 + $0x570] sm:$0xff]
    %v3955 = vld [vmem:[%s9 + $0x578] sm:$0xff]
    %v3956 = vld [vmem:[%s9 + $0x580] sm:$0xff]
    %v3957 = vld [vmem:[%s9 + $0x588] sm:$0xff]
    %v3958 = vld [vmem:[%s9 + $0x590] sm:$0xff]
    %v3959 = vld [vmem:[%s9 + $0x598] sm:$0xff]
    %v3960 = vld [vmem:[%s9 + $0x5a0] sm:$0xff]
    %v3961 = vld [vmem:[%s9 + $0x5a8] sm:$0xff]
    %v3962 = vld [vmem:[%s9 + $0x5b0] sm:$0xff]
    %v3963 = vld [vmem:[%s9 + $0x5b8] sm:$0xff]
    %v3964 = vld [vmem:[%s9 + $0x5c0] sm:$0xff]
    %v3965 = vld [vmem:[%s9 + $0x5c8] sm:$0xff]
    %v3966 = vld [vmem:[%s9 + $0x5d0] sm:$0xff]
    %v3967 = vld [vmem:[%s9 + $0x5d8] sm:$0xff]
    %v3968 = vld [vmem:[%s9 + $0x5e0] sm:$0xff]
    %v3969 = vld [vmem:[%s9 + $0x5e8] sm:$0xff]
    %v3970 = vld [vmem:[%s9 + $0x5f0] sm:$0xff]
    %v3971 = vld [vmem:[%s9 + $0x5f8] sm:$0xff]
    %v3972 = vcombine.low %v3672, %v3673
    %v3973 = vcombine.low %v3680, %v3681
    %v3975 = vunpack.c.l.s4 1983009808
    %v3976 = vunpack.c.0.s8 %v3975
    %v3977 = vlaneseq
    %v3978 = vshrl.u32 %v3977, 7
    %v3979 = vsub.s32 %v3976, %v3978
    %v3980 = vrot.slane %v3972, %v3979
    %v3982 = vunpack.c.l.s4 1983009808
    %v3983 = vunpack.c.0.s8 %v3982
    %v3984 = vlaneseq
    %v3985 = vshrl.u32 %v3984, 7
    %v3986 = vsub.s32 %v3983, %v3985
    %v3987 = vrot.slane %v3973, %v3986
    %v3988 = vcombine.low %v3980, %v3987
    %v3989 = vcombine.low %v3688, %v3689
    %v3991 = vunpack.c.l.s4 1983009808
    %v3992 = vunpack.c.0.s8 %v3991
    %v3993 = vlaneseq
    %v3994 = vshrl.u32 %v3993, 7
    %v3995 = vsub.s32 %v3992, %v3994
    %v3996 = vrot.slane %v3989, %v3995
    %v3997 = vcombine.low %v3987, %v3996
    %v3998 = vcombine.low %v3696, %v3697
    %v4000 = vunpack.c.l.s4 1983009808
    %v4001 = vunpack.c.0.s8 %v4000
    %v4002 = vlaneseq
    %v4003 = vshrl.u32 %v4002, 7
    %v4004 = vsub.s32 %v4001, %v4003
    %v4005 = vrot.slane %v3998, %v4004
    %v4006 = vcombine.low %v3996, %v4005
    %v4007 = vcombine.low %v3704, %v3705
    %v4009 = vunpack.c.l.s4 1983009808
    %v4010 = vunpack.c.0.s8 %v4009
    %v4011 = vlaneseq
    %v4012 = vshrl.u32 %v4011, 7
    %v4013 = vsub.s32 %v4010, %v4012
    %v4014 = vrot.slane %v4007, %v4013
    %v4015 = vcombine.low %v4005, %v4014
    %v4016 = vcombine.low %v3712, %v3713
    %v4018 = vunpack.c.l.s4 1983009808
    %v4019 = vunpack.c.0.s8 %v4018
    %v4020 = vlaneseq
    %v4021 = vshrl.u32 %v4020, 7
    %v4022 = vsub.s32 %v4019, %v4021
    %v4023 = vrot.slane %v4016, %v4022
    %v4024 = vcombine.low %v4014, %v4023
    %v4025 = vcombine.low %v3720, %v3721
    %v4027 = vunpack.c.l.s4 1983009808
    %v4028 = vunpack.c.0.s8 %v4027
    %v4029 = vlaneseq
    %v4030 = vshrl.u32 %v4029, 7
    %v4031 = vsub.s32 %v4028, %v4030
    %v4032 = vrot.slane %v4025, %v4031
    %v4033 = vcombine.low %v4023, %v4032
    %v4034 = vcombine.low %v3728, %v3729
    %v4036 = vunpack.c.l.s4 1983009808
    %v4037 = vunpack.c.0.s8 %v4036
    %v4038 = vlaneseq
    %v4039 = vshrl.u32 %v4038, 7
    %v4040 = vsub.s32 %v4037, %v4039
    %v4041 = vrot.slane %v4034, %v4040
    %v4042 = vcombine.low %v4032, %v4041
    %v4043 = vcombine.low %v3736, %v3737
    %v4045 = vunpack.c.l.s4 1983009808
    %v4046 = vunpack.c.0.s8 %v4045
    %v4047 = vlaneseq
    %v4048 = vshrl.u32 %v4047, 7
    %v4049 = vsub.s32 %v4046, %v4048
    %v4050 = vrot.slane %v4043, %v4049
    %v4051 = vcombine.low %v4041, %v4050
    %v4052 = vcombine.low %v3744, %v3745
    %v4054 = vunpack.c.l.s4 1983009808
    %v4055 = vunpack.c.0.s8 %v4054
    %v4056 = vlaneseq
    %v4057 = vshrl.u32 %v4056, 7
    %v4058 = vsub.s32 %v4055, %v4057
    %v4059 = vrot.slane %v4052, %v4058
    %v4060 = vcombine.low %v4050, %v4059
    %v4061 = vcombine.low %v3752, %v3753
    %v4063 = vunpack.c.l.s4 1983009808
    %v4064 = vunpack.c.0.s8 %v4063
    %v4065 = vlaneseq
    %v4066 = vshrl.u32 %v4065, 7
    %v4067 = vsub.s32 %v4064, %v4066
    %v4068 = vrot.slane %v4061, %v4067
    %v4069 = vcombine.low %v4059, %v4068
    %v4070 = vcombine.low %v3760, %v3761
    %v4072 = vunpack.c.l.s4 1983009808
    %v4073 = vunpack.c.0.s8 %v4072
    %v4074 = vlaneseq
    %v4075 = vshrl.u32 %v4074, 7
    %v4076 = vsub.s32 %v4073, %v4075
    %v4077 = vrot.slane %v4070, %v4076
    %v4078 = vcombine.low %v4068, %v4077
    %v4079 = vcombine.low %v3769, %v3770
    %v4081 = vunpack.c.l.s4 1983009808
    %v4082 = vunpack.c.0.s8 %v4081
    %v4083 = vlaneseq
    %v4084 = vshrl.u32 %v4083, 7
    %v4085 = vsub.s32 %v4082, %v4084
    %v4086 = vrot.slane %v4079, %v4085
    %v4087 = vcombine.low %v4077, %v4086
    %v4088 = vcombine.low %v3778, %v3779
    %v4090 = vunpack.c.l.s4 1983009808
    %v4091 = vunpack.c.0.s8 %v4090
    %v4092 = vlaneseq
    %v4093 = vshrl.u32 %v4092, 7
    %v4094 = vsub.s32 %v4091, %v4093
    %v4095 = vrot.slane %v4088, %v4094
    %v4096 = vcombine.low %v3988, %v3997
    %v4097 = vcombine.high %v3988, %v3997
    %v4098 = vcombine.low %v4006, %v4015
    %v4099 = vcombine.high %v4006, %v4015
    %v4101 = vunpack.c.l.s4 1983009808
    %v4102 = vunpack.c.0.s8 %v4101
    %v4103 = vlaneseq
    %v4104 = vshrl.u32 %v4103, 7
    %v4105 = vsub.s32 %v4102, %v4104
    %v4106 = vrot.slane %v4096, %v4105
    %v4108 = vunpack.c.l.s4 1983009808
    %v4109 = vunpack.c.0.s8 %v4108
    %v4110 = vlaneseq
    %v4111 = vshrl.u32 %v4110, 7
    %v4112 = vsub.s32 %v4109, %v4111
    %v4113 = vrot.slane %v4097, %v4112
    %v4115 = vunpack.c.l.s4 1983009808
    %v4116 = vunpack.c.0.s8 %v4115
    %v4117 = vlaneseq
    %v4118 = vshrl.u32 %v4117, 7
    %v4119 = vsub.s32 %v4116, %v4118
    %v4120 = vrot.slane %v4098, %v4119
    %v4122 = vunpack.c.l.s4 1983009808
    %v4123 = vunpack.c.0.s8 %v4122
    %v4124 = vlaneseq
    %v4125 = vshrl.u32 %v4124, 7
    %v4126 = vsub.s32 %v4123, %v4125
    %v4127 = vrot.slane %v4099, %v4126
    %v4128 = vcombine.low %v4106, %v4120
    %v4129 = vcombine.high %v4106, %v4120
    %v4130 = vcombine.low %v4113, %v4127
    %v4131 = vcombine.high %v4113, %v4127
    %v4133 = vunpack.c.l.s4 1983009808
    %v4134 = vunpack.c.0.s8 %v4133
    %v4135 = vlaneseq
    %v4136 = vshrl.u32 %v4135, 7
    %v4137 = vsub.s32 %v4134, %v4136
    %v4138 = vrot.slane %v4006, %v4137
    %v4140 = vunpack.c.l.s4 1983009808
    %v4141 = vunpack.c.0.s8 %v4140
    %v4142 = vlaneseq
    %v4143 = vshrl.u32 %v4142, 7
    %v4144 = vsub.s32 %v4141, %v4143
    %v4145 = vrot.slane %v4024, %v4144
    %v4146 = vcombine.low %v4138, %v4145
    %v4147 = vcombine.high %v4138, %v4145
    %v4148 = vcombine.low %v4024, %v4033
    %v4149 = vcombine.high %v4024, %v4033
    %v4150 = vcombine.low %v4042, %v4051
    %v4151 = vcombine.high %v4042, %v4051
    %v4153 = vunpack.c.l.s4 1983009808
    %v4154 = vunpack.c.0.s8 %v4153
    %v4155 = vlaneseq
    %v4156 = vshrl.u32 %v4155, 7
    %v4157 = vsub.s32 %v4154, %v4156
    %v4158 = vrot.slane %v4148, %v4157
    %v4160 = vunpack.c.l.s4 1983009808
    %v4161 = vunpack.c.0.s8 %v4160
    %v4162 = vlaneseq
    %v4163 = vshrl.u32 %v4162, 7
    %v4164 = vsub.s32 %v4161, %v4163
    %v4165 = vrot.slane %v4149, %v4164
    %v4167 = vunpack.c.l.s4 1983009808
    %v4168 = vunpack.c.0.s8 %v4167
    %v4169 = vlaneseq
    %v4170 = vshrl.u32 %v4169, 7
    %v4171 = vsub.s32 %v4168, %v4170
    %v4172 = vrot.slane %v4150, %v4171
    %v4174 = vunpack.c.l.s4 1983009808
    %v4175 = vunpack.c.0.s8 %v4174
    %v4176 = vlaneseq
    %v4177 = vshrl.u32 %v4176, 7
    %v4178 = vsub.s32 %v4175, %v4177
    %v4179 = vrot.slane %v4151, %v4178
    %v4180 = vcombine.low %v4158, %v4172
    %v4181 = vcombine.high %v4158, %v4172
    %v4182 = vcombine.low %v4165, %v4179
    %v4183 = vcombine.high %v4165, %v4179
    %v4185 = vunpack.c.l.s4 1983009808
    %v4186 = vunpack.c.0.s8 %v4185
    %v4187 = vlaneseq
    %v4188 = vshrl.u32 %v4187, 7
    %v4189 = vsub.s32 %v4186, %v4188
    %v4190 = vrot.slane %v4042, %v4189
    %v4192 = vunpack.c.l.s4 1983009808
    %v4193 = vunpack.c.0.s8 %v4192
    %v4194 = vlaneseq
    %v4195 = vshrl.u32 %v4194, 7
    %v4196 = vsub.s32 %v4193, %v4195
    %v4197 = vrot.slane %v4060, %v4196
    %v4198 = vcombine.low %v4190, %v4197
    %v4199 = vcombine.high %v4190, %v4197
    %v4200 = vcombine.low %v4060, %v4069
    %v4201 = vcombine.high %v4060, %v4069
    %v4202 = vcombine.low %v4078, %v4087
    %v4203 = vcombine.high %v4078, %v4087
    %v4205 = vunpack.c.l.s4 1983009808
    %v4206 = vunpack.c.0.s8 %v4205
    %v4207 = vlaneseq
    %v4208 = vshrl.u32 %v4207, 7
    %v4209 = vsub.s32 %v4206, %v4208
    %v4210 = vrot.slane %v4200, %v4209
    %v4212 = vunpack.c.l.s4 1983009808
    %v4213 = vunpack.c.0.s8 %v4212
    %v4214 = vlaneseq
    %v4215 = vshrl.u32 %v4214, 7
    %v4216 = vsub.s32 %v4213, %v4215
    %v4217 = vrot.slane %v4201, %v4216
    %v4219 = vunpack.c.l.s4 1983009808
    %v4220 = vunpack.c.0.s8 %v4219
    %v4221 = vlaneseq
    %v4222 = vshrl.u32 %v4221, 7
    %v4223 = vsub.s32 %v4220, %v4222
    %v4224 = vrot.slane %v4202, %v4223
    %v4226 = vunpack.c.l.s4 1983009808
    %v4227 = vunpack.c.0.s8 %v4226
    %v4228 = vlaneseq
    %v4229 = vshrl.u32 %v4228, 7
    %v4230 = vsub.s32 %v4227, %v4229
    %v4231 = vrot.slane %v4203, %v4230
    %v4232 = vcombine.low %v4210, %v4224
    %v4233 = vcombine.high %v4210, %v4224
    %v4234 = vcombine.low %v4217, %v4231
    %v4235 = vcombine.high %v4217, %v4231
    %v4236 = vcombine.low %v4086, %v4095
    %v4238 = vunpack.c.l.s4 1983009808
    %v4239 = vunpack.c.0.s8 %v4238
    %v4240 = vlaneseq
    %v4241 = vshrl.u32 %v4240, 7
    %v4242 = vsub.s32 %v4239, %v4241
    %v4243 = vrot.slane %v4078, %v4242
    %v4245 = vunpack.c.l.s4 1983009808
    %v4246 = vunpack.c.0.s8 %v4245
    %v4247 = vlaneseq
    %v4248 = vshrl.u32 %v4247, 7
    %v4249 = vsub.s32 %v4246, %v4248
    %v4250 = vrot.slane %v4236, %v4249
    %v4251 = vcombine.low %v4243, %v4250
    %v4252 = vcombine.high %v4243, %v4250
    %4271 = vmatprep.subr.mxu0 %v3781
    %4272 = vmatpush1.msra.mxu0 %v3780
    %4273 = vmatprep.subr.mxu0 %v3783
    %4274 = vmatpush1.msra.mxu0 %v3782
    %4275 = vmatprep.subr.mxu0 %v3785
    %4276 = vmatpush1.msra.mxu0 %v3784
    %4277 = vmatprep.subr.mxu0 %v3787
    %4278 = vmatpush1.msra.mxu0 %v3786
    %4279 = vmatprep.subr.mxu0 %v3789
    %4280 = vmatpush1.msra.mxu0 %v3788
    %4281 = vmatprep.subr.mxu0 %v3791
    %4282 = vmatpush1.msra.mxu0 %v3790
    %4283 = vmatprep.subr.mxu0 %v3793
    %4284 = vmatpush1.msra.mxu0 %v3792
    %4285 = vmatprep.subr.mxu0 %v3795
    %4286 = vmatpush1.msra.mxu0 %v3794
    %4287 = vmatprep.subr.mxu0 %v3797
    %4288 = vmatpush1.msra.mxu0 %v3796
    %4289 = vmatprep.subr.mxu0 %v3799
    %4290 = vmatpush1.msra.mxu0 %v3798
    %4291 = vmatprep.subr.mxu0 %v3801
    %4292 = vmatpush1.msra.mxu0 %v3800
    %4293 = vmatprep.subr.mxu0 %v3803
    %4294 = vmatpush1.msra.mxu0 %v3802
    %4295 = vmatprep.subr.mxu0 %v3805
    %4296 = vmatpush1.msra.mxu0 %v3804
    %4297 = vmatprep.subr.mxu0 %v3807
    %4298 = vmatpush1.msra.mxu0 %v3806
    %4299 = vmatprep.subr.mxu0 %v3809
    %4300 = vmatpush1.msra.mxu0 %v3808
    %4301 = vmatprep.subr.mxu0 %v3811
    %4302 = vmatpush1.msra.mxu0 %v3810
    %4303 = vmatprep.subr.mxu0 %v3813
    %4304 = vmatpush1.msra.mxu0 %v3812
    %4305 = vmatprep.subr.mxu0 %v3815
    %4306 = vmatpush1.msra.mxu0 %v3814
    %4307 = vmatprep.subr.mxu0 %v3817
    %4308 = vmatpush1.msra.mxu0 %v3816
    %4309 = vmatprep.subr.mxu0 %v3819
    %4310 = vmatpush1.msra.mxu0 %v3818
    %4311 = vmatprep.subr.mxu0 %v3821
    %4312 = vmatpush1.msra.mxu0 %v3820
    %4313 = vmatprep.subr.mxu0 %v3823
    %4314 = vmatpush1.msra.mxu0 %v3822
    %4315 = vmatprep.subr.mxu0 %v3825
    %4316 = vmatpush1.msra.mxu0 %v3824
    %4317 = vmatprep.subr.mxu0 %v3827
    %4318 = vmatpush1.msra.mxu0 %v3826
    %4319 = vmatprep.subr.mxu0 %v3829
    %4320 = vmatpush1.msra.mxu0 %v3828
    %4321 = vmatprep.subr.mxu0 %v3831
    %4322 = vmatpush1.msra.mxu0 %v3830
    %4323 = vmatprep.subr.mxu0 %v3833
    %4324 = vmatpush1.msra.mxu0 %v3832
    %4325 = vmatprep.subr.mxu0 %v3835
    %4326 = vmatpush1.msra.mxu0 %v3834
    %4327 = vmatprep.subr.mxu0 %v3837
    %4328 = vmatpush1.msra.mxu0 %v3836
    %4329 = vmatprep.subr.mxu0 %v3839
    %4330 = vmatpush1.msra.mxu0 %v3838
    %4331 = vmatprep.subr.mxu0 %v3841
    %4332 = vmatpush1.msra.mxu0 %v3840
    %4333 = vmatprep.subr.mxu0 %v3843
    %4334 = vmatpush1.msra.mxu0 %v3842
    %4335 = vmatprep.mubr.f32.mxu0 %v4129
    %4336 = vmatmul.mubr.f32.gmra.mrb[0].mxu0 %v4128
    %v4337 = vpop.f32.mrb[0].mxu0
    %v4338 = vadd.f32 0.0, %v4337
    %v4339 = vpop.f32.mrb[0].mxu0
    %v4340 = vadd.f32 0.0, %v4339
    %4341 = vmatprep.mubr.f32.mxu0 %v4181
    %4342 = vmatmul.mubr.f32.gmra.mrb[0].mxu0 %v4180
    %v4343 = vpop.f32.mrb[0].mxu0
    %v4344 = vadd.f32 0.0, %v4343
    %v4345 = vpop.f32.mrb[0].mxu0
    %v4346 = vadd.f32 0.0, %v4345
    %4347 = vmatprep.mubr.f32.mxu0 %v4233
    %4348 = vmatmul.mubr.f32.gmra.mrb[0].mxu0 %v4232
    %v4349 = vpop.f32.mrb[0].mxu0
    %v4350 = vadd.f32 0.0, %v4349
    %v4351 = vpop.f32.mrb[0].mxu0
    %v4352 = vadd.f32 0.0, %v4351
    %4353 = vdwg.mxu0
    %4354 = vmatprep.subr.mxu0 %v3845
    %4355 = vmatpush1.msra.mxu0 %v3844
    %4356 = vmatprep.subr.mxu0 %v3847
    %4357 = vmatpush1.msra.mxu0 %v3846
    %4358 = vmatprep.subr.mxu0 %v3849
    %4359 = vmatpush1.msra.mxu0 %v3848
    %4360 = vmatprep.subr.mxu0 %v3851
    %4361 = vmatpush1.msra.mxu0 %v3850
    %4362 = vmatprep.subr.mxu0 %v3853
    %4363 = vmatpush1.msra.mxu0 %v3852
    %4364 = vmatprep.subr.mxu0 %v3855
    %4365 = vmatpush1.msra.mxu0 %v3854
    %4366 = vmatprep.subr.mxu0 %v3857
    %4367 = vmatpush1.msra.mxu0 %v3856
    %4368 = vmatprep.subr.mxu0 %v3859
    %4369 = vmatpush1.msra.mxu0 %v3858
    %4370 = vmatprep.subr.mxu0 %v3861
    %4371 = vmatpush1.msra.mxu0 %v3860
    %4372 = vmatprep.subr.mxu0 %v3863
    %4373 = vmatpush1.msra.mxu0 %v3862
    %4374 = vmatprep.subr.mxu0 %v3865
    %4375 = vmatpush1.msra.mxu0 %v3864
    %4376 = vmatprep.subr.mxu0 %v3867
    %4377 = vmatpush1.msra.mxu0 %v3866
    %4378 = vmatprep.subr.mxu0 %v3869
    %4379 = vmatpush1.msra.mxu0 %v3868
    %4380 = vmatprep.subr.mxu0 %v3871
    %4381 = vmatpush1.msra.mxu0 %v3870
    %4382 = vmatprep.subr.mxu0 %v3873
    %4383 = vmatpush1.msra.mxu0 %v3872
    %4384 = vmatprep.subr.mxu0 %v3875
    %4385 = vmatpush1.msra.mxu0 %v3874
    %4386 = vmatprep.subr.mxu0 %v3877
    %4387 = vmatpush1.msra.mxu0 %v3876
    %4388 = vmatprep.subr.mxu0 %v3879
    %4389 = vmatpush1.msra.mxu0 %v3878
    %4390 = vmatprep.subr.mxu0 %v3881
    %4391 = vmatpush1.msra.mxu0 %v3880
    %4392 = vmatprep.subr.mxu0 %v3883
    %4393 = vmatpush1.msra.mxu0 %v3882
    %4394 = vmatprep.subr.mxu0 %v3885
    %4395 = vmatpush1.msra.mxu0 %v3884
    %4396 = vmatprep.subr.mxu0 %v3887
    %4397 = vmatpush1.msra.mxu0 %v3886
    %4398 = vmatprep.subr.mxu0 %v3889
    %4399 = vmatpush1.msra.mxu0 %v3888
    %4400 = vmatprep.subr.mxu0 %v3891
    %4401 = vmatpush1.msra.mxu0 %v3890
    %4402 = vmatprep.subr.mxu0 %v3893
    %4403 = vmatpush1.msra.mxu0 %v3892
    %4404 = vmatprep.subr.mxu0 %v3895
    %4405 = vmatpush1.msra.mxu0 %v3894
    %4406 = vmatprep.subr.mxu0 %v3897
    %4407 = vmatpush1.msra.mxu0 %v3896
    %4408 = vmatprep.subr.mxu0 %v3899
    %4409 = vmatpush1.msra.mxu0 %v3898
    %4410 = vmatprep.subr.mxu0 %v3901
    %4411 = vmatpush1.msra.mxu0 %v3900
    %4412 = vmatprep.subr.mxu0 %v3903
    %4413 = vmatpush1.msra.mxu0 %v3902
    %4414 = vmatprep.subr.mxu0 %v3905
    %4415 = vmatpush1.msra.mxu0 %v3904
    %4416 = vmatprep.subr.mxu0 %v3907
    %4417 = vmatpush1.msra.mxu0 %v3906
    %4418 = vmatprep.mubr.f32.mxu0 %v4131
    %4419 = vmatmul.mubr.f32.gmra.mrb[0].mxu0 %v4130
    %v4420 = vpop.f32.mrb[0].mxu0
    %v4421 = vadd.f32 %v4338, %v4420
    %v4422 = vpop.f32.mrb[0].mxu0
    %v4423 = vadd.f32 %v4340, %v4422
    %4424 = vmatprep.mubr.f32.mxu0 %v4183
    %4425 = vmatmul.mubr.f32.gmra.mrb[0].mxu0 %v4182
    %v4426 = vpop.f32.mrb[0].mxu0
    %v4427 = vadd.f32 %v4344, %v4426
    %v4428 = vpop.f32.mrb[0].mxu0
    %v4429 = vadd.f32 %v4346, %v4428
    %4430 = vmatprep.mubr.f32.mxu0 %v4235
    %4431 = vmatmul.mubr.f32.gmra.mrb[0].mxu0 %v4234
    %v4432 = vpop.f32.mrb[0].mxu0
    %v4433 = vadd.f32 %v4350, %v4432
    %v4434 = vpop.f32.mrb[0].mxu0
    %v4435 = vadd.f32 %v4352, %v4434
    %4436 = vdwg.mxu0
    %4437 = vmatprep.subr.mxu0 %v3909
    %4438 = vmatpush1.msra.mxu0 %v3908
    %4439 = vmatprep.subr.mxu0 %v3911
    %4440 = vmatpush1.msra.mxu0 %v3910
    %4441 = vmatprep.subr.mxu0 %v3913
    %4442 = vmatpush1.msra.mxu0 %v3912
    %4443 = vmatprep.subr.mxu0 %v3915
    %4444 = vmatpush1.msra.mxu0 %v3914
    %4445 = vmatprep.subr.mxu0 %v3917
    %4446 = vmatpush1.msra.mxu0 %v3916
    %4447 = vmatprep.subr.mxu0 %v3919
    %4448 = vmatpush1.msra.mxu0 %v3918
    %4449 = vmatprep.subr.mxu0 %v3921
    %4450 = vmatpush1.msra.mxu0 %v3920
    %4451 = vmatprep.subr.mxu0 %v3923
    %4452 = vmatpush1.msra.mxu0 %v3922
    %4453 = vmatprep.subr.mxu0 %v3925
    %4454 = vmatpush1.msra.mxu0 %v3924
    %4455 = vmatprep.subr.mxu0 %v3927
    %4456 = vmatpush1.msra.mxu0 %v3926
    %4457 = vmatprep.subr.mxu0 %v3929
    %4458 = vmatpush1.msra.mxu0 %v3928
    %4459 = vmatprep.subr.mxu0 %v3931
    %4460 = vmatpush1.msra.mxu0 %v3930
    %4461 = vmatprep.subr.mxu0 %v3933
    %4462 = vmatpush1.msra.mxu0 %v3932
    %4463 = vmatprep.subr.mxu0 %v3935
    %4464 = vmatpush1.msra.mxu0 %v3934
    %4465 = vmatprep.subr.mxu0 %v3937
    %4466 = vmatpush1.msra.mxu0 %v3936
    %4467 = vmatprep.subr.mxu0 %v3939
    %4468 = vmatpush1.msra.mxu0 %v3938
    %4469 = vmatprep.subr.mxu0 %v3941
    %4470 = vmatpush1.msra.mxu0 %v3940
    %4471 = vmatprep.subr.mxu0 %v3943
    %4472 = vmatpush1.msra.mxu0 %v3942
    %4473 = vmatprep.subr.mxu0 %v3945
    %4474 = vmatpush1.msra.mxu0 %v3944
    %4475 = vmatprep.subr.mxu0 %v3947
    %4476 = vmatpush1.msra.mxu0 %v3946
    %4477 = vmatprep.subr.mxu0 %v3949
    %4478 = vmatpush1.msra.mxu0 %v3948
    %4479 = vmatprep.subr.mxu0 %v3951
    %4480 = vmatpush1.msra.mxu0 %v3950
    %4481 = vmatprep.subr.mxu0 %v3953
    %4482 = vmatpush1.msra.mxu0 %v3952
    %4483 = vmatprep.subr.mxu0 %v3955
    %4484 = vmatpush1.msra.mxu0 %v3954
    %4485 = vmatprep.subr.mxu0 %v3957
    %4486 = vmatpush1.msra.mxu0 %v3956
    %4487 = vmatprep.subr.mxu0 %v3959
    %4488 = vmatpush1.msra.mxu0 %v3958
    %4489 = vmatprep.subr.mxu0 %v3961
    %4490 = vmatpush1.msra.mxu0 %v3960
    %4491 = vmatprep.subr.mxu0 %v3963
    %4492 = vmatpush1.msra.mxu0 %v3962
    %4493 = vmatprep.subr.mxu0 %v3965
    %4494 = vmatpush1.msra.mxu0 %v3964
    %4495 = vmatprep.subr.mxu0 %v3967
    %4496 = vmatpush1.msra.mxu0 %v3966
    %4497 = vmatprep.subr.mxu0 %v3969
    %4498 = vmatpush1.msra.mxu0 %v3968
    %4499 = vmatprep.subr.mxu0 %v3971
    %4500 = vmatpush1.msra.mxu0 %v3970
    %4501 = vmatprep.mubr.f32.mxu0 %v4147
    %4502 = vmatmul.mubr.f32.gmra.mrb[0].mxu0 %v4146
    %v4503 = vpop.f32.mrb[0].mxu0
    %v4504 = vadd.f32 %v4421, %v4503
    %v4505 = vpop.f32.mrb[0].mxu0
    %v4506 = vadd.f32 %v4423, %v4505
    %4507 = vmatprep.mubr.f32.mxu0 %v4199
    %4508 = vmatmul.mubr.f32.gmra.mrb[0].mxu0 %v4198
    %v4509 = vpop.f32.mrb[0].mxu0
    %v4510 = vadd.f32 %v4427, %v4509
    %v4511 = vpop.f32.mrb[0].mxu0
    %v4512 = vadd.f32 %v4429, %v4511
    %4513 = vmatprep.mubr.f32.mxu0 %v4252
    %4514 = vmatmul.mubr.f32.gmra.mrb[0].mxu0 %v4251
    %v4515 = vpop.f32.mrb[0].mxu0
    %v4516 = vadd.f32 %v4433, %v4515
    %v4517 = vpop.f32.mrb[0].mxu0
    %v4518 = vadd.f32 %v4435, %v4517
    %4519 = vdwg.mxu0
    %v4526 = vcombine.low %v4504, %v4506
    %v4527 = vcombine.high %v4504, %v4506
    %v4529 = vunpack.c.l.s4 1983009808
    %v4530 = vunpack.c.0.s8 %v4529
    %v4531 = vlaneseq
    %v4532 = vshrl.u32 %v4531, 7
    %v4533 = vsub.s32 %v4530, %v4532
    %v4534 = vrot.slane %v4526, %v4533
    %v4536 = vunpack.c.l.s4 1983009808
    %v4537 = vunpack.c.0.s8 %v4536
    %v4538 = vlaneseq
    %v4539 = vshrl.u32 %v4538, 7
    %v4540 = vsub.s32 %v4537, %v4539
    %v4541 = vrot.slane %v4527, %v4540
    %v4542 = vcombine.high %v4534, %v4534
    %v4543 = vcombine.high %v4541, %v4541
    %v4544 = vcombine.low %v4510, %v4512
    %v4545 = vcombine.high %v4510, %v4512
    %v4547 = vunpack.c.l.s4 1983009808
    %v4548 = vunpack.c.0.s8 %v4547
    %v4549 = vlaneseq
    %v4550 = vshrl.u32 %v4549, 7
    %v4551 = vsub.s32 %v4548, %v4550
    %v4552 = vrot.slane %v4544, %v4551
    %v4554 = vunpack.c.l.s4 1983009808
    %v4555 = vunpack.c.0.s8 %v4554
    %v4556 = vlaneseq
    %v4557 = vshrl.u32 %v4556, 7
    %v4558 = vsub.s32 %v4555, %v4557
    %v4559 = vrot.slane %v4545, %v4558
    %v4560 = vcombine.high %v4552, %v4552
    %v4561 = vcombine.high %v4559, %v4559
    %v4562 = vcombine.low %v4516, %v4518
    %v4563 = vcombine.high %v4516, %v4518
    %v4565 = vunpack.c.l.s4 1983009808
    %v4566 = vunpack.c.0.s8 %v4565
    %v4567 = vlaneseq
    %v4568 = vshrl.u32 %v4567, 7
    %v4569 = vsub.s32 %v4566, %v4568
    %v4570 = vrot.slane %v4562, %v4569
    %v4572 = vunpack.c.l.s4 1983009808
    %v4573 = vunpack.c.0.s8 %v4572
    %v4574 = vlaneseq
    %v4575 = vshrl.u32 %v4574, 7
    %v4576 = vsub.s32 %v4573, %v4575
    %v4577 = vrot.slane %v4563, %v4576
    %v4578 = vcombine.high %v4570, %v4570
    %v4579 = vcombine.high %v4577, %v4577
    %v4593 = vunpack.c.l.s4 1983009808
    %v4594 = vunpack.c.0.s8 %v4593
    %v4595 = vlaneseq
    %v4596 = vshrl.u32 %v4595, 7
    %v4597 = vsub.s32 %v4594, %v4596
    %v4598 = vrot.slane %v4534, %v4597
    %v4599 = vcombine.high %v4598, %v4598
    %v4601 = vunpack.c.l.s4 1983009808
    %v4602 = vunpack.c.0.s8 %v4601
    %v4603 = vlaneseq
    %v4604 = vshrl.u32 %v4603, 7
    %v4605 = vsub.s32 %v4602, %v4604
    %v4606 = vrot.slane %v4542, %v4605
    %v4607 = vcombine.high %v4606, %v4606
    %v4609 = vunpack.c.l.s4 1983009808
    %v4610 = vunpack.c.0.s8 %v4609
    %v4611 = vlaneseq
    %v4612 = vshrl.u32 %v4611, 7
    %v4613 = vsub.s32 %v4610, %v4612
    %v4614 = vrot.slane %v4541, %v4613
    %v4615 = vcombine.high %v4614, %v4614
    %v4617 = vunpack.c.l.s4 1983009808
    %v4618 = vunpack.c.0.s8 %v4617
    %v4619 = vlaneseq
    %v4620 = vshrl.u32 %v4619, 7
    %v4621 = vsub.s32 %v4618, %v4620
    %v4622 = vrot.slane %v4543, %v4621
    %v4623 = vcombine.high %v4622, %v4622
    %v4625 = vunpack.c.l.s4 1983009808
    %v4626 = vunpack.c.0.s8 %v4625
    %v4627 = vlaneseq
    %v4628 = vshrl.u32 %v4627, 7
    %v4629 = vsub.s32 %v4626, %v4628
    %v4630 = vrot.slane %v4552, %v4629
    %v4631 = vcombine.high %v4630, %v4630
    %v4633 = vunpack.c.l.s4 1983009808
    %v4634 = vunpack.c.0.s8 %v4633
    %v4635 = vlaneseq
    %v4636 = vshrl.u32 %v4635, 7
    %v4637 = vsub.s32 %v4634, %v4636
    %v4638 = vrot.slane %v4560, %v4637
    %v4639 = vcombine.high %v4638, %v4638
    %v4641 = vunpack.c.l.s4 1983009808
    %v4642 = vunpack.c.0.s8 %v4641
    %v4643 = vlaneseq
    %v4644 = vshrl.u32 %v4643, 7
    %v4645 = vsub.s32 %v4642, %v4644
    %v4646 = vrot.slane %v4559, %v4645
    %v4647 = vcombine.high %v4646, %v4646
    %v4649 = vunpack.c.l.s4 1983009808
    %v4650 = vunpack.c.0.s8 %v4649
    %v4651 = vlaneseq
    %v4652 = vshrl.u32 %v4651, 7
    %v4653 = vsub.s32 %v4650, %v4652
    %v4654 = vrot.slane %v4561, %v4653
    %v4655 = vcombine.high %v4654, %v4654
    %v4657 = vunpack.c.l.s4 1983009808
    %v4658 = vunpack.c.0.s8 %v4657
    %v4659 = vlaneseq
    %v4660 = vshrl.u32 %v4659, 7
    %v4661 = vsub.s32 %v4658, %v4660
    %v4662 = vrot.slane %v4570, %v4661
    %v4663 = vcombine.high %v4662, %v4662
    %v4665 = vunpack.c.l.s4 1983009808
    %v4666 = vunpack.c.0.s8 %v4665
    %v4667 = vlaneseq
    %v4668 = vshrl.u32 %v4667, 7
    %v4669 = vsub.s32 %v4666, %v4668
    %v4670 = vrot.slane %v4578, %v4669
    %v4671 = vcombine.high %v4670, %v4670
    %v4673 = vunpack.c.l.s4 1983009808
    %v4674 = vunpack.c.0.s8 %v4673
    %v4675 = vlaneseq
    %v4676 = vshrl.u32 %v4675, 7
    %v4677 = vsub.s32 %v4674, %v4676
    %v4678 = vrot.slane %v4577, %v4677
    %v4679 = vcombine.high %v4678, %v4678
    %v4681 = vunpack.c.l.s4 1983009808
    %v4682 = vunpack.c.0.s8 %v4681
    %v4683 = vlaneseq
    %v4684 = vshrl.u32 %v4683, 7
    %v4685 = vsub.s32 %v4682, %v4684
    %v4686 = vrot.slane %v4579, %v4685
    %v4687 = vcombine.high %v4686, %v4686
    %v4712 = vsel %vm3216, %v4598, 0.0
    %v4713 = vsel %vm3216, %v4606, 0.0
    %v4714 = vadd.f32 %v4712, %v4713
    %v4715 = vsel %vm3216, %v4614, 0.0
    %v4716 = vadd.f32 %v4714, %v4715
    %v4717 = vsel %vm3216, %v4622, 0.0
    %v4718 = vadd.f32 %v4716, %v4717
    %v4719 = vsel %vm3216, %v4630, 0.0
    %v4720 = vadd.f32 %v4718, %v4719
    %v4721 = vsel %vm3216, %v4638, 0.0
    %v4722 = vadd.f32 %v4720, %v4721
    %v4723 = vsel %vm3216, %v4646, 0.0
    %v4724 = vadd.f32 %v4722, %v4723
    %v4725 = vsel %vm3216, %v4654, 0.0
    %v4726 = vadd.f32 %v4724, %v4725
    %v4727 = vsel %vm3216, %v4662, 0.0
    %v4728 = vadd.f32 %v4726, %v4727
    %v4729 = vsel %vm3216, %v4670, 0.0
    %v4730 = vadd.f32 %v4728, %v4729
    %v4731 = vsel %vm3216, %v4678, 0.0
    %v4732 = vadd.f32 %v4730, %v4731
    %v4733 = vsel %vm3216, %v4686, 0.0
    %v4734 = vadd.f32 %v4732, %v4733
    %v4735 = vrot.slane %v4734, 4
    %v4736 = vadd.f32 %v4734, %v4735
    %v4737 = vrot.slane %v4736, 2
    %v4738 = vadd.f32 %v4736, %v4737
    %v4739 = vrot.slane %v4738, 1
    %v4740 = vadd.f32 %v4738, %v4739
    %v4741 = vsel %vm3216, %v4599, 0.0
    %v4742 = vsel %vm3216, %v4607, 0.0
    %v4743 = vadd.f32 %v4741, %v4742
    %v4744 = vsel %vm3216, %v4615, 0.0
    %v4745 = vadd.f32 %v4743, %v4744
    %v4746 = vsel %vm3216, %v4623, 0.0
    %v4747 = vadd.f32 %v4745, %v4746
    %v4748 = vsel %vm3216, %v4631, 0.0
    %v4749 = vadd.f32 %v4747, %v4748
    %v4750 = vsel %vm3216, %v4639, 0.0
    %v4751 = vadd.f32 %v4749, %v4750
    %v4752 = vsel %vm3216, %v4647, 0.0
    %v4753 = vadd.f32 %v4751, %v4752
    %v4754 = vsel %vm3216, %v4655, 0.0
    %v4755 = vadd.f32 %v4753, %v4754
    %v4756 = vsel %vm3216, %v4663, 0.0
    %v4757 = vadd.f32 %v4755, %v4756
    %v4758 = vsel %vm3216, %v4671, 0.0
    %v4759 = vadd.f32 %v4757, %v4758
    %v4760 = vsel %vm3216, %v4679, 0.0
    %v4761 = vadd.f32 %v4759, %v4760
    %v4762 = vsel %vm3216, %v4687, 0.0
    %v4763 = vadd.f32 %v4761, %v4762
    %v4764 = vrot.slane %v4763, 4
    %v4765 = vadd.f32 %v4763, %v4764
    %v4766 = vrot.slane %v4765, 2
    %v4767 = vadd.f32 %v4765, %v4766
    %v4768 = vrot.slane %v4767, 1
    %v4769 = vadd.f32 %v4767, %v4768
    %v4770 = vrcp.pop 24.0
    %v4771 = vmul.f32 %v4740, %v4770
    %v4772 = vmul.f32 %v4769, %v4770
    %v4773 = vmul.f32 %v4534, %v4534
    %v4774 = vmul.f32 %v4542, %v4542
    %v4775 = vmul.f32 %v4541, %v4541
    %v4776 = vmul.f32 %v4543, %v4543
    %v4777 = vmul.f32 %v4552, %v4552
    %v4778 = vmul.f32 %v4560, %v4560
    %v4779 = vmul.f32 %v4559, %v4559
    %v4780 = vmul.f32 %v4561, %v4561
    %v4781 = vmul.f32 %v4570, %v4570
    %v4782 = vmul.f32 %v4578, %v4578
    %v4783 = vmul.f32 %v4577, %v4577
    %v4784 = vmul.f32 %v4579, %v4579
    %v4798 = vunpack.c.l.s4 1983009808
    %v4799 = vunpack.c.0.s8 %v4798
    %v4800 = vlaneseq
    %v4801 = vshrl.u32 %v4800, 7
    %v4802 = vsub.s32 %v4799, %v4801
    %v4803 = vrot.slane %v4773, %v4802
    %v4804 = vcombine.high %v4803, %v4803
    %v4806 = vunpack.c.l.s4 1983009808
    %v4807 = vunpack.c.0.s8 %v4806
    %v4808 = vlaneseq
    %v4809 = vshrl.u32 %v4808, 7
    %v4810 = vsub.s32 %v4807, %v4809
    %v4811 = vrot.slane %v4774, %v4810
    %v4812 = vcombine.high %v4811, %v4811
    %v4814 = vunpack.c.l.s4 1983009808
    %v4815 = vunpack.c.0.s8 %v4814
    %v4816 = vlaneseq
    %v4817 = vshrl.u32 %v4816, 7
    %v4818 = vsub.s32 %v4815, %v4817
    %v4819 = vrot.slane %v4775, %v4818
    %v4820 = vcombine.high %v4819, %v4819
    %v4822 = vunpack.c.l.s4 1983009808
    %v4823 = vunpack.c.0.s8 %v4822
    %v4824 = vlaneseq
    %v4825 = vshrl.u32 %v4824, 7
    %v4826 = vsub.s32 %v4823, %v4825
    %v4827 = vrot.slane %v4776, %v4826
    %v4828 = vcombine.high %v4827, %v4827
    %v4830 = vunpack.c.l.s4 1983009808
    %v4831 = vunpack.c.0.s8 %v4830
    %v4832 = vlaneseq
    %v4833 = vshrl.u32 %v4832, 7
    %v4834 = vsub.s32 %v4831, %v4833
    %v4835 = vrot.slane %v4777, %v4834
    %v4836 = vcombine.high %v4835, %v4835
    %v4838 = vunpack.c.l.s4 1983009808
    %v4839 = vunpack.c.0.s8 %v4838
    %v4840 = vlaneseq
    %v4841 = vshrl.u32 %v4840, 7
    %v4842 = vsub.s32 %v4839, %v4841
    %v4843 = vrot.slane %v4778, %v4842
    %v4844 = vcombine.high %v4843, %v4843
    %v4846 = vunpack.c.l.s4 1983009808
    %v4847 = vunpack.c.0.s8 %v4846
    %v4848 = vlaneseq
    %v4849 = vshrl.u32 %v4848, 7
    %v4850 = vsub.s32 %v4847, %v4849
    %v4851 = vrot.slane %v4779, %v4850
    %v4852 = vcombine.high %v4851, %v4851
    %v4854 = vunpack.c.l.s4 1983009808
    %v4855 = vunpack.c.0.s8 %v4854
    %v4856 = vlaneseq
    %v4857 = vshrl.u32 %v4856, 7
    %v4858 = vsub.s32 %v4855, %v4857
    %v4859 = vrot.slane %v4780, %v4858
    %v4860 = vcombine.high %v4859, %v4859
    %v4862 = vunpack.c.l.s4 1983009808
    %v4863 = vunpack.c.0.s8 %v4862
    %v4864 = vlaneseq
    %v4865 = vshrl.u32 %v4864, 7
    %v4866 = vsub.s32 %v4863, %v4865
    %v4867 = vrot.slane %v4781, %v4866
    %v4868 = vcombine.high %v4867, %v4867
    %v4870 = vunpack.c.l.s4 1983009808
    %v4871 = vunpack.c.0.s8 %v4870
    %v4872 = vlaneseq
    %v4873 = vshrl.u32 %v4872, 7
    %v4874 = vsub.s32 %v4871, %v4873
    %v4875 = vrot.slane %v4782, %v4874
    %v4876 = vcombine.high %v4875, %v4875
    %v4878 = vunpack.c.l.s4 1983009808
    %v4879 = vunpack.c.0.s8 %v4878
    %v4880 = vlaneseq
    %v4881 = vshrl.u32 %v4880, 7
    %v4882 = vsub.s32 %v4879, %v4881
    %v4883 = vrot.slane %v4783, %v4882
    %v4884 = vcombine.high %v4883, %v4883
    %v4886 = vunpack.c.l.s4 1983009808
    %v4887 = vunpack.c.0.s8 %v4886
    %v4888 = vlaneseq
    %v4889 = vshrl.u32 %v4888, 7
    %v4890 = vsub.s32 %v4887, %v4889
    %v4891 = vrot.slane %v4784, %v4890
    %v4892 = vcombine.high %v4891, %v4891
    %v4917 = vsel %vm3216, %v4803, 0.0
    %v4918 = vsel %vm3216, %v4811, 0.0
    %v4919 = vadd.f32 %v4917, %v4918
    %v4920 = vsel %vm3216, %v4819, 0.0
    %v4921 = vadd.f32 %v4919, %v4920
    %v4922 = vsel %vm3216, %v4827, 0.0
    %v4923 = vadd.f32 %v4921, %v4922
    %v4924 = vsel %vm3216, %v4835, 0.0
    %v4925 = vadd.f32 %v4923, %v4924
    %v4926 = vsel %vm3216, %v4843, 0.0
    %v4927 = vadd.f32 %v4925, %v4926
    %v4928 = vsel %vm3216, %v4851, 0.0
    %v4929 = vadd.f32 %v4927, %v4928
    %v4930 = vsel %vm3216, %v4859, 0.0
    %v4931 = vadd.f32 %v4929, %v4930
    %v4932 = vsel %vm3216, %v4867, 0.0
    %v4933 = vadd.f32 %v4931, %v4932
    %v4934 = vsel %vm3216, %v4875, 0.0
    %v4935 = vadd.f32 %v4933, %v4934
    %v4936 = vsel %vm3216, %v4883, 0.0
    %v4937 = vadd.f32 %v4935, %v4936
    %v4938 = vsel %vm3216, %v4891, 0.0
    %v4939 = vadd.f32 %v4937, %v4938
    %v4940 = vrot.slane %v4939, 4
    %v4941 = vadd.f32 %v4939, %v4940
    %v4942 = vrot.slane %v4941, 2
    %v4943 = vadd.f32 %v4941, %v4942
    %v4944 = vrot.slane %v4943, 1
    %v4945 = vadd.f32 %v4943, %v4944
    %v4946 = vsel %vm3216, %v4804, 0.0
    %v4947 = vsel %vm3216, %v4812, 0.0
    %v4948 = vadd.f32 %v4946, %v4947
    %v4949 = vsel %vm3216, %v4820, 0.0
    %v4950 = vadd.f32 %v4948, %v4949
    %v4951 = vsel %vm3216, %v4828, 0.0
    %v4952 = vadd.f32 %v4950, %v4951
    %v4953 = vsel %vm3216, %v4836, 0.0
    %v4954 = vadd.f32 %v4952, %v4953
    %v4955 = vsel %vm3216, %v4844, 0.0
    %v4956 = vadd.f32 %v4954, %v4955
    %v4957 = vsel %vm3216, %v4852, 0.0
    %v4958 = vadd.f32 %v4956, %v4957
    %v4959 = vsel %vm3216, %v4860, 0.0
    %v4960 = vadd.f32 %v4958, %v4959
    %v4961 = vsel %vm3216, %v4868, 0.0
    %v4962 = vadd.f32 %v4960, %v4961
    %v4963 = vsel %vm3216, %v4876, 0.0
    %v4964 = vadd.f32 %v4962, %v4963
    %v4965 = vsel %vm3216, %v4884, 0.0
    %v4966 = vadd.f32 %v4964, %v4965
    %v4967 = vsel %vm3216, %v4892, 0.0
    %v4968 = vadd.f32 %v4966, %v4967
    %v4969 = vrot.slane %v4968, 4
    %v4970 = vadd.f32 %v4968, %v4969
    %v4971 = vrot.slane %v4970, 2
    %v4972 = vadd.f32 %v4970, %v4971
    %v4973 = vrot.slane %v4972, 1
    %v4974 = vadd.f32 %v4972, %v4973
    %v4975 = vmul.f32 %v4945, %v4770
    %v4976 = vmul.f32 %v4974, %v4770
    %v4977 = vmul.f32 %v4771, %v4771
    %v4978 = vmul.f32 %v4772, %v4772
    %v4979 = vsub.f32 %v4975, %v4977
    %v4980 = vsub.f32 %v4976, %v4978
    %v4981 = vmax.f32 %v4979, 0.0
    %v4982 = vmax.f32 %v4980, 0.0
    %v4983 = vld [vmem:[%s10] sm:$0x3]
    %v4984 = vadd.f32 %v4981, 1e-05
    %v4985 = vadd.f32 %v4982, 1e-05
    %v4986 = vrsqrt.pop %v4984
    %v4987 = vrsqrt.pop %v4985
    %v4990 = vcombine.low %v4986, %v4987
    %v4992 = vunpack.c.l.s4 1966171168
    %v4993 = vunpack.c.0.s8 %v4992
    %v4994 = vlaneseq
    %v4995 = vshrl.u32 %v4994, 7
    %v4996 = vsub.s32 %v4993, %v4995
    %v4997 = vrot.slane %v4990, %v4996
    %v4999 = vunpack.c.l.s4 1966171168
    %v5000 = vunpack.c.0.s8 %v4999
    %v5001 = vlaneseq
    %v5002 = vshrl.u32 %v5001, 7
    %v5003 = vsub.s32 %v5000, %v5002
    %v5004 = vrot.slane %v4997, %v5003
    %v5006 = vmul.f32 %v4983, %v5004
    %v5007 = vld [vmem:[%s11] sm:$0x3]
    %v5009 = vlaneseq
    %v5010 = vshrl.u32 %v5009, 7
    %v5011 = vsub.s32 0, %v5010
    %v5012 = vrot.slane %v5006, %v5011
    %v5013 = vlaneseq
    %v5014 = vshrl.u32 %v5013, 7
    %v5015 = vsub.s32 1, %v5014
    %v5016 = vrot.slane %v5006, %v5015
    %v5019 = vmul.f32 %v4771, %v5012
    %v5020 = vmul.f32 %v4772, %v5016
    %v5023 = vcombine.low %v5019, %v5020
    %v5025 = vunpack.c.l.s4 1966171168
    %v5026 = vunpack.c.0.s8 %v5025
    %v5027 = vlaneseq
    %v5028 = vshrl.u32 %v5027, 7
    %v5029 = vsub.s32 %v5026, %v5028
    %v5030 = vrot.slane %v5023, %v5029
    %v5032 = vunpack.c.l.s4 1966171168
    %v5033 = vunpack.c.0.s8 %v5032
    %v5034 = vlaneseq
    %v5035 = vshrl.u32 %v5034, 7
    %v5036 = vsub.s32 %v5033, %v5035
    %v5037 = vrot.slane %v5030, %v5036
    %v5039 = vsub.f32 %v5007, %v5037
    %v5040 = vcombine.low %v5012, %v5016
    %v5042 = vunpack.c.l.s4 1983009808
    %v5043 = vunpack.c.0.s8 %v5042
    %v5044 = vlaneseq
    %v5045 = vshrl.u32 %v5044, 7
    %v5046 = vsub.s32 %v5043, %v5045
    %v5047 = vrot.slane %v5040, %v5046
    %v5049 = vmul.f32 %v4534, %v5047
    %v5050 = vmul.f32 %v4542, %v5047
    %v5051 = vmul.f32 %v4541, %v5047
    %v5052 = vmul.f32 %v4543, %v5047
    %v5053 = vmul.f32 %v4552, %v5047
    %v5054 = vmul.f32 %v4560, %v5047
    %v5055 = vmul.f32 %v4559, %v5047
    %v5056 = vmul.f32 %v4561, %v5047
    %v5057 = vmul.f32 %v4570, %v5047
    %v5058 = vmul.f32 %v4578, %v5047
    %v5059 = vmul.f32 %v4577, %v5047
    %v5060 = vmul.f32 %v4579, %v5047
    %v5062 = vlaneseq
    %v5063 = vshrl.u32 %v5062, 7
    %v5064 = vsub.s32 0, %v5063
    %v5065 = vrot.slane %v5039, %v5064
    %v5066 = vlaneseq
    %v5067 = vshrl.u32 %v5066, 7
    %v5068 = vsub.s32 1, %v5067
    %v5069 = vrot.slane %v5039, %v5068
    %v5070 = vcombine.low %v5065, %v5069
    %v5072 = vunpack.c.l.s4 1983009808
    %v5073 = vunpack.c.0.s8 %v5072
    %v5074 = vlaneseq
    %v5075 = vshrl.u32 %v5074, 7
    %v5076 = vsub.s32 %v5073, %v5075
    %v5077 = vrot.slane %v5070, %v5076
    %v5079 = vadd.f32 %v5049, %v5077
    %v5080 = vadd.f32 %v5050, %v5077
    %v5081 = vadd.f32 %v5051, %v5077
    %v5082 = vadd.f32 %v5052, %v5077
    %v5083 = vadd.f32 %v5053, %v5077
    %v5084 = vadd.f32 %v5054, %v5077
    %v5085 = vadd.f32 %v5055, %v5077
    %v5086 = vadd.f32 %v5056, %v5077
    %v5087 = vadd.f32 %v5057, %v5077
    %v5088 = vadd.f32 %v5058, %v5077
    %v5089 = vadd.f32 %v5059, %v5077
    %v5090 = vadd.f32 %v5060, %v5077
    %v5091 = vmax.f32 %v5079, 0.0
    %v5092 = vmax.f32 %v5080, 0.0
    %v5093 = vmax.f32 %v5081, 0.0
    %v5094 = vmax.f32 %v5082, 0.0
    %v5095 = vmax.f32 %v5083, 0.0
    %v5096 = vmax.f32 %v5084, 0.0
    %v5097 = vmax.f32 %v5085, 0.0
    %v5098 = vmax.f32 %v5086, 0.0
    %v5099 = vmax.f32 %v5087, 0.0
    %v5100 = vmax.f32 %v5088, 0.0
    %v5101 = vmax.f32 %v5089, 0.0
    %v5102 = vmax.f32 %v5090, 0.0
    %vm5103 = vcmask 1043458
    %vm5104 = vmor %vm5103, %vm3216
    %v5105 = vsel %vm5104, %v5091, -inf
    %v5106 = vsel %vm5104, %v5092, -inf
    %v5107 = vsel %vm5104, %v5093, -inf
    %v5108 = vsel %vm5104, %v5094, -inf
    %v5109 = vsel %vm5104, %v5095, -inf
    %v5110 = vmax.f32 %v5105, %v5109
    %v5111 = vsel %vm5104, %v5096, -inf
    %v5112 = vmax.f32 %v5106, %v5111
    %v5113 = vsel %vm5104, %v5097, -inf
    %v5114 = vmax.f32 %v5107, %v5113
    %v5115 = vsel %vm5104, %v5098, -inf
    %v5116 = vmax.f32 %v5108, %v5115
    %v5117 = vsel %vm5104, %v5099, -inf
    %v5118 = vmax.f32 %v5110, %v5117
    %v5119 = vsel %vm5104, %v5100, -inf
    %v5120 = vmax.f32 %v5112, %v5119
    %v5121 = vsel %vm5104, %v5101, -inf
    %v5122 = vmax.f32 %v5114, %v5121
    %v5123 = vsel %vm5104, %v5102, -inf
    %v5124 = vmax.f32 %v5116, %v5123
    %v5125 = vmax.f32 %v5118, %v5120
    %v5126 = vmax.f32 %v5122, %v5124
    %v5127 = vmax.f32 %v5125, %v5126
    %v5128 = vld [vmem:[%s12] sm:$0xff]
    %v5129 = vld [vmem:[%s12 + $0x8] sm:$0xff]
    %v5130 = vld [vmem:[%s12 + $0x10] sm:$0xff]
    %v5131 = vld [vmem:[%s12 + $0x18] sm:$0xff]
    %v5132 = vld [vmem:[%s12 + $0x20] sm:$0xff]
    %v5133 = vld [vmem:[%s12 + $0x28] sm:$0xff]
    %v5134 = vld [vmem:[%s12 + $0x30] sm:$0xff]
    %v5135 = vld [vmem:[%s12 + $0x38] sm:$0xff]
    %v5136 = vld [vmem:[%s12 + $0x40] sm:$0xff]
    %v5137 = vld [vmem:[%s12 + $0x48] sm:$0xff]
    %v5138 = vld [vmem:[%s12 + $0x50] sm:$0xff]
    %v5139 = vld [vmem:[%s12 + $0x58] sm:$0xff]
    %v5140 = vld [vmem:[%s12 + $0x60] sm:$0xff]
    %v5141 = vld [vmem:[%s12 + $0x68] sm:$0xff]
    %v5142 = vld [vmem:[%s12 + $0x70] sm:$0xff]
    %v5143 = vld [vmem:[%s12 + $0x78] sm:$0xff]
    %v5144 = vld [vmem:[%s12 + $0x80] sm:$0xff]
    %v5145 = vld [vmem:[%s12 + $0x88] sm:$0xff]
    %v5146 = vld [vmem:[%s12 + $0x90] sm:$0xff]
    %v5147 = vld [vmem:[%s12 + $0x98] sm:$0xff]
    %v5148 = vld [vmem:[%s12 + $0xa0] sm:$0xff]
    %v5149 = vld [vmem:[%s12 + $0xa8] sm:$0xff]
    %v5150 = vld [vmem:[%s12 + $0xb0] sm:$0xff]
    %v5151 = vld [vmem:[%s12 + $0xb8] sm:$0xff]
    %v5152 = vld [vmem:[%s12 + $0xc0] sm:$0xff]
    %v5153 = vld [vmem:[%s12 + $0xc8] sm:$0xff]
    %v5154 = vld [vmem:[%s12 + $0xd0] sm:$0xff]
    %v5155 = vld [vmem:[%s12 + $0xd8] sm:$0xff]
    %v5156 = vld [vmem:[%s12 + $0xe0] sm:$0xff]
    %v5157 = vld [vmem:[%s12 + $0xe8] sm:$0xff]
    %v5158 = vld [vmem:[%s12 + $0xf0] sm:$0xff]
    %v5159 = vld [vmem:[%s12 + $0xf8] sm:$0xff]
    %v5160 = vld [vmem:[%s13] sm:$0x1]
    %v5162 = vlaneseq
    %v5163 = vshrl.u32 %v5162, 7
    %v5164 = vsub.s32 0, %v5163
    %v5165 = vrot.slane %v5160, %v5164
    %v5169 = vunpack.c.l.s4 1983009808
    %v5170 = vunpack.c.0.s8 %v5169
    %v5171 = vlaneseq
    %v5172 = vshrl.u32 %v5171, 7
    %v5173 = vsub.s32 %v5170, %v5172
    %v5174 = vrot.slane %v5127, %v5173
    %v5175 = vcombine.high %v5174, %v5174
    %5178 = vmatprep.subr.mxu0 0.0
    %5179 = vmatpush1.msra.mxu0 %v5128
    %5180 = vmatprep.subr.mxu0 0.0
    %5181 = vmatpush1.msra.mxu0 %v5129
    %5182 = vmatprep.subr.mxu0 0.0
    %5183 = vmatpush1.msra.mxu0 %v5130
    %5184 = vmatprep.subr.mxu0 0.0
    %5185 = vmatpush1.msra.mxu0 %v5131
    %5186 = vmatprep.subr.mxu0 0.0
    %5187 = vmatpush1.msra.mxu0 %v5132
    %5188 = vmatprep.subr.mxu0 0.0
    %5189 = vmatpush1.msra.mxu0 %v5133
    %5190 = vmatprep.subr.mxu0 0.0
    %5191 = vmatpush1.msra.mxu0 %v5134
    %5192 = vmatprep.subr.mxu0 0.0
    %5193 = vmatpush1.msra.mxu0 %v5135
    %5194 = vmatprep.subr.mxu0 0.0
    %5195 = vmatpush1.msra.mxu0 %v5136
    %5196 = vmatprep.subr.mxu0 0.0
    %5197 = vmatpush1.msra.mxu0 %v5137
    %5198 = vmatprep.subr.mxu0 0.0
    %5199 = vmatpush1.msra.mxu0 %v5138
    %5200 = vmatprep.subr.mxu0 0.0
    %5201 = vmatpush1.msra.mxu0 %v5139
    %5202 = vmatprep.subr.mxu0 0.0
    %5203 = vmatpush1.msra.mxu0 %v5140
    %5204 = vmatprep.subr.mxu0 0.0
    %5205 = vmatpush1.msra.mxu0 %v5141
    %5206 = vmatprep.subr.mxu0 0.0
    %5207 = vmatpush1.msra.mxu0 %v5142
    %5208 = vmatprep.subr.mxu0 0.0
    %5209 = vmatpush1.msra.mxu0 %v5143
    %5210 = vmatprep.subr.mxu0 0.0
    %5211 = vmatpush1.msra.mxu0 %v5144
    %5212 = vmatprep.subr.mxu0 0.0
    %5213 = vmatpush1.msra.mxu0 %v5145
    %5214 = vmatprep.subr.mxu0 0.0
    %5215 = vmatpush1.msra.mxu0 %v5146
    %5216 = vmatprep.subr.mxu0 0.0
    %5217 = vmatpush1.msra.mxu0 %v5147
    %5218 = vmatprep.subr.mxu0 0.0
    %5219 = vmatpush1.msra.mxu0 %v5148
    %5220 = vmatprep.subr.mxu0 0.0
    %5221 = vmatpush1.msra.mxu0 %v5149
    %5222 = vmatprep.subr.mxu0 0.0
    %5223 = vmatpush1.msra.mxu0 %v5150
    %5224 = vmatprep.subr.mxu0 0.0
    %5225 = vmatpush1.msra.mxu0 %v5151
    %5226 = vmatprep.subr.mxu0 0.0
    %5227 = vmatpush1.msra.mxu0 %v5152
    %5228 = vmatprep.subr.mxu0 0.0
    %5229 = vmatpush1.msra.mxu0 %v5153
    %5230 = vmatprep.subr.mxu0 0.0
    %5231 = vmatpush1.msra.mxu0 %v5154
    %5232 = vmatprep.subr.mxu0 0.0
    %5233 = vmatpush1.msra.mxu0 %v5155
    %5234 = vmatprep.subr.mxu0 0.0
    %5235 = vmatpush1.msra.mxu0 %v5156
    %5236 = vmatprep.subr.mxu0 0.0
    %5237 = vmatpush1.msra.mxu0 %v5157
    %5238 = vmatprep.subr.mxu0 0.0
    %5239 = vmatpush1.msra.mxu0 %v5158
    %5240 = vmatprep.subr.mxu0 0.0
    %5241 = vmatpush1.msra.mxu0 %v5159
    %5242 = vmatprep.mubr.f32.mxu0 %v5175
    %5243 = vmatmul.mubr.f32.gmra.mrb[0].mxu0 %v5174
    %v5244 = vpop.f32.mrb[0].mxu0
    %v5245 = vadd.f32 %v5165, %v5244
    %v5246 = vpop.f32.mrb[0].mxu0
    %5247 = vdwg.mxu0
    %vm5248 = vcmask 517120
    %v5249 = vsel %vm5248, %v5245, 0.0
    %v5250 = vrot.slane %v5249, 4
    %v5251 = vadd.f32 %v5249, %v5250
    %v5252 = vrot.slane %v5251, 2
    %v5253 = vadd.f32 %v5251, %v5252
    %v5254 = vrot.slane %v5253, 1
    %v5255 = vadd.f32 %v5253, %v5254
    %v5256 = vrcp.pop 2.0
    %v5257 = vmul.f32 %v5255, %v5256
    %v5258 = vmul.f32 %v5245, %v5245
    %v5259 = vsel %vm5248, %v5258, 0.0
    %v5260 = vrot.slane %v5259, 4
    %v5261 = vadd.f32 %v5259, %v5260
    %v5262 = vrot.slane %v5261, 2
    %v5263 = vadd.f32 %v5261, %v5262
    %v5264 = vrot.slane %v5263, 1
    %v5265 = vadd.f32 %v5263, %v5264
    %v5266 = vmul.f32 %v5265, %v5256
    %v5267 = vmul.f32 %v5257, %v5257
    %v5268 = vsub.f32 %v5266, %v5267
    %v5269 = vmax.f32 %v5268, 0.0
    %v5270 = vld [vmem:[%s14] sm:$0x1]
    %v5271 = vadd.f32 %v5269, 1e-05
    %v5272 = vrsqrt.pop %v5271
    %v5273 = vmul.f32 %v5270, %v5272
    %v5275 = vlaneseq
    %v5276 = vshrl.u32 %v5275, 7
    %v5277 = vsub.s32 0, %v5276
    %v5278 = vrot.slane %v5273, %v5277
    %v5280 = vmul.f32 %v5245, %v5278
    %v5281 = vld [vmem:[%s15] sm:$0x1]
    %v5282 = vmul.f32 %v5257, %v5273
    %v5283 = vsub.f32 %v5281, %v5282
    %v5285 = vlaneseq
    %v5286 = vshrl.u32 %v5285, 7
    %v5287 = vsub.s32 0, %v5286
    %v5288 = vrot.slane %v5283, %v5287
    %v5290 = vadd.f32 %v5280, %v5288
    %v5291 = vmax.f32 %v5290, 0.0
    %v5292 = vld [vmem:[%s16] sm:$0xff]
    %v5293 = vld [vmem:[%s16 + $0x8] sm:$0xff]
    %v5294 = vld [vmem:[%s16 + $0x10] sm:$0xff]
    %v5295 = vld [vmem:[%s16 + $0x18] sm:$0xff]
    %v5296 = vld [vmem:[%s16 + $0x20] sm:$0xff]
    %v5297 = vld [vmem:[%s16 + $0x28] sm:$0xff]
    %v5298 = vld [vmem:[%s16 + $0x30] sm:$0xff]
    %v5299 = vld [vmem:[%s16 + $0x38] sm:$0xff]
    %v5300 = vld [vmem:[%s17] sm:$0x1]
    %v5302 = vlaneseq
    %v5303 = vshrl.u32 %v5302, 7
    %v5304 = vsub.s32 0, %v5303
    %v5305 = vrot.slane %v5300, %v5304
    %v5308 = vsel %vm219, %v5291, 0
    %5310 = vmatprep.subr.mxu0 0.0
    %5311 = vmatpush1.msra.mxu0 %v5292
    %5312 = vmatprep.subr.mxu0 0.0
    %5313 = vmatpush1.msra.mxu0 %v5293
    %5314 = vmatprep.subr.mxu0 0.0
    %5315 = vmatpush1.msra.mxu0 %v5294
    %5316 = vmatprep.subr.mxu0 0.0
    %5317 = vmatpush1.msra.mxu0 %v5295
    %5318 = vmatprep.subr.mxu0 0.0
    %5319 = vmatpush1.msra.mxu0 %v5296
    %5320 = vmatprep.subr.mxu0 0.0
    %5321 = vmatpush1.msra.mxu0 %v5297
    %5322 = vmatprep.subr.mxu0 0.0
    %5323 = vmatpush1.msra.mxu0 %v5298
    %5324 = vmatprep.subr.mxu0 0.0
    %5325 = vmatpush1.msra.mxu0 %v5299
    %5326 = vmatprep.subr.mxu0 0.0
    %5327 = vmatpush1.msra.mxu0 0.0
    %5328 = vmatprep.subr.mxu0 0.0
    %5329 = vmatpush1.msra.mxu0 0.0
    %5330 = vmatprep.subr.mxu0 0.0
    %5331 = vmatpush1.msra.mxu0 0.0
    %5332 = vmatprep.subr.mxu0 0.0
    %5333 = vmatpush1.msra.mxu0 0.0
    %5334 = vmatprep.subr.mxu0 0.0
    %5335 = vmatpush1.msra.mxu0 0.0
    %5336 = vmatprep.subr.mxu0 0.0
    %5337 = vmatpush1.msra.mxu0 0.0
    %5338 = vmatprep.subr.mxu0 0.0
    %5339 = vmatpush1.msra.mxu0 0.0
    %5340 = vmatprep.subr.mxu0 0.0
    %5341 = vmatpush1.msra.mxu0 0.0
    %5342 = vmatprep.subr.mxu0 0.0
    %5343 = vmatpush1.msra.mxu0 0.0
    %5344 = vmatprep.subr.mxu0 0.0
    %5345 = vmatpush1.msra.mxu0 0.0
    %5346 = vmatprep.subr.mxu0 0.0
    %5347 = vmatpush1.msra.mxu0 0.0
    %5348 = vmatprep.subr.mxu0 0.0
    %5349 = vmatpush1.msra.mxu0 0.0
    %5350 = vmatprep.subr.mxu0 0.0
    %5351 = vmatpush1.msra.mxu0 0.0
    %5352 = vmatprep.subr.mxu0 0.0
    %5353 = vmatpush1.msra.mxu0 0.0
    %5354 = vmatprep.subr.mxu0 0.0
    %5355 = vmatpush1.msra.mxu0 0.0
    %5356 = vmatprep.subr.mxu0 0.0
    %5357 = vmatpush1.msra.mxu0 0.0
    %5358 = vmatprep.subr.mxu0 0.0
    %5359 = vmatpush1.msra.mxu0 0.0
    %5360 = vmatprep.subr.mxu0 0.0
    %5361 = vmatpush1.msra.mxu0 0.0
    %5362 = vmatprep.subr.mxu0 0.0
    %5363 = vmatpush1.msra.mxu0 0.0
    %5364 = vmatprep.subr.mxu0 0.0
    %5365 = vmatpush1.msra.mxu0 0.0
    %5366 = vmatprep.subr.mxu0 0.0
    %5367 = vmatpush1.msra.mxu0 0.0
    %5368 = vmatprep.subr.mxu0 0.0
    %5369 = vmatpush1.msra.mxu0 0.0
    %5370 = vmatprep.subr.mxu0 0.0
    %5371 = vmatpush1.msra.mxu0 0.0
    %5372 = vmatprep.subr.mxu0 0.0
    %5373 = vmatpush1.msra.mxu0 0.0
    %5374 = vmatprep.mubr.f32.mxu0 0.0
    %5375 = vmatmul.mubr.f32.gmra.mrb[0].mxu0 %v5308
    %v5376 = vpop.f32.mrb[0].mxu0
    %v5377 = vadd.f32 %v5305, %v5376
    %v5378 = vpop.f32.mrb[0].mxu0
    %5379 = vdwg.mxu0
    %vm5380 = vcmask 25600
    %5381 = vst.msk [vmem:[#allocation2] sm:$0x3] %vm5380, %v5377
    // Predicated region
    $region74: #{rcnn_forward.1} parent=1 // pred_check
      _
    $region75: #{rcnn_forward.1} parent=1 // pred_check_branch
      %5383 = sbr.rel (0) target = $region77
    $region76: #{rcnn_forward.1} parent=1 // pred_region
      %s5385 = ssub.s32 32, 32
      %5386 = vsyncadd [#allocation3], %s5385
      %s5388 = sshll.u32 [#allocation2], 4
      %s5389 = int_to_ptr.vmem [resolvable:$true] %s5388
      %5391 = dma.vmem_to_hbm [thread:$0]  %s5389, 32, %s18, [#allocation3]
    $region77: #{rcnn_forward.1} parent=1 // pred_fallthru
      _
    // Predicated region
    $region78: #{rcnn_forward.1} parent=1 // pred_check
      _
    $region79: #{rcnn_forward.1} parent=1 // pred_check_branch
      %5393 = sbr.rel (0) target = $region81
    $region80: #{rcnn_forward.1} parent=1 // pred_region
      %5394 = dma.done [#allocation3], 32
    $region81: #{rcnn_forward.1} parent=1 // pred_fallthru
      _
    %5395 = vsyncpa [#allocation3], 1

</llo_original>
